<compile_context>
chip_gen: v7x
topology: tpu7x:2x2x1
jax: 0.10.0
libtpu: 0.0.40
codegen_flags: <defaults>
</compile_context>

<pallas_src>
import functools

import jax
import jax.numpy as jnp
from jax.experimental import pallas as pl
from jax.experimental.pallas import tpu as pltpu


# ----------------------------- kernel ----------------------------------------


def _fused_attention_kernel(x_ref, wqkv_ref, wproj_ref, bproj_ref, o_ref, *,
                            num_heads, head_dim):
    # x_ref:     (Bt, N, C)  input dtype (f32 here)
    # wqkv_ref:  (C, 3C)     bf16, q-columns pre-scaled by head_dim**-0.5
    # wproj_ref: (H, D, C)   bf16 (per-head row slices of the proj weight)
    # bproj_ref: (1, C)      f32
    # o_ref:     (Bt, N, C)
    Bt, N, C = x_ref.shape
    H, D = num_heads, head_dim
    M = Bt * N

    # Fold the Bt batch elements into the row (sublane) axis for the projections;
    # this reshape only merges leading dims (tile-aligned, layout preserving).
    x = x_ref[...].astype(jnp.bfloat16).reshape(M, C)

    # Fused QKV projection (bias-free), f32 accumulation.  The softmax scale is
    # already baked into the q-columns of the bf16 weight.
    qkv = jnp.dot(x, wqkv_ref[...], preferred_element_type=jnp.float32)   # (M, 3C)

    out_acc = None
    for h in range(H):  # static unroll over heads; intermediates die per iteration
        lo, hi = h * D, (h + 1) * D
        # Per-head q/k/v slices, recast to bf16 only for the MXU; reshaped back to
        # (Bt, N, D) so attention never mixes tokens from different batch elements.
        q = qkv[:, lo:hi].astype(jnp.bfloat16).reshape(Bt, N, D)
        k = qkv[:, C + lo:C + hi].astype(jnp.bfloat16).reshape(Bt, N, D)
        v = qkv[:, 2 * C + lo:2 * C + hi].astype(jnp.bfloat16).reshape(Bt, N, D)

        s = jnp.einsum("bnd,bmd->bnm", q, k,
                       preferred_element_type=jnp.float32)                # (Bt, N, N)

        # Numerically-stable softmax kept in f32 (required on v5e: no bf16 VPU/EUP).
        mx = jnp.max(s, axis=-1, keepdims=True)
        p = jnp.exp(s - mx)
        denom = jnp.sum(p, axis=-1, keepdims=True)
        p = p * pl.reciprocal(denom, approx=True)                          # EUP slot

        pv = jnp.einsum("bnm,bmd->bnd", p.astype(jnp.bfloat16), v,
                        preferred_element_type=jnp.float32)                # (Bt, N, D)

        # Head merge + output projection folded into one MXU accumulation:
        #   out += pv_h @ w_proj[h*D:(h+1)*D, :]
        # (no lane-axis concatenate, no list of live per-head results).
        contrib = jnp.dot(pv.reshape(M, D).astype(jnp.bfloat16), wproj_ref[h],
                          preferred_element_type=jnp.float32)              # (M, C)
        out_acc = contrib if out_acc is None else out_acc + contrib

    out = out_acc + bproj_ref[...]                                         # (M, C)
    o_ref[...] = out.reshape(Bt, N, C).astype(o_ref.dtype)


# ----------------------------- wrapper ----------------------------------------


def _vmem_bytes_estimate(batch_tile, N, C, H, D, x_bytes, out_bytes):
    """Rough per-step VMEM need (bytes) for sizing vmem_limit_bytes."""
    M = batch_tile * N
    io = 2 * M * C * (x_bytes + out_bytes)          # double-buffered x / out blocks
    weights = (3 * C * C + C * C) * 2 + C * 4        # bf16 weights + f32 bias
    work = (M * 3 * C * 4                            # qkv f32
            + M * C * (2 + 4)                        # bf16 x copy + f32 accumulator
            + 2 * batch_tile * N * N * 4             # scores + probs f32
            + 3 * M * D * 4)                         # per-head q/k/v slices
    return io + weights + work


def attention_forward(x, w_qkv, w_proj, b_proj, num_heads, *,
                      batch_tile=None, out_dtype=None):
    """Pallas implementation of Attention.forward (eval mode, qknorm=False).

    Weights are stored as (in_features, out_features), i.e. the kernel computes
    x @ W, equivalent to PyTorch's x @ W.T with W of shape (out, in).
    out_dtype may be set to jnp.bfloat16 if downstream accepts it (halves the
    output store/DMA bytes); defaults to x.dtype to match the module.
    """
    B, N, C = x.shape
    H = num_heads
    D = C // H
    scale = float(D) ** -0.5
    out_dtype = x.dtype if out_dtype is None else out_dtype

    # Fold batch into each grid step (big MXU tiles, fewer pipeline steps), but
    # keep >= 2 grid steps when possible so v7x megacore can shard the batch axis.
    if batch_tile is None:
        batch_tile = B // 2 if (B >= 2 and B % 2 == 0) else B
    assert B % batch_tile == 0, (B, batch_tile)
    grid = (B // batch_tile,)

    # One-time parameter prep (off the hot path):
    #  * bf16 weights (half the DMA bytes, no per-step casts of constant blocks),
    #  * softmax scale baked into the q-columns of w_qkv,
    #  * w_proj pre-split into per-head (D, C) row slices.
    w_qkv_prep = jnp.concatenate(
        [w_qkv[:, :C] * scale, w_qkv[:, C:]], axis=1).astype(jnp.bfloat16)
    w_proj_prep = w_proj.reshape(H, D, C).astype(jnp.bfloat16)
    b_proj_prep = b_proj.reshape(1, C).astype(jnp.float32)

    vmem_limit = int(min(64 * 1024 * 1024,
                         max(16 * 1024 * 1024,
                             2 * _vmem_bytes_estimate(
                                 batch_tile, N, C, H, D,
                                 x.dtype.itemsize,
                                 jnp.dtype(out_dtype).itemsize))))

    kern = functools.partial(_fused_attention_kernel, num_heads=H, head_dim=D)

    return pl.pallas_call(
        kern,
        out_shape=jax.ShapeDtypeStruct((B, N, C), out_dtype),
        grid=grid,
        in_specs=[
            pl.BlockSpec((batch_tile, N, C), lambda b: (b, 0, 0)),  # x (per step)
            pl.BlockSpec((C, 3 * C), lambda b: (0, 0)),             # w_qkv (constant)
            pl.BlockSpec((H, D, C), lambda b: (0, 0, 0)),           # w_proj per head
            pl.BlockSpec((1, C), lambda b: (0, 0)),                 # proj bias
        ],
        out_specs=pl.BlockSpec((batch_tile, N, C), lambda b: (b, 0, 0)),
        compiler_params=pltpu.CompilerParams(
            dimension_semantics=("parallel",),    # batch-tile axis: megacore-shardable
            vmem_limit_bytes=vmem_limit,
        ),
    )(x, w_qkv_prep, w_proj_prep, b_proj_prep)


# ----------------------------- reference ---------------------------------------


def attention_reference(x, w_qkv, w_proj, b_proj, num_heads):
    B, N, C = x.shape
    H = num_heads
    D = C // H
    qkv = x @ w_qkv
    qkv = qkv.reshape(B, N, 3, H, D).transpose(2, 0, 3, 1, 4)
    q, k, v = qkv[0], qkv[1], qkv[2]
    s = jnp.einsum("bhnd,bhmd->bhnm", q, k) * (float(D) ** -0.5)
    p = jax.nn.softmax(s, axis=-1)
    o = jnp.einsum("bhnm,bhmd->bhnd", p, v)
    o = o.transpose(0, 2, 1, 3).reshape(B, N, C)
    return o @ w_proj + b_proj


# ----------------------------- main --------------------------------------------


if __name__ == "__main__":
    # Small but lane-dense shapes: dim=C=128 (full 128-lane last dim), num_heads=8
    # (module default) -> head_dim=16.  B=8 so the batch-folding path is exercised
    # (batch_tile=4, grid=(2,) -> two megacore-shardable steps).
    B, N, C = 8, 16, 128
    num_heads = 8

    key = jax.random.PRNGKey(0)
    kx, kqkv, kproj, kb = jax.random.split(key, 4)

    x = jax.random.normal(kx, (B, N, C), dtype=jnp.float32)
    # Parameter shapes per nn.Linear in __init__:
    #   qkv:  Linear(C, 3C, bias=False) -> stored here as (C, 3C)
    #   proj: Linear(C, C,  bias=True)  -> stored here as (C, C), bias (C,)
    w_qkv = 0.02 * jax.random.normal(kqkv, (C, 3 * C), dtype=jnp.float32)
    w_proj = 0.02 * jax.random.normal(kproj, (C, C), dtype=jnp.float32)
    b_proj = 0.02 * jax.random.normal(kb, (C,), dtype=jnp.float32)

    out = attention_forward(x, w_qkv, w_proj, b_proj, num_heads)
    out = jax.block_until_ready(out)

    ref = attention_reference(x, w_qkv, w_proj, b_proj, num_heads)
    assert out.shape == (B, N, C)
    max_err = float(jnp.max(jnp.abs(out - ref)))
    # bf16 MXU operands with f32 accumulation -> bf16-appropriate tolerance.
    assert jnp.allclose(out, ref, atol=1e-2, rtol=1e-2), (
        f"mismatch vs reference (max abs err {max_err})")

    # TODO(synk): attn_drop/proj_drop are identity in eval mode; qknorm=True
    #             (rmsnorm on q/k) path not implemented (module default is False).
    print("KERNEL_OK")
</pallas_src>

<mosaic_0001>
module attributes {stable_mosaic.version = 11 : i64} {
  func.func @_fused_attention_kernel(%arg0: i32, %arg1: memref<4x16x128xf32, #tpu.memory_space<vmem>>, %arg2: memref<128x384xbf16, #tpu.memory_space<vmem>>, %arg3: memref<8x16x128xbf16, #tpu.memory_space<vmem>>, %arg4: memref<1x128xf32, #tpu.memory_space<vmem>>, %arg5: memref<4x16x128xf32, #tpu.memory_space<vmem>>) attributes {dimension_semantics = [#tpu.dimension_semantics<parallel>], iteration_bounds = array<i64: 2>, scalar_prefetch = 0 : i64, scratch_operands = 0 : i64, tpu.core_type = #tpu.core_type<tc>, window_params = [{transform_indices = @transform_0, window_bounds = array<i64: 4, 16, 128>}, {pipeline_mode = #tpu.pipeline_mode<synchronous>, transform_indices = @transform_1, window_bounds = array<i64: 128, 384>}, {pipeline_mode = #tpu.pipeline_mode<synchronous>, transform_indices = @transform_2, window_bounds = array<i64: 8, 16, 128>}, {pipeline_mode = #tpu.pipeline_mode<synchronous>, transform_indices = @transform_3, window_bounds = array<i64: 1, 128>}, {transform_indices = @transform_4, window_bounds = array<i64: 4, 16, 128>}]} {
    %c0 = arith.constant 0 : index
    %c0_0 = arith.constant 0 : index
    %c0_1 = arith.constant 0 : index
    %0 = vector.load %arg1[%c0, %c0_0, %c0_1] : memref<4x16x128xf32, #tpu.memory_space<vmem>>, vector<4x16x128xf32>
    %1 = arith.truncf %0 : vector<4x16x128xf32> to vector<4x16x128xbf16>
    %2 = vector.shape_cast %1 : vector<4x16x128xbf16> to vector<64x128xbf16>
    %c0_2 = arith.constant 0 : index
    %c0_3 = arith.constant 0 : index
    %3 = vector.load %arg2[%c0_2, %c0_3] : memref<128x384xbf16, #tpu.memory_space<vmem>>, vector<128x384xbf16>
    %cst = arith.constant dense<0.000000e+00> : vector<64x384xf32>
    %4 = tpu.matmul %2, %3, %cst {dimension_numbers = #tpu.dot_dimension_numbers<[1], [0], [0], [1], [0, 0, 1, 1], [], []>} : vector<64x128xbf16>, vector<128x384xbf16>, vector<64x384xf32> -> vector<64x384xf32>
    %5 = vector.extract_strided_slice %4 {offsets = [0, 0], sizes = [64, 16], strides = [1, 1]} : vector<64x384xf32> to vector<64x16xf32>
    %6 = arith.truncf %5 : vector<64x16xf32> to vector<64x16xbf16>
    %7 = vector.shape_cast %6 : vector<64x16xbf16> to vector<4x16x16xbf16>
    %8 = vector.extract_strided_slice %4 {offsets = [0, 128], sizes = [64, 16], strides = [1, 1]} : vector<64x384xf32> to vector<64x16xf32>
    %9 = arith.truncf %8 : vector<64x16xf32> to vector<64x16xbf16>
    %10 = vector.shape_cast %9 : vector<64x16xbf16> to vector<4x16x16xbf16>
    %11 = vector.extract_strided_slice %4 {offsets = [0, 256], sizes = [64, 16], strides = [1, 1]} : vector<64x384xf32> to vector<64x16xf32>
    %12 = arith.truncf %11 : vector<64x16xf32> to vector<64x16xbf16>
    %13 = vector.shape_cast %12 : vector<64x16xbf16> to vector<4x16x16xbf16>
    "tpu.trace_start"() <{level = 10 : i32, message = "bnd,bmd->bnm"}> : () -> ()
    %cst_4 = arith.constant dense<0.000000e+00> : vector<4x16x16xf32>
    %14 = tpu.matmul %7, %10, %cst_4 {dimension_numbers = #tpu.dot_dimension_numbers<[2], [2], [1], [1], [0, 0, 0, 1, 1, 1], [0], [0]>} : vector<4x16x16xbf16>, vector<4x16x16xbf16>, vector<4x16x16xf32> -> vector<4x16x16xf32>
    "tpu.trace_stop"() : () -> ()
    %cst_5 = arith.constant dense<0xFF800000> : vector<4x16xf32>
    %15 = vector.multi_reduction <maximumf>, %14, %cst_5 [2] : vector<4x16x16xf32> to vector<4x16xf32>
    %16 = vector.shape_cast %15 : vector<4x16xf32> to vector<4x16x1xf32>
    %17 = vector.broadcast %16 : vector<4x16x1xf32> to vector<4x16x16xf32>
    %18 = arith.subf %14, %17 : vector<4x16x16xf32>
    %19 = math.exp %18 : vector<4x16x16xf32>
    %cst_6 = arith.constant dense<0.000000e+00> : vector<4x16xf32>
    %20 = vector.multi_reduction <add>, %19, %cst_6 [2] : vector<4x16x16xf32> to vector<4x16xf32>
    %21 = vector.shape_cast %20 : vector<4x16xf32> to vector<4x16x1xf32>
    %22 = tpu.reciprocal %21 {approx = true} : vector<4x16x1xf32> -> vector<4x16x1xf32>
    %23 = vector.broadcast %22 : vector<4x16x1xf32> to vector<4x16x16xf32>
    %24 = arith.mulf %19, %23 : vector<4x16x16xf32>
    %25 = arith.truncf %24 : vector<4x16x16xf32> to vector<4x16x16xbf16>
    "tpu.trace_start"() <{level = 10 : i32, message = "bnm,bmd->bnd"}> : () -> ()
    %cst_7 = arith.constant dense<0.000000e+00> : vector<4x16x16xf32>
    %26 = tpu.matmul %25, %13, %cst_7 {dimension_numbers = #tpu.dot_dimension_numbers<[2], [1], [1], [2], [0, 0, 0, 1, 1, 2], [0], [0]>} : vector<4x16x16xbf16>, vector<4x16x16xbf16>, vector<4x16x16xf32> -> vector<4x16x16xf32>
    "tpu.trace_stop"() : () -> ()
    %27 = vector.shape_cast %26 : vector<4x16x16xf32> to vector<64x16xf32>
    %28 = arith.truncf %27 : vector<64x16xf32> to vector<64x16xbf16>
    %c0_8 = arith.constant 0 : index
    %c0_9 = arith.constant 0 : index
    %c0_10 = arith.constant 0 : index
    %29 = vector.load %arg3[%c0_8, %c0_9, %c0_10] : memref<8x16x128xbf16, #tpu.memory_space<vmem>>, vector<1x16x128xbf16>
    %30 = vector.shape_cast %29 : vector<1x16x128xbf16> to vector<16x128xbf16>
    %cst_11 = arith.constant dense<0.000000e+00> : vector<64x128xf32>
    %31 = tpu.matmul %28, %30, %cst_11 {dimension_numbers = #tpu.dot_dimension_numbers<[1], [0], [0], [1], [0, 0, 1, 1], [], []>} : vector<64x16xbf16>, vector<16x128xbf16>, vector<64x128xf32> -> vector<64x128xf32>
    %32 = vector.extract_strided_slice %4 {offsets = [0, 16], sizes = [64, 16], strides = [1, 1]} : vector<64x384xf32> to vector<64x16xf32>
    %33 = arith.truncf %32 : vector<64x16xf32> to vector<64x16xbf16>
    %34 = vector.shape_cast %33 : vector<64x16xbf16> to vector<4x16x16xbf16>
    %35 = vector.extract_strided_slice %4 {offsets = [0, 144], sizes = [64, 16], strides = [1, 1]} : vector<64x384xf32> to vector<64x16xf32>
    %36 = arith.truncf %35 : vector<64x16xf32> to vector<64x16xbf16>
    %37 = vector.shape_cast %36 : vector<64x16xbf16> to vector<4x16x16xbf16>
    %38 = vector.extract_strided_slice %4 {offsets = [0, 272], sizes = [64, 16], strides = [1, 1]} : vector<64x384xf32> to vector<64x16xf32>
    %39 = arith.truncf %38 : vector<64x16xf32> to vector<64x16xbf16>
    %40 = vector.shape_cast %39 : vector<64x16xbf16> to vector<4x16x16xbf16>
    "tpu.trace_start"() <{level = 10 : i32, message = "bnd,bmd->bnm"}> : () -> ()
    %cst_12 = arith.constant dense<0.000000e+00> : vector<4x16x16xf32>
    %41 = tpu.matmul %34, %37, %cst_12 {dimension_numbers = #tpu.dot_dimension_numbers<[2], [2], [1], [1], [0, 0, 0, 1, 1, 1], [0], [0]>} : vector<4x16x16xbf16>, vector<4x16x16xbf16>, vector<4x16x16xf32> -> vector<4x16x16xf32>
    "tpu.trace_stop"() : () -> ()
    %cst_13 = arith.constant dense<0xFF800000> : vector<4x16xf32>
    %42 = vector.multi_reduction <maximumf>, %41, %cst_13 [2] : vector<4x16x16xf32> to vector<4x16xf32>
    %43 = vector.shape_cast %42 : vector<4x16xf32> to vector<4x16x1xf32>
    %44 = vector.broadcast %43 : vector<4x16x1xf32> to vector<4x16x16xf32>
    %45 = arith.subf %41, %44 : vector<4x16x16xf32>
    %46 = math.exp %45 : vector<4x16x16xf32>
    %cst_14 = arith.constant dense<0.000000e+00> : vector<4x16xf32>
    %47 = vector.multi_reduction <add>, %46, %cst_14 [2] : vector<4x16x16xf32> to vector<4x16xf32>
    %48 = vector.shape_cast %47 : vector<4x16xf32> to vector<4x16x1xf32>
    %49 = tpu.reciprocal %48 {approx = true} : vector<4x16x1xf32> -> vector<4x16x1xf32>
    %50 = vector.broadcast %49 : vector<4x16x1xf32> to vector<4x16x16xf32>
    %51 = arith.mulf %46, %50 : vector<4x16x16xf32>
    %52 = arith.truncf %51 : vector<4x16x16xf32> to vector<4x16x16xbf16>
    "tpu.trace_start"() <{level = 10 : i32, message = "bnm,bmd->bnd"}> : () -> ()
    %cst_15 = arith.constant dense<0.000000e+00> : vector<4x16x16xf32>
    %53 = tpu.matmul %52, %40, %cst_15 {dimension_numbers = #tpu.dot_dimension_numbers<[2], [1], [1], [2], [0, 0, 0, 1, 1, 2], [0], [0]>} : vector<4x16x16xbf16>, vector<4x16x16xbf16>, vector<4x16x16xf32> -> vector<4x16x16xf32>
    "tpu.trace_stop"() : () -> ()
    %54 = vector.shape_cast %53 : vector<4x16x16xf32> to vector<64x16xf32>
    %55 = arith.truncf %54 : vector<64x16xf32> to vector<64x16xbf16>
    %c1 = arith.constant 1 : index
    %c0_16 = arith.constant 0 : index
    %c0_17 = arith.constant 0 : index
    %56 = vector.load %arg3[%c1, %c0_16, %c0_17] : memref<8x16x128xbf16, #tpu.memory_space<vmem>>, vector<1x16x128xbf16>
    %57 = vector.shape_cast %56 : vector<1x16x128xbf16> to vector<16x128xbf16>
    %cst_18 = arith.constant dense<0.000000e+00> : vector<64x128xf32>
    %58 = tpu.matmul %55, %57, %cst_18 {dimension_numbers = #tpu.dot_dimension_numbers<[1], [0], [0], [1], [0, 0, 1, 1], [], []>} : vector<64x16xbf16>, vector<16x128xbf16>, vector<64x128xf32> -> vector<64x128xf32>
    %59 = arith.addf %31, %58 : vector<64x128xf32>
    %60 = vector.extract_strided_slice %4 {offsets = [0, 32], sizes = [64, 16], strides = [1, 1]} : vector<64x384xf32> to vector<64x16xf32>
    %61 = arith.truncf %60 : vector<64x16xf32> to vector<64x16xbf16>
    %62 = vector.shape_cast %61 : vector<64x16xbf16> to vector<4x16x16xbf16>
    %63 = vector.extract_strided_slice %4 {offsets = [0, 160], sizes = [64, 16], strides = [1, 1]} : vector<64x384xf32> to vector<64x16xf32>
    %64 = arith.truncf %63 : vector<64x16xf32> to vector<64x16xbf16>
    %65 = vector.shape_cast %64 : vector<64x16xbf16> to vector<4x16x16xbf16>
    %66 = vector.extract_strided_slice %4 {offsets = [0, 288], sizes = [64, 16], strides = [1, 1]} : vector<64x384xf32> to vector<64x16xf32>
    %67 = arith.truncf %66 : vector<64x16xf32> to vector<64x16xbf16>
    %68 = vector.shape_cast %67 : vector<64x16xbf16> to vector<4x16x16xbf16>
    "tpu.trace_start"() <{level = 10 : i32, message = "bnd,bmd->bnm"}> : () -> ()
    %cst_19 = arith.constant dense<0.000000e+00> : vector<4x16x16xf32>
    %69 = tpu.matmul %62, %65, %cst_19 {dimension_numbers = #tpu.dot_dimension_numbers<[2], [2], [1], [1], [0, 0, 0, 1, 1, 1], [0], [0]>} : vector<4x16x16xbf16>, vector<4x16x16xbf16>, vector<4x16x16xf32> -> vector<4x16x16xf32>
    "tpu.trace_stop"() : () -> ()
    %cst_20 = arith.constant dense<0xFF800000> : vector<4x16xf32>
    %70 = vector.multi_reduction <maximumf>, %69, %cst_20 [2] : vector<4x16x16xf32> to vector<4x16xf32>
    %71 = vector.shape_cast %70 : vector<4x16xf32> to vector<4x16x1xf32>
    %72 = vector.broadcast %71 : vector<4x16x1xf32> to vector<4x16x16xf32>
    %73 = arith.subf %69, %72 : vector<4x16x16xf32>
    %74 = math.exp %73 : vector<4x16x16xf32>
    %cst_21 = arith.constant dense<0.000000e+00> : vector<4x16xf32>
    %75 = vector.multi_reduction <add>, %74, %cst_21 [2] : vector<4x16x16xf32> to vector<4x16xf32>
    %76 = vector.shape_cast %75 : vector<4x16xf32> to vector<4x16x1xf32>
    %77 = tpu.reciprocal %76 {approx = true} : vector<4x16x1xf32> -> vector<4x16x1xf32>
    %78 = vector.broadcast %77 : vector<4x16x1xf32> to vector<4x16x16xf32>
    %79 = arith.mulf %74, %78 : vector<4x16x16xf32>
    %80 = arith.truncf %79 : vector<4x16x16xf32> to vector<4x16x16xbf16>
    "tpu.trace_start"() <{level = 10 : i32, message = "bnm,bmd->bnd"}> : () -> ()
    %cst_22 = arith.constant dense<0.000000e+00> : vector<4x16x16xf32>
    %81 = tpu.matmul %80, %68, %cst_22 {dimension_numbers = #tpu.dot_dimension_numbers<[2], [1], [1], [2], [0, 0, 0, 1, 1, 2], [0], [0]>} : vector<4x16x16xbf16>, vector<4x16x16xbf16>, vector<4x16x16xf32> -> vector<4x16x16xf32>
    "tpu.trace_stop"() : () -> ()
    %82 = vector.shape_cast %81 : vector<4x16x16xf32> to vector<64x16xf32>
    %83 = arith.truncf %82 : vector<64x16xf32> to vector<64x16xbf16>
    %c2 = arith.constant 2 : index
    %c0_23 = arith.constant 0 : index
    %c0_24 = arith.constant 0 : index
    %84 = vector.load %arg3[%c2, %c0_23, %c0_24] : memref<8x16x128xbf16, #tpu.memory_space<vmem>>, vector<1x16x128xbf16>
    %85 = vector.shape_cast %84 : vector<1x16x128xbf16> to vector<16x128xbf16>
    %cst_25 = arith.constant dense<0.000000e+00> : vector<64x128xf32>
    %86 = tpu.matmul %83, %85, %cst_25 {dimension_numbers = #tpu.dot_dimension_numbers<[1], [0], [0], [1], [0, 0, 1, 1], [], []>} : vector<64x16xbf16>, vector<16x128xbf16>, vector<64x128xf32> -> vector<64x128xf32>
    %87 = arith.addf %59, %86 : vector<64x128xf32>
    %88 = vector.extract_strided_slice %4 {offsets = [0, 48], sizes = [64, 16], strides = [1, 1]} : vector<64x384xf32> to vector<64x16xf32>
    %89 = arith.truncf %88 : vector<64x16xf32> to vector<64x16xbf16>
    %90 = vector.shape_cast %89 : vector<64x16xbf16> to vector<4x16x16xbf16>
    %91 = vector.extract_strided_slice %4 {offsets = [0, 176], sizes = [64, 16], strides = [1, 1]} : vector<64x384xf32> to vector<64x16xf32>
    %92 = arith.truncf %91 : vector<64x16xf32> to vector<64x16xbf16>
    %93 = vector.shape_cast %92 : vector<64x16xbf16> to vector<4x16x16xbf16>
    %94 = vector.extract_strided_slice %4 {offsets = [0, 304], sizes = [64, 16], strides = [1, 1]} : vector<64x384xf32> to vector<64x16xf32>
    %95 = arith.truncf %94 : vector<64x16xf32> to vector<64x16xbf16>
    %96 = vector.shape_cast %95 : vector<64x16xbf16> to vector<4x16x16xbf16>
    "tpu.trace_start"() <{level = 10 : i32, message = "bnd,bmd->bnm"}> : () -> ()
    %cst_26 = arith.constant dense<0.000000e+00> : vector<4x16x16xf32>
    %97 = tpu.matmul %90, %93, %cst_26 {dimension_numbers = #tpu.dot_dimension_numbers<[2], [2], [1], [1], [0, 0, 0, 1, 1, 1], [0], [0]>} : vector<4x16x16xbf16>, vector<4x16x16xbf16>, vector<4x16x16xf32> -> vector<4x16x16xf32>
    "tpu.trace_stop"() : () -> ()
    %cst_27 = arith.constant dense<0xFF800000> : vector<4x16xf32>
    %98 = vector.multi_reduction <maximumf>, %97, %cst_27 [2] : vector<4x16x16xf32> to vector<4x16xf32>
    %99 = vector.shape_cast %98 : vector<4x16xf32> to vector<4x16x1xf32>
    %100 = vector.broadcast %99 : vector<4x16x1xf32> to vector<4x16x16xf32>
    %101 = arith.subf %97, %100 : vector<4x16x16xf32>
    %102 = math.exp %101 : vector<4x16x16xf32>
    %cst_28 = arith.constant dense<0.000000e+00> : vector<4x16xf32>
    %103 = vector.multi_reduction <add>, %102, %cst_28 [2] : vector<4x16x16xf32> to vector<4x16xf32>
    %104 = vector.shape_cast %103 : vector<4x16xf32> to vector<4x16x1xf32>
    %105 = tpu.reciprocal %104 {approx = true} : vector<4x16x1xf32> -> vector<4x16x1xf32>
    %106 = vector.broadcast %105 : vector<4x16x1xf32> to vector<4x16x16xf32>
    %107 = arith.mulf %102, %106 : vector<4x16x16xf32>
    %108 = arith.truncf %107 : vector<4x16x16xf32> to vector<4x16x16xbf16>
    "tpu.trace_start"() <{level = 10 : i32, message = "bnm,bmd->bnd"}> : () -> ()
    %cst_29 = arith.constant dense<0.000000e+00> : vector<4x16x16xf32>
    %109 = tpu.matmul %108, %96, %cst_29 {dimension_numbers = #tpu.dot_dimension_numbers<[2], [1], [1], [2], [0, 0, 0, 1, 1, 2], [0], [0]>} : vector<4x16x16xbf16>, vector<4x16x16xbf16>, vector<4x16x16xf32> -> vector<4x16x16xf32>
    "tpu.trace_stop"() : () -> ()
    %110 = vector.shape_cast %109 : vector<4x16x16xf32> to vector<64x16xf32>
    %111 = arith.truncf %110 : vector<64x16xf32> to vector<64x16xbf16>
    %c3 = arith.constant 3 : index
    %c0_30 = arith.constant 0 : index
    %c0_31 = arith.constant 0 : index
    %112 = vector.load %arg3[%c3, %c0_30, %c0_31] : memref<8x16x128xbf16, #tpu.memory_space<vmem>>, vector<1x16x128xbf16>
    %113 = vector.shape_cast %112 : vector<1x16x128xbf16> to vector<16x128xbf16>
    %cst_32 = arith.constant dense<0.000000e+00> : vector<64x128xf32>
    %114 = tpu.matmul %111, %113, %cst_32 {dimension_numbers = #tpu.dot_dimension_numbers<[1], [0], [0], [1], [0, 0, 1, 1], [], []>} : vector<64x16xbf16>, vector<16x128xbf16>, vector<64x128xf32> -> vector<64x128xf32>
    %115 = arith.addf %87, %114 : vector<64x128xf32>
    %116 = vector.extract_strided_slice %4 {offsets = [0, 64], sizes = [64, 16], strides = [1, 1]} : vector<64x384xf32> to vector<64x16xf32>
    %117 = arith.truncf %116 : vector<64x16xf32> to vector<64x16xbf16>
    %118 = vector.shape_cast %117 : vector<64x16xbf16> to vector<4x16x16xbf16>
    %119 = vector.extract_strided_slice %4 {offsets = [0, 192], sizes = [64, 16], strides = [1, 1]} : vector<64x384xf32> to vector<64x16xf32>
    %120 = arith.truncf %119 : vector<64x16xf32> to vector<64x16xbf16>
    %121 = vector.shape_cast %120 : vector<64x16xbf16> to vector<4x16x16xbf16>
    %122 = vector.extract_strided_slice %4 {offsets = [0, 320], sizes = [64, 16], strides = [1, 1]} : vector<64x384xf32> to vector<64x16xf32>
    %123 = arith.truncf %122 : vector<64x16xf32> to vector<64x16xbf16>
    %124 = vector.shape_cast %123 : vector<64x16xbf16> to vector<4x16x16xbf16>
    "tpu.trace_start"() <{level = 10 : i32, message = "bnd,bmd->bnm"}> : () -> ()
    %cst_33 = arith.constant dense<0.000000e+00> : vector<4x16x16xf32>
    %125 = tpu.matmul %118, %121, %cst_33 {dimension_numbers = #tpu.dot_dimension_numbers<[2], [2], [1], [1], [0, 0, 0, 1, 1, 1], [0], [0]>} : vector<4x16x16xbf16>, vector<4x16x16xbf16>, vector<4x16x16xf32> -> vector<4x16x16xf32>
    "tpu.trace_stop"() : () -> ()
    %cst_34 = arith.constant dense<0xFF800000> : vector<4x16xf32>
    %126 = vector.multi_reduction <maximumf>, %125, %cst_34 [2] : vector<4x16x16xf32> to vector<4x16xf32>
    %127 = vector.shape_cast %126 : vector<4x16xf32> to vector<4x16x1xf32>
    %128 = vector.broadcast %127 : vector<4x16x1xf32> to vector<4x16x16xf32>
    %129 = arith.subf %125, %128 : vector<4x16x16xf32>
    %130 = math.exp %129 : vector<4x16x16xf32>
    %cst_35 = arith.constant dense<0.000000e+00> : vector<4x16xf32>
    %131 = vector.multi_reduction <add>, %130, %cst_35 [2] : vector<4x16x16xf32> to vector<4x16xf32>
    %132 = vector.shape_cast %131 : vector<4x16xf32> to vector<4x16x1xf32>
    %133 = tpu.reciprocal %132 {approx = true} : vector<4x16x1xf32> -> vector<4x16x1xf32>
    %134 = vector.broadcast %133 : vector<4x16x1xf32> to vector<4x16x16xf32>
    %135 = arith.mulf %130, %134 : vector<4x16x16xf32>
    %136 = arith.truncf %135 : vector<4x16x16xf32> to vector<4x16x16xbf16>
    "tpu.trace_start"() <{level = 10 : i32, message = "bnm,bmd->bnd"}> : () -> ()
    %cst_36 = arith.constant dense<0.000000e+00> : vector<4x16x16xf32>
    %137 = tpu.matmul %136, %124, %cst_36 {dimension_numbers = #tpu.dot_dimension_numbers<[2], [1], [1], [2], [0, 0, 0, 1, 1, 2], [0], [0]>} : vector<4x16x16xbf16>, vector<4x16x16xbf16>, vector<4x16x16xf32> -> vector<4x16x16xf32>
    "tpu.trace_stop"() : () -> ()
    %138 = vector.shape_cast %137 : vector<4x16x16xf32> to vector<64x16xf32>
    %139 = arith.truncf %138 : vector<64x16xf32> to vector<64x16xbf16>
    %c4 = arith.constant 4 : index
    %c0_37 = arith.constant 0 : index
    %c0_38 = arith.constant 0 : index
    %140 = vector.load %arg3[%c4, %c0_37, %c0_38] : memref<8x16x128xbf16, #tpu.memory_space<vmem>>, vector<1x16x128xbf16>
    %141 = vector.shape_cast %140 : vector<1x16x128xbf16> to vector<16x128xbf16>
    %cst_39 = arith.constant dense<0.000000e+00> : vector<64x128xf32>
    %142 = tpu.matmul %139, %141, %cst_39 {dimension_numbers = #tpu.dot_dimension_numbers<[1], [0], [0], [1], [0, 0, 1, 1], [], []>} : vector<64x16xbf16>, vector<16x128xbf16>, vector<64x128xf32> -> vector<64x128xf32>
    %143 = arith.addf %115, %142 : vector<64x128xf32>
    %144 = vector.extract_strided_slice %4 {offsets = [0, 80], sizes = [64, 16], strides = [1, 1]} : vector<64x384xf32> to vector<64x16xf32>
    %145 = arith.truncf %144 : vector<64x16xf32> to vector<64x16xbf16>
    %146 = vector.shape_cast %145 : vector<64x16xbf16> to vector<4x16x16xbf16>
    %147 = vector.extract_strided_slice %4 {offsets = [0, 208], sizes = [64, 16], strides = [1, 1]} : vector<64x384xf32> to vector<64x16xf32>
    %148 = arith.truncf %147 : vector<64x16xf32> to vector<64x16xbf16>
    %149 = vector.shape_cast %148 : vector<64x16xbf16> to vector<4x16x16xbf16>
    %150 = vector.extract_strided_slice %4 {offsets = [0, 336], sizes = [64, 16], strides = [1, 1]} : vector<64x384xf32> to vector<64x16xf32>
    %151 = arith.truncf %150 : vector<64x16xf32> to vector<64x16xbf16>
    %152 = vector.shape_cast %151 : vector<64x16xbf16> to vector<4x16x16xbf16>
    "tpu.trace_start"() <{level = 10 : i32, message = "bnd,bmd->bnm"}> : () -> ()
    %cst_40 = arith.constant dense<0.000000e+00> : vector<4x16x16xf32>
    %153 = tpu.matmul %146, %149, %cst_40 {dimension_numbers = #tpu.dot_dimension_numbers<[2], [2], [1], [1], [0, 0, 0, 1, 1, 1], [0], [0]>} : vector<4x16x16xbf16>, vector<4x16x16xbf16>, vector<4x16x16xf32> -> vector<4x16x16xf32>
    "tpu.trace_stop"() : () -> ()
    %cst_41 = arith.constant dense<0xFF800000> : vector<4x16xf32>
    %154 = vector.multi_reduction <maximumf>, %153, %cst_41 [2] : vector<4x16x16xf32> to vector<4x16xf32>
    %155 = vector.shape_cast %154 : vector<4x16xf32> to vector<4x16x1xf32>
    %156 = vector.broadcast %155 : vector<4x16x1xf32> to vector<4x16x16xf32>
    %157 = arith.subf %153, %156 : vector<4x16x16xf32>
    %158 = math.exp %157 : vector<4x16x16xf32>
    %cst_42 = arith.constant dense<0.000000e+00> : vector<4x16xf32>
    %159 = vector.multi_reduction <add>, %158, %cst_42 [2] : vector<4x16x16xf32> to vector<4x16xf32>
    %160 = vector.shape_cast %159 : vector<4x16xf32> to vector<4x16x1xf32>
    %161 = tpu.reciprocal %160 {approx = true} : vector<4x16x1xf32> -> vector<4x16x1xf32>
    %162 = vector.broadcast %161 : vector<4x16x1xf32> to vector<4x16x16xf32>
    %163 = arith.mulf %158, %162 : vector<4x16x16xf32>
    %164 = arith.truncf %163 : vector<4x16x16xf32> to vector<4x16x16xbf16>
    "tpu.trace_start"() <{level = 10 : i32, message = "bnm,bmd->bnd"}> : () -> ()
    %cst_43 = arith.constant dense<0.000000e+00> : vector<4x16x16xf32>
    %165 = tpu.matmul %164, %152, %cst_43 {dimension_numbers = #tpu.dot_dimension_numbers<[2], [1], [1], [2], [0, 0, 0, 1, 1, 2], [0], [0]>} : vector<4x16x16xbf16>, vector<4x16x16xbf16>, vector<4x16x16xf32> -> vector<4x16x16xf32>
    "tpu.trace_stop"() : () -> ()
    %166 = vector.shape_cast %165 : vector<4x16x16xf32> to vector<64x16xf32>
    %167 = arith.truncf %166 : vector<64x16xf32> to vector<64x16xbf16>
    %c5 = arith.constant 5 : index
    %c0_44 = arith.constant 0 : index
    %c0_45 = arith.constant 0 : index
    %168 = vector.load %arg3[%c5, %c0_44, %c0_45] : memref<8x16x128xbf16, #tpu.memory_space<vmem>>, vector<1x16x128xbf16>
    %169 = vector.shape_cast %168 : vector<1x16x128xbf16> to vector<16x128xbf16>
    %cst_46 = arith.constant dense<0.000000e+00> : vector<64x128xf32>
    %170 = tpu.matmul %167, %169, %cst_46 {dimension_numbers = #tpu.dot_dimension_numbers<[1], [0], [0], [1], [0, 0, 1, 1], [], []>} : vector<64x16xbf16>, vector<16x128xbf16>, vector<64x128xf32> -> vector<64x128xf32>
    %171 = arith.addf %143, %170 : vector<64x128xf32>
    %172 = vector.extract_strided_slice %4 {offsets = [0, 96], sizes = [64, 16], strides = [1, 1]} : vector<64x384xf32> to vector<64x16xf32>
    %173 = arith.truncf %172 : vector<64x16xf32> to vector<64x16xbf16>
    %174 = vector.shape_cast %173 : vector<64x16xbf16> to vector<4x16x16xbf16>
    %175 = vector.extract_strided_slice %4 {offsets = [0, 224], sizes = [64, 16], strides = [1, 1]} : vector<64x384xf32> to vector<64x16xf32>
    %176 = arith.truncf %175 : vector<64x16xf32> to vector<64x16xbf16>
    %177 = vector.shape_cast %176 : vector<64x16xbf16> to vector<4x16x16xbf16>
    %178 = vector.extract_strided_slice %4 {offsets = [0, 352], sizes = [64, 16], strides = [1, 1]} : vector<64x384xf32> to vector<64x16xf32>
    %179 = arith.truncf %178 : vector<64x16xf32> to vector<64x16xbf16>
    %180 = vector.shape_cast %179 : vector<64x16xbf16> to vector<4x16x16xbf16>
    "tpu.trace_start"() <{level = 10 : i32, message = "bnd,bmd->bnm"}> : () -> ()
    %cst_47 = arith.constant dense<0.000000e+00> : vector<4x16x16xf32>
    %181 = tpu.matmul %174, %177, %cst_47 {dimension_numbers = #tpu.dot_dimension_numbers<[2], [2], [1], [1], [0, 0, 0, 1, 1, 1], [0], [0]>} : vector<4x16x16xbf16>, vector<4x16x16xbf16>, vector<4x16x16xf32> -> vector<4x16x16xf32>
    "tpu.trace_stop"() : () -> ()
    %cst_48 = arith.constant dense<0xFF800000> : vector<4x16xf32>
    %182 = vector.multi_reduction <maximumf>, %181, %cst_48 [2] : vector<4x16x16xf32> to vector<4x16xf32>
    %183 = vector.shape_cast %182 : vector<4x16xf32> to vector<4x16x1xf32>
    %184 = vector.broadcast %183 : vector<4x16x1xf32> to vector<4x16x16xf32>
    %185 = arith.subf %181, %184 : vector<4x16x16xf32>
    %186 = math.exp %185 : vector<4x16x16xf32>
    %cst_49 = arith.constant dense<0.000000e+00> : vector<4x16xf32>
    %187 = vector.multi_reduction <add>, %186, %cst_49 [2] : vector<4x16x16xf32> to vector<4x16xf32>
    %188 = vector.shape_cast %187 : vector<4x16xf32> to vector<4x16x1xf32>
    %189 = tpu.reciprocal %188 {approx = true} : vector<4x16x1xf32> -> vector<4x16x1xf32>
    %190 = vector.broadcast %189 : vector<4x16x1xf32> to vector<4x16x16xf32>
    %191 = arith.mulf %186, %190 : vector<4x16x16xf32>
    %192 = arith.truncf %191 : vector<4x16x16xf32> to vector<4x16x16xbf16>
    "tpu.trace_start"() <{level = 10 : i32, message = "bnm,bmd->bnd"}> : () -> ()
    %cst_50 = arith.constant dense<0.000000e+00> : vector<4x16x16xf32>
    %193 = tpu.matmul %192, %180, %cst_50 {dimension_numbers = #tpu.dot_dimension_numbers<[2], [1], [1], [2], [0, 0, 0, 1, 1, 2], [0], [0]>} : vector<4x16x16xbf16>, vector<4x16x16xbf16>, vector<4x16x16xf32> -> vector<4x16x16xf32>
    "tpu.trace_stop"() : () -> ()
    %194 = vector.shape_cast %193 : vector<4x16x16xf32> to vector<64x16xf32>
    %195 = arith.truncf %194 : vector<64x16xf32> to vector<64x16xbf16>
    %c6 = arith.constant 6 : index
    %c0_51 = arith.constant 0 : index
    %c0_52 = arith.constant 0 : index
    %196 = vector.load %arg3[%c6, %c0_51, %c0_52] : memref<8x16x128xbf16, #tpu.memory_space<vmem>>, vector<1x16x128xbf16>
    %197 = vector.shape_cast %196 : vector<1x16x128xbf16> to vector<16x128xbf16>
    %cst_53 = arith.constant dense<0.000000e+00> : vector<64x128xf32>
    %198 = tpu.matmul %195, %197, %cst_53 {dimension_numbers = #tpu.dot_dimension_numbers<[1], [0], [0], [1], [0, 0, 1, 1], [], []>} : vector<64x16xbf16>, vector<16x128xbf16>, vector<64x128xf32> -> vector<64x128xf32>
    %199 = arith.addf %171, %198 : vector<64x128xf32>
    %200 = vector.extract_strided_slice %4 {offsets = [0, 112], sizes = [64, 16], strides = [1, 1]} : vector<64x384xf32> to vector<64x16xf32>
    %201 = arith.truncf %200 : vector<64x16xf32> to vector<64x16xbf16>
    %202 = vector.shape_cast %201 : vector<64x16xbf16> to vector<4x16x16xbf16>
    %203 = vector.extract_strided_slice %4 {offsets = [0, 240], sizes = [64, 16], strides = [1, 1]} : vector<64x384xf32> to vector<64x16xf32>
    %204 = arith.truncf %203 : vector<64x16xf32> to vector<64x16xbf16>
    %205 = vector.shape_cast %204 : vector<64x16xbf16> to vector<4x16x16xbf16>
    %206 = vector.extract_strided_slice %4 {offsets = [0, 368], sizes = [64, 16], strides = [1, 1]} : vector<64x384xf32> to vector<64x16xf32>
    %207 = arith.truncf %206 : vector<64x16xf32> to vector<64x16xbf16>
    %208 = vector.shape_cast %207 : vector<64x16xbf16> to vector<4x16x16xbf16>
    "tpu.trace_start"() <{level = 10 : i32, message = "bnd,bmd->bnm"}> : () -> ()
    %cst_54 = arith.constant dense<0.000000e+00> : vector<4x16x16xf32>
    %209 = tpu.matmul %202, %205, %cst_54 {dimension_numbers = #tpu.dot_dimension_numbers<[2], [2], [1], [1], [0, 0, 0, 1, 1, 1], [0], [0]>} : vector<4x16x16xbf16>, vector<4x16x16xbf16>, vector<4x16x16xf32> -> vector<4x16x16xf32>
    "tpu.trace_stop"() : () -> ()
    %cst_55 = arith.constant dense<0xFF800000> : vector<4x16xf32>
    %210 = vector.multi_reduction <maximumf>, %209, %cst_55 [2] : vector<4x16x16xf32> to vector<4x16xf32>
    %211 = vector.shape_cast %210 : vector<4x16xf32> to vector<4x16x1xf32>
    %212 = vector.broadcast %211 : vector<4x16x1xf32> to vector<4x16x16xf32>
    %213 = arith.subf %209, %212 : vector<4x16x16xf32>
    %214 = math.exp %213 : vector<4x16x16xf32>
    %cst_56 = arith.constant dense<0.000000e+00> : vector<4x16xf32>
    %215 = vector.multi_reduction <add>, %214, %cst_56 [2] : vector<4x16x16xf32> to vector<4x16xf32>
    %216 = vector.shape_cast %215 : vector<4x16xf32> to vector<4x16x1xf32>
    %217 = tpu.reciprocal %216 {approx = true} : vector<4x16x1xf32> -> vector<4x16x1xf32>
    %218 = vector.broadcast %217 : vector<4x16x1xf32> to vector<4x16x16xf32>
    %219 = arith.mulf %214, %218 : vector<4x16x16xf32>
    %220 = arith.truncf %219 : vector<4x16x16xf32> to vector<4x16x16xbf16>
    "tpu.trace_start"() <{level = 10 : i32, message = "bnm,bmd->bnd"}> : () -> ()
    %cst_57 = arith.constant dense<0.000000e+00> : vector<4x16x16xf32>
    %221 = tpu.matmul %220, %208, %cst_57 {dimension_numbers = #tpu.dot_dimension_numbers<[2], [1], [1], [2], [0, 0, 0, 1, 1, 2], [0], [0]>} : vector<4x16x16xbf16>, vector<4x16x16xbf16>, vector<4x16x16xf32> -> vector<4x16x16xf32>
    "tpu.trace_stop"() : () -> ()
    %222 = vector.shape_cast %221 : vector<4x16x16xf32> to vector<64x16xf32>
    %223 = arith.truncf %222 : vector<64x16xf32> to vector<64x16xbf16>
    %c7 = arith.constant 7 : index
    %c0_58 = arith.constant 0 : index
    %c0_59 = arith.constant 0 : index
    %224 = vector.load %arg3[%c7, %c0_58, %c0_59] : memref<8x16x128xbf16, #tpu.memory_space<vmem>>, vector<1x16x128xbf16>
    %225 = vector.shape_cast %224 : vector<1x16x128xbf16> to vector<16x128xbf16>
    %cst_60 = arith.constant dense<0.000000e+00> : vector<64x128xf32>
    %226 = tpu.matmul %223, %225, %cst_60 {dimension_numbers = #tpu.dot_dimension_numbers<[1], [0], [0], [1], [0, 0, 1, 1], [], []>} : vector<64x16xbf16>, vector<16x128xbf16>, vector<64x128xf32> -> vector<64x128xf32>
    %227 = arith.addf %199, %226 : vector<64x128xf32>
    %c0_61 = arith.constant 0 : index
    %c0_62 = arith.constant 0 : index
    %228 = vector.load %arg4[%c0_61, %c0_62] : memref<1x128xf32, #tpu.memory_space<vmem>>, vector<1x128xf32>
    %229 = vector.broadcast %228 : vector<1x128xf32> to vector<64x128xf32>
    %230 = arith.addf %227, %229 : vector<64x128xf32>
    %231 = vector.shape_cast %230 : vector<64x128xf32> to vector<4x16x128xf32>
    %c0_63 = arith.constant 0 : index
    %c0_64 = arith.constant 0 : index
    %c0_65 = arith.constant 0 : index
    %232 = vector.load %arg5[%c0_63, %c0_64, %c0_65] : memref<4x16x128xf32, #tpu.memory_space<vmem>>, vector<4x16x128xf32>
    tpu.vector_store %arg5[%c0_63, %c0_64, %c0_65], %231 {strides = array<i32>} : memref<4x16x128xf32, #tpu.memory_space<vmem>>, vector<4x16x128xf32>,
    return
  }
  func.func @transform_0(%arg0: i32) -> (i32, i32, i32) {
    %c0_i32 = arith.constant 0 : i32
    %c0_i32_0 = arith.constant 0 : i32
    %c0_i32_1 = arith.constant 0 : i32
    return %arg0, %c0_i32, %c0_i32_0 : i32, i32, i32
  }
  func.func @transform_1(%arg0: i32) -> (i32, i32) {
    %c0_i32 = arith.constant 0 : i32
    %c0_i32_0 = arith.constant 0 : i32
    %c0_i32_1 = arith.constant 0 : i32
    return %c0_i32, %c0_i32_0 : i32, i32
  }
  func.func @transform_2(%arg0: i32) -> (i32, i32, i32) {
    %c0_i32 = arith.constant 0 : i32
    %c0_i32_0 = arith.constant 0 : i32
    %c0_i32_1 = arith.constant 0 : i32
    %c0_i32_2 = arith.constant 0 : i32
    return %c0_i32, %c0_i32_0, %c0_i32_1 : i32, i32, i32
  }
  func.func @transform_3(%arg0: i32) -> (i32, i32) {
    %c0_i32 = arith.constant 0 : i32
    %c0_i32_0 = arith.constant 0 : i32
    %c0_i32_1 = arith.constant 0 : i32
    return %c0_i32, %c0_i32_0 : i32, i32
  }
  func.func @transform_4(%arg0: i32) -> (i32, i32, i32) {
    %c0_i32 = arith.constant 0 : i32
    %c0_i32_0 = arith.constant 0 : i32
    %c0_i32_1 = arith.constant 0 : i32
    return %arg0, %c0_i32, %c0_i32_0 : i32, i32, i32
  }
}

</mosaic_0001>

<llo_original>
// kernel: tpu_custom_call.1
$region0: #{tpu_custom_call.1}
  #allocation0 [shape = 'u32[]', space=smem, size = 0x4, offset = 0x4, fixed_abs, tag = 'smem constant byte address 0x4 - core index']
  #allocation1 [shape = 'u32[144,128]{1,0:T(1,128)}', space=vmem, size = 0x12000, scoped, tag = 'internal scratch']
  %s0 = inlined_call_operand.hbm [shape: f32[8,16,128], index: 0, kind: input, shape index: {}]
  %s1 = inlined_call_operand.hbm [shape: bf16[128,384], index: 1, kind: input, shape index: {}]
  %s2 = inlined_call_operand.hbm [shape: bf16[8,16,128], index: 2, kind: input, shape index: {}]
  %s3 = inlined_call_operand.vmem [shape: f32[1,128], index: 3, kind: input, shape index: {}]
  %s4 = inlined_call_operand.hbm [shape: f32[8,16,128], index: 4, kind: output, shape index: {}]
  %s5 = sld [smem:[#allocation0]]
  $region61: #{tpu_custom_call.1} parent=0
    _
  %s7 = ssub.s32 1, %s5
  %s8 = scalar_select 0, %s7, %s5
  $region1: #{tpu_custom_call.1} parent=0
    #allocation2 [shape = 'u8[65536]{0}', space=vmem, size = 0x10000, scoped, tag = 'input window, operand 0']
    #allocation3 [shape = 's32[2]{0}', space=sflag, size = 0x8, scoped, tag = 'scoped memory for tpu_custom_call.1']
    #allocation4 [shape = 's32[2]{0}', space=sflag, size = 0x8, scoped, tag = 'scoped memory for tpu_custom_call.1']
    #allocation5 [shape = 'u8[98304]{0}', space=vmem, size = 0x18000, scoped, tag = 'input window, operand 1, single buffered']
    #allocation6 [shape = 's32[1]{0}', space=sflag, size = 0x4, scoped, tag = 'scoped memory for tpu_custom_call.1']
    #allocation7 [shape = 'u8[32768]{0}', space=vmem, size = 0x8000, scoped, tag = 'input window, operand 2, single buffered']
    #allocation8 [shape = 'u8[65536]{0}', space=vmem, size = 0x10000, scoped, tag = 'output window, operand 0']
    %9 = vsyncpa [#allocation3], 0
    %s10 = scalar_lea.sflag [#allocation3], 1
    %11 = vsyncpa %s10, 0
    %12 = vsyncpa [#allocation6], 0
    %13 = vsyncpa [#allocation4], 0
    %s14 = scalar_lea.sflag [#allocation4], 1
    %15 = vsyncpa %s14, 0
    loop: start=0, step=1, limit=4
    $region2: #{tpu_custom_call.1} parent=1 // loop_pre_header
      _
    $region3: #{tpu_custom_call.1} parent=1 // loop_header
      %s17 = sphi 0, %s21
      %p18 = scmp.ge.s32.totalorder %s17, 4
      %s27 = sphi 0, %s29
      %s30 = sphi 0, %s27
      %s31 = sphi 0, %s30
      %s47 = sphi 0, %s31
      %s51 = sphi 0, %s51
      %s53 = sphi 0, %s51
      %s54 = sphi 0, %s53
      %s68 = sphi 0, %s54
      %s72 = sphi 0, %s72
      %s74 = sphi 0, %s72
      %s75 = sphi 0, %s74
      %s89 = sphi 0, %s75
      %s93 = sphi 0, %s93
      %s95 = sphi 0, %s93
      %s96 = sphi 0, %s95
      %s110 = sphi 0, %s96
      %s116 = sphi 0, %s118
      %s119 = sphi 0, %s116
      %s120 = sphi 0, %s119
      %s136 = sphi 0, %s120
    $region4: #{tpu_custom_call.1} parent=1 // loop_header_branch
      %20 = sbr.rel (%p18) target = $region8
    $region5: #{tpu_custom_call.1} parent=1 // loop_body
      %s22 = ssub.s32 %s17, 1
      %s23 = ssub.s32 %s17, 2
      %s24 = sadd.s32 %s17, 1
      %s25 = ssub.s32 %s17, %s24
      %p26 = scmp.eq.s32.totalorder %s25, 0
      %s28 = sadd.s32 %s27, 1
      %s29 = scalar_select %p26, %s27, %s28
      %p32 = pneg %p26
      %p33 = scmp.eq.s32.totalorder %s17, 1
      %p34 = por %p32, %p33
      %p35 = scmp.ne.s32.totalorder %s27, %s30
      %p36 = scmp.eq.s32.totalorder %s17, 0
      %p37 = por %p35, %p36
      %p38 = scmp.ne.s32.totalorder %s27, %s30
      %p39 = scmp.eq.s32.totalorder %s22, 1
      %p40 = por %p38, %p39
      %p41 = scmp.ne.s32.totalorder %s30, %s31
      %p42 = scmp.eq.s32.totalorder %s22, 0
      %p43 = por %p41, %p42
      %p44 = scmp.ne.s32.totalorder %s30, %s31
      %p45 = scmp.eq.s32.totalorder %s23, 1
      %p46 = por %p44, %p45
      %p48 = scmp.ne.s32.totalorder %s31, %s47
      %p49 = scmp.eq.s32.totalorder %s23, 0
      %p50 = por %p48, %p49
      %s52 = sadd.s32 %s51, 1
      %p55 = scmp.eq.s32.totalorder %s17, 1
      %p56 = scmp.ne.s32.totalorder %s51, %s53
      %p57 = scmp.eq.s32.totalorder %s17, 0
      %p58 = por %p56, %p57
      %p59 = scmp.ne.s32.totalorder %s51, %s53
      %p60 = scmp.eq.s32.totalorder %s22, 1
      %p61 = por %p59, %p60
      %p62 = scmp.ne.s32.totalorder %s53, %s54
      %p63 = scmp.eq.s32.totalorder %s22, 0
      %p64 = por %p62, %p63
      %p65 = scmp.ne.s32.totalorder %s53, %s54
      %p66 = scmp.eq.s32.totalorder %s23, 1
      %p67 = por %p65, %p66
      %p69 = scmp.ne.s32.totalorder %s54, %s68
      %p70 = scmp.eq.s32.totalorder %s23, 0
      %p71 = por %p69, %p70
      %s73 = sadd.s32 %s72, 1
      %p76 = scmp.eq.s32.totalorder %s17, 1
      %p77 = scmp.ne.s32.totalorder %s72, %s74
      %p78 = scmp.eq.s32.totalorder %s17, 0
      %p79 = por %p77, %p78
      %p80 = scmp.ne.s32.totalorder %s72, %s74
      %p81 = scmp.eq.s32.totalorder %s22, 1
      %p82 = por %p80, %p81
      %p83 = scmp.ne.s32.totalorder %s74, %s75
      %p84 = scmp.eq.s32.totalorder %s22, 0
      %p85 = por %p83, %p84
      %p86 = scmp.ne.s32.totalorder %s74, %s75
      %p87 = scmp.eq.s32.totalorder %s23, 1
      %p88 = por %p86, %p87
      %p90 = scmp.ne.s32.totalorder %s75, %s89
      %p91 = scmp.eq.s32.totalorder %s23, 0
      %p92 = por %p90, %p91
      %s94 = sadd.s32 %s93, 1
      %p97 = scmp.eq.s32.totalorder %s17, 1
      %p98 = scmp.ne.s32.totalorder %s93, %s95
      %p99 = scmp.eq.s32.totalorder %s17, 0
      %p100 = por %p98, %p99
      %p101 = scmp.ne.s32.totalorder %s93, %s95
      %p102 = scmp.eq.s32.totalorder %s22, 1
      %p103 = por %p101, %p102
      %p104 = scmp.ne.s32.totalorder %s95, %s96
      %p105 = scmp.eq.s32.totalorder %s22, 0
      %p106 = por %p104, %p105
      %p107 = scmp.ne.s32.totalorder %s95, %s96
      %p108 = scmp.eq.s32.totalorder %s23, 1
      %p109 = por %p107, %p108
      %p111 = scmp.ne.s32.totalorder %s96, %s110
      %p112 = scmp.eq.s32.totalorder %s23, 0
      %p113 = por %p111, %p112
      %s114 = ssub.s32 %s17, %s24
      %p115 = scmp.eq.s32.totalorder %s114, 0
      %s117 = sadd.s32 %s116, 1
      %s118 = scalar_select %p115, %s116, %s117
      %p121 = pneg %p115
      %p122 = scmp.eq.s32.totalorder %s17, 1
      %p123 = por %p121, %p122
      %p124 = scmp.ne.s32.totalorder %s116, %s119
      %p125 = scmp.eq.s32.totalorder %s17, 0
      %p126 = por %p124, %p125
      %p127 = scmp.ne.s32.totalorder %s116, %s119
      %p128 = scmp.eq.s32.totalorder %s22, 1
      %p129 = por %p127, %p128
      %p130 = scmp.ne.s32.totalorder %s119, %s120
      %p131 = scmp.eq.s32.totalorder %s22, 0
      %p132 = por %p130, %p131
      %p133 = scmp.ne.s32.totalorder %s119, %s120
      %p134 = scmp.eq.s32.totalorder %s23, 1
      %p135 = por %p133, %p134
      %p137 = scmp.ne.s32.totalorder %s120, %s136
      %p138 = scmp.eq.s32.totalorder %s23, 0
      %p139 = por %p137, %p138
      %p140 = scmp.le.s32.totalorder 1, %s17
      %p141 = scmp.lt.s32.totalorder %s17, 3
      %p142 = pnand %p140, %p141
      %p143 = pneg %p142
      // Predicated region
      $region9: #{tpu_custom_call.1} parent=5 // pred_check
        _
      $region10: #{tpu_custom_call.1} parent=5 // pred_check_branch
        %145 = sbr.rel (%p142) target = $region12
      $region11: #{tpu_custom_call.1} parent=5 // pred_region
        %s146 = ssub.s32 %s17, 1
        // Predicated region
        $region13: #{tpu_custom_call.1} parent=11 // pred_check
          %p147 = pneg %p64
        $region14: #{tpu_custom_call.1} parent=11 // pred_check_branch
          %149 = sbr.rel (%p147) target = $region16
        $region15: #{tpu_custom_call.1} parent=11 // pred_region
          %s151 = ssub.s32 3072, 3072
          %152 = vsyncadd [#allocation6], %s151
          %s153 = sshll.u32 [#allocation5], 4
          %s154 = int_to_ptr.vmem [resolvable:$true] %s153
          %159 = dma.hbm_to_vmem [thread:$0]  %s1, 3072, %s154, [#allocation6], 192, 192, 12
        $region16: #{tpu_custom_call.1} parent=11 // pred_fallthru
          _
        // Predicated region
        $region17: #{tpu_custom_call.1} parent=11 // pred_check
          %p160 = pneg %p85
        $region18: #{tpu_custom_call.1} parent=11 // pred_check_branch
          %162 = sbr.rel (%p160) target = $region20
        $region19: #{tpu_custom_call.1} parent=11 // pred_region
          %s164 = ssub.s32 1024, 1024
          %165 = vsyncadd [#allocation6], %s164
          %s166 = sshll.u32 [#allocation7], 4
          %s167 = int_to_ptr.vmem [resolvable:$true] %s166
          %172 = dma.hbm_to_vmem [thread:$0]  %s2, 1024, %s167, [#allocation6], 64, 64, 4
        $region20: #{tpu_custom_call.1} parent=11 // pred_fallthru
          _
        // Predicated region
        $region21: #{tpu_custom_call.1} parent=11 // pred_check
          %p173 = pneg %p106
        $region22: #{tpu_custom_call.1} parent=11 // pred_check_branch
          %175 = sbr.rel (%p173) target = $region24
        $region23: #{tpu_custom_call.1} parent=11 // pred_region
          _
        $region24: #{tpu_custom_call.1} parent=11 // pred_fallthru
          _
      $region12: #{tpu_custom_call.1} parent=5 // pred_fallthru
        _
      %p176 = scmp.lt.s32.totalorder %s17, 2
      // Predicated region
      $region25: #{tpu_custom_call.1} parent=5 // pred_check
        %p177 = pneg %p176
      $region26: #{tpu_custom_call.1} parent=5 // pred_check_branch
        %179 = sbr.rel (%p177) target = $region28
      $region27: #{tpu_custom_call.1} parent=5 // pred_region
        // Predicated region
        $region29: #{tpu_custom_call.1} parent=27 // pred_check
          %p180 = pneg %p37
        $region30: #{tpu_custom_call.1} parent=27 // pred_check_branch
          %182 = sbr.rel (%p180) target = $region32
        $region31: #{tpu_custom_call.1} parent=27 // pred_region
          %s183 = sand.u32 %s27, 1
          %s184 = scalar_lea.sflag [#allocation3], %s183
          %s185 = sand.u32 %s27, 1
          %s186 = smul.addr %s185, 64
          %s187 = scalar_lea.vmem [#allocation2], %s186
          %s188 = smul.u32 4, %s17
          %s190 = ssub.s32 1024, 1024
          %191 = vsyncadd %s184, %s190
          %s192 = smul.addr %s188, 2
          %s193 = smul.addr %s192, 128
          %s194 = scalar_lea.hbm %s0, %s193
          %s195 = sshll.u32 %s187, 4
          %s196 = int_to_ptr.vmem [resolvable:$true] %s195
          %201 = dma.hbm_to_vmem [thread:$0]  %s194, 1024, %s196, %s184, 128, 128, 8
        $region32: #{tpu_custom_call.1} parent=27 // pred_fallthru
          _
      $region28: #{tpu_custom_call.1} parent=5 // pred_fallthru
        _
      %p202 = scmp.le.s32.totalorder 1, %s17
      %p203 = scmp.lt.s32.totalorder %s17, 3
      %p204 = pnand %p202, %p203
      %p205 = pneg %p204
      // Predicated region
      $region33: #{tpu_custom_call.1} parent=5 // pred_check
        _
      $region34: #{tpu_custom_call.1} parent=5 // pred_check_branch
        %207 = sbr.rel (%p204) target = $region36
      $region35: #{tpu_custom_call.1} parent=5 // pred_region
        %s208 = ssub.s32 %s17, 1
        %s209 = sand.u32 %s30, 1
        %s210 = scalar_lea.sflag [#allocation3], %s209
        %s211 = sand.u32 %s30, 1
        %s212 = smul.addr %s211, 64
        %s213 = scalar_lea.vmem [#allocation2], %s212
        // Predicated region
        $region37: #{tpu_custom_call.1} parent=35 // pred_check
          %p214 = pneg %p43
        $region38: #{tpu_custom_call.1} parent=35 // pred_check_branch
          %216 = sbr.rel (%p214) target = $region40
        $region39: #{tpu_custom_call.1} parent=35 // pred_region
          %217 = dma.done %s210, 1024
        $region40: #{tpu_custom_call.1} parent=35 // pred_fallthru
          _
        // Predicated region
        $region41: #{tpu_custom_call.1} parent=35 // pred_check
          %p218 = pneg %p64
        $region42: #{tpu_custom_call.1} parent=35 // pred_check_branch
          %220 = sbr.rel (%p218) target = $region44
        $region43: #{tpu_custom_call.1} parent=35 // pred_region
          %221 = dma.done [#allocation6], 3072
        $region44: #{tpu_custom_call.1} parent=35 // pred_fallthru
          _
        // Predicated region
        $region45: #{tpu_custom_call.1} parent=35 // pred_check
          %p222 = pneg %p85
        $region46: #{tpu_custom_call.1} parent=35 // pred_check_branch
          %224 = sbr.rel (%p222) target = $region48
        $region47: #{tpu_custom_call.1} parent=35 // pred_region
          %225 = dma.done [#allocation6], 1024
        $region48: #{tpu_custom_call.1} parent=35 // pred_fallthru
          _
        %s226 = sand.u32 %s30, 1
        %s227 = scalar_lea.sflag [#allocation3], %s226
        %s228 = sand.u32 %s30, 1
        %s229 = smul.addr %s228, 64
        %s230 = scalar_lea.vmem [#allocation2], %s229
        %p231 = pneg %p43
        %p232 = pneg %p40
        %p233 = pneg %p64
        %p234 = pneg %p61
        %p235 = pneg %p85
        %p236 = pneg %p82
        %p237 = pneg %p106
        %p238 = pneg %p103
        %p239 = pneg %p132
        %p240 = pneg %p129
        %s241 = sand.u32 %s119, 1
        %s242 = scalar_lea.sflag [#allocation4], %s241
        %s243 = sand.u32 %s119, 1
        %s244 = smul.addr %s243, 64
        %s245 = scalar_lea.vmem [#allocation8], %s244
        %s246 = smul.u32 4, %s22
        %s247 = smul.u32 4, %s22
        %v249 = vld [vmem:[%s213] sm:$0xff]
        %v250 = vld [vmem:[%s213 + $0x8] sm:$0xff]
        %v251 = vld [vmem:[%s213 + $0x10] sm:$0xff]
        %v252 = vld [vmem:[%s213 + $0x18] sm:$0xff]
        %v253 = vld [vmem:[%s213 + $0x20] sm:$0xff]
        %v254 = vld [vmem:[%s213 + $0x28] sm:$0xff]
        %v255 = vld [vmem:[%s213 + $0x30] sm:$0xff]
        %v256 = vld [vmem:[%s213 + $0x38] sm:$0xff]
        %v257 = vpack.c.bf16 %v250, %v249
        %v258 = vpack.c.bf16 %v252, %v251
        %v259 = vpack.c.bf16 %v254, %v253
        %v260 = vpack.c.bf16 %v256, %v255
        %v261 = vld [vmem:[#allocation5] sm:$0xff]
        %v262 = vld [vmem:[#allocation5 + $0x8] sm:$0xf]
        %v263 = vld [vmem:[#allocation5 + $0xc] sm:$0xff]
        %v264 = vld [vmem:[#allocation5 + $0x14] sm:$0xf]
        %v265 = vld [vmem:[#allocation5 + $0x18] sm:$0xff]
        %v266 = vld [vmem:[#allocation5 + $0x20] sm:$0xf]
        %v267 = vld [vmem:[#allocation5 + $0x24] sm:$0xff]
        %v268 = vld [vmem:[#allocation5 + $0x2c] sm:$0xf]
        %v269 = vld [vmem:[#allocation5 + $0x30] sm:$0xff]
        %v270 = vld [vmem:[#allocation5 + $0x38] sm:$0xf]
        %v271 = vld [vmem:[#allocation5 + $0x3c] sm:$0xff]
        %v272 = vld [vmem:[#allocation5 + $0x44] sm:$0xf]
        %v273 = vld [vmem:[#allocation5 + $0x48] sm:$0xff]
        %v274 = vld [vmem:[#allocation5 + $0x50] sm:$0xf]
        %v275 = vld [vmem:[#allocation5 + $0x54] sm:$0xff]
        %v276 = vld [vmem:[#allocation5 + $0x5c] sm:$0xf]
        %v277 = vld [vmem:[#allocation5 + $0x60] sm:$0xff]
        %v278 = vld [vmem:[#allocation5 + $0x68] sm:$0xf]
        %v279 = vld [vmem:[#allocation5 + $0x6c] sm:$0xff]
        %v280 = vld [vmem:[#allocation5 + $0x74] sm:$0xf]
        %v281 = vld [vmem:[#allocation5 + $0x78] sm:$0xff]
        %v282 = vld [vmem:[#allocation5 + $0x80] sm:$0xf]
        %v283 = vld [vmem:[#allocation5 + $0x84] sm:$0xff]
        %v284 = vld [vmem:[#allocation5 + $0x8c] sm:$0xf]
        %v285 = vld [vmem:[#allocation5 + $0x90] sm:$0xff]
        %v286 = vld [vmem:[#allocation5 + $0x98] sm:$0xf]
        %v287 = vld [vmem:[#allocation5 + $0x9c] sm:$0xff]
        %v288 = vld [vmem:[#allocation5 + $0xa4] sm:$0xf]
        %v289 = vld [vmem:[#allocation5 + $0xa8] sm:$0xff]
        %v290 = vld [vmem:[#allocation5 + $0xb0] sm:$0xf]
        %v291 = vld [vmem:[#allocation5 + $0xb4] sm:$0xff]
        %v292 = vld [vmem:[#allocation5 + $0xbc] sm:$0xf]
        %v325 = vunpack.c.l.b16 %v261
        %v326 = vunpack.c.h.b16 %v261
        %v327 = vunpack.c.l.b16 %v262
        %v328 = vunpack.c.l.b16 %v263
        %v329 = vunpack.c.h.b16 %v263
        %v330 = vunpack.c.l.b16 %v264
        %v331 = vunpack.c.l.b16 %v265
        %v332 = vunpack.c.h.b16 %v265
        %v333 = vunpack.c.l.b16 %v266
        %v334 = vunpack.c.l.b16 %v267
        %v335 = vunpack.c.h.b16 %v267
        %v336 = vunpack.c.l.b16 %v268
        %v337 = vunpack.c.l.b16 %v269
        %v338 = vunpack.c.h.b16 %v269
        %v339 = vunpack.c.l.b16 %v270
        %v340 = vunpack.c.l.b16 %v271
        %v341 = vunpack.c.h.b16 %v271
        %v342 = vunpack.c.l.b16 %v272
        %v343 = vunpack.c.l.b16 %v273
        %v344 = vunpack.c.h.b16 %v273
        %v345 = vunpack.c.l.b16 %v274
        %v346 = vunpack.c.l.b16 %v275
        %v347 = vunpack.c.h.b16 %v275
        %v348 = vunpack.c.l.b16 %v276
        %v349 = vunpack.c.l.b16 %v277
        %v350 = vunpack.c.h.b16 %v277
        %v351 = vunpack.c.l.b16 %v278
        %v352 = vunpack.c.l.b16 %v279
        %v353 = vunpack.c.h.b16 %v279
        %v354 = vunpack.c.l.b16 %v280
        %v355 = vunpack.c.l.b16 %v281
        %v356 = vunpack.c.h.b16 %v281
        %v357 = vunpack.c.l.b16 %v282
        %v358 = vunpack.c.l.b16 %v283
        %v359 = vunpack.c.h.b16 %v283
        %v360 = vunpack.c.l.b16 %v284
        %v361 = vunpack.c.l.b16 %v285
        %v362 = vunpack.c.h.b16 %v285
        %v363 = vunpack.c.l.b16 %v286
        %v364 = vunpack.c.l.b16 %v287
        %v365 = vunpack.c.h.b16 %v287
        %v366 = vunpack.c.l.b16 %v288
        %v367 = vunpack.c.l.b16 %v289
        %v368 = vunpack.c.h.b16 %v289
        %v369 = vunpack.c.l.b16 %v290
        %v370 = vunpack.c.l.b16 %v291
        %v371 = vunpack.c.h.b16 %v291
        %v372 = vunpack.c.l.b16 %v292
        %v373 = vpack.c.b16 %v328, %v325
        %v374 = vpack.c.b16 %v329, %v326
        %v375 = vpack.c.b16 %v330, %v327
        %v376 = vpack.c.b16 %v334, %v331
        %v377 = vpack.c.b16 %v335, %v332
        %v378 = vpack.c.b16 %v336, %v333
        %v379 = vpack.c.b16 %v340, %v337
        %v380 = vpack.c.b16 %v341, %v338
        %v381 = vpack.c.b16 %v342, %v339
        %v382 = vpack.c.b16 %v346, %v343
        %v383 = vpack.c.b16 %v347, %v344
        %v384 = vpack.c.b16 %v348, %v345
        %v385 = vpack.c.b16 %v352, %v349
        %v386 = vpack.c.b16 %v353, %v350
        %v387 = vpack.c.b16 %v354, %v351
        %v388 = vpack.c.b16 %v358, %v355
        %v389 = vpack.c.b16 %v359, %v356
        %v390 = vpack.c.b16 %v360, %v357
        %v391 = vpack.c.b16 %v364, %v361
        %v392 = vpack.c.b16 %v365, %v362
        %v393 = vpack.c.b16 %v366, %v363
        %v394 = vpack.c.b16 %v370, %v367
        %v395 = vpack.c.b16 %v371, %v368
        %v396 = vpack.c.b16 %v372, %v369
        %421 = vmatprep.subr.bf16.mxu0 %v374
        %422 = vmatpush1.bf16.msra.mxu0 %v373
        %423 = vmatprep.subr.bf16.mxu0 %v377
        %424 = vmatpush1.bf16.msra.mxu0 %v376
        %425 = vmatprep.subr.bf16.mxu0 %v380
        %426 = vmatpush1.bf16.msra.mxu0 %v379
        %427 = vmatprep.subr.bf16.mxu0 %v383
        %428 = vmatpush1.bf16.msra.mxu0 %v382
        %429 = vmatprep.subr.bf16.mxu0 %v386
        %430 = vmatpush1.bf16.msra.mxu0 %v385
        %431 = vmatprep.subr.bf16.mxu0 %v389
        %432 = vmatpush1.bf16.msra.mxu0 %v388
        %433 = vmatprep.subr.bf16.mxu0 %v392
        %434 = vmatpush1.bf16.msra.mxu0 %v391
        %435 = vmatprep.subr.bf16.mxu0 %v395
        %436 = vmatpush1.bf16.msra.mxu0 %v394
        %437 = vmatprep.subr.bf16.mxu0 0
        %438 = vmatpush1.bf16.msra.mxu0 0
        %439 = vmatprep.subr.bf16.mxu0 0
        %440 = vmatpush1.bf16.msra.mxu0 0
        %441 = vmatprep.subr.bf16.mxu0 0
        %442 = vmatpush1.bf16.msra.mxu0 0
        %443 = vmatprep.subr.bf16.mxu0 0
        %444 = vmatpush1.bf16.msra.mxu0 0
        %445 = vmatprep.subr.bf16.mxu0 0
        %446 = vmatpush1.bf16.msra.mxu0 0
        %447 = vmatprep.subr.bf16.mxu0 0
        %448 = vmatpush1.bf16.msra.mxu0 0
        %449 = vmatprep.subr.bf16.mxu0 0
        %450 = vmatpush1.bf16.msra.mxu0 0
        %451 = vmatprep.subr.bf16.mxu0 0
        %452 = vmatpush1.bf16.msra.mxu0 0
        %453 = vmatprep.mubr.bf16.mxu0 0
        %454 = vmatmul.mubr.bf16.gmra.mrb[0].mxu0 %v257
        %v455 = vpop.f32.mrb[0].mxu0
        %v456 = vadd.f32 0.0, %v455
        %v457 = vpop.f32.mrb[0].mxu0
        %v458 = vadd.f32 0.0, %v457
        %v459 = vpop.f32.mrb[0].mxu0
        %v460 = vadd.f32 0.0, %v459
        %v461 = vpop.f32.mrb[0].mxu0
        %v462 = vadd.f32 0.0, %v461
        %463 = vmatprep.mubr.bf16.mxu0 0
        %464 = vmatmul.mubr.bf16.gmra.mrb[0].mxu0 %v258
        %v465 = vpop.f32.mrb[0].mxu0
        %v466 = vadd.f32 0.0, %v465
        %v467 = vpop.f32.mrb[0].mxu0
        %v468 = vadd.f32 0.0, %v467
        %v469 = vpop.f32.mrb[0].mxu0
        %v470 = vadd.f32 0.0, %v469
        %v471 = vpop.f32.mrb[0].mxu0
        %v472 = vadd.f32 0.0, %v471
        %473 = vmatprep.mubr.bf16.mxu0 0
        %474 = vmatmul.mubr.bf16.gmra.mrb[0].mxu0 %v259
        %v475 = vpop.f32.mrb[0].mxu0
        %v476 = vadd.f32 0.0, %v475
        %v477 = vpop.f32.mrb[0].mxu0
        %v478 = vadd.f32 0.0, %v477
        %v479 = vpop.f32.mrb[0].mxu0
        %v480 = vadd.f32 0.0, %v479
        %v481 = vpop.f32.mrb[0].mxu0
        %v482 = vadd.f32 0.0, %v481
        %483 = vmatprep.mubr.bf16.mxu0 0
        %484 = vmatmul.mubr.bf16.gmra.mrb[0].mxu0 %v260
        %v485 = vpop.f32.mrb[0].mxu0
        %v486 = vadd.f32 0.0, %v485
        %v487 = vpop.f32.mrb[0].mxu0
        %v488 = vadd.f32 0.0, %v487
        %v489 = vpop.f32.mrb[0].mxu0
        %v490 = vadd.f32 0.0, %v489
        %v491 = vpop.f32.mrb[0].mxu0
        %v492 = vadd.f32 0.0, %v491
        %493 = vdwg.mxu0
        %494 = vmatprep.subr.bf16.mxu0 0
        %495 = vmatpush1.bf16.msra.mxu0 %v375
        %496 = vmatprep.subr.bf16.mxu0 0
        %497 = vmatpush1.bf16.msra.mxu0 %v378
        %498 = vmatprep.subr.bf16.mxu0 0
        %499 = vmatpush1.bf16.msra.mxu0 %v381
        %500 = vmatprep.subr.bf16.mxu0 0
        %501 = vmatpush1.bf16.msra.mxu0 %v384
        %502 = vmatprep.subr.bf16.mxu0 0
        %503 = vmatpush1.bf16.msra.mxu0 %v387
        %504 = vmatprep.subr.bf16.mxu0 0
        %505 = vmatpush1.bf16.msra.mxu0 %v390
        %506 = vmatprep.subr.bf16.mxu0 0
        %507 = vmatpush1.bf16.msra.mxu0 %v393
        %508 = vmatprep.subr.bf16.mxu0 0
        %509 = vmatpush1.bf16.msra.mxu0 %v396
        %510 = vmatprep.subr.bf16.mxu0 0
        %511 = vmatpush1.bf16.msra.mxu0 0
        %512 = vmatprep.subr.bf16.mxu0 0
        %513 = vmatpush1.bf16.msra.mxu0 0
        %514 = vmatprep.subr.bf16.mxu0 0
        %515 = vmatpush1.bf16.msra.mxu0 0
        %516 = vmatprep.subr.bf16.mxu0 0
        %517 = vmatpush1.bf16.msra.mxu0 0
        %518 = vmatprep.subr.bf16.mxu0 0
        %519 = vmatpush1.bf16.msra.mxu0 0
        %520 = vmatprep.subr.bf16.mxu0 0
        %521 = vmatpush1.bf16.msra.mxu0 0
        %522 = vmatprep.subr.bf16.mxu0 0
        %523 = vmatpush1.bf16.msra.mxu0 0
        %524 = vmatprep.subr.bf16.mxu0 0
        %525 = vmatpush1.bf16.msra.mxu0 0
        %526 = vmatprep.mubr.bf16.mxu0 0
        %527 = vmatmul.mubr.bf16.gmra.mrb[0].mxu0 %v257
        %v528 = vpop.f32.mrb[0].mxu0
        %v529 = vadd.f32 0.0, %v528
        %v530 = vpop.f32.mrb[0].mxu0
        %v531 = vpop.f32.mrb[0].mxu0
        %v532 = vadd.f32 0.0, %v531
        %v533 = vpop.f32.mrb[0].mxu0
        %534 = vmatprep.mubr.bf16.mxu0 0
        %535 = vmatmul.mubr.bf16.gmra.mrb[0].mxu0 %v258
        %v536 = vpop.f32.mrb[0].mxu0
        %v537 = vadd.f32 0.0, %v536
        %v538 = vpop.f32.mrb[0].mxu0
        %v539 = vpop.f32.mrb[0].mxu0
        %v540 = vadd.f32 0.0, %v539
        %v541 = vpop.f32.mrb[0].mxu0
        %542 = vmatprep.mubr.bf16.mxu0 0
        %543 = vmatmul.mubr.bf16.gmra.mrb[0].mxu0 %v259
        %v544 = vpop.f32.mrb[0].mxu0
        %v545 = vadd.f32 0.0, %v544
        %v546 = vpop.f32.mrb[0].mxu0
        %v547 = vpop.f32.mrb[0].mxu0
        %v548 = vadd.f32 0.0, %v547
        %v549 = vpop.f32.mrb[0].mxu0
        %550 = vmatprep.mubr.bf16.mxu0 0
        %551 = vmatmul.mubr.bf16.gmra.mrb[0].mxu0 %v260
        %v552 = vpop.f32.mrb[0].mxu0
        %v553 = vadd.f32 0.0, %v552
        %v554 = vpop.f32.mrb[0].mxu0
        %v555 = vpop.f32.mrb[0].mxu0
        %v556 = vadd.f32 0.0, %v555
        %v557 = vpop.f32.mrb[0].mxu0
        %558 = vdwg.mxu0
        %v559 = vpack.c.bf16 %v460, %v456
        %v560 = vpack.c.bf16 %v470, %v466
        %v561 = vpack.c.bf16 %v480, %v476
        %v562 = vpack.c.bf16 %v490, %v486
        %v563 = vpack.c.bf16 %v462, %v458
        %v564 = vpack.c.bf16 %v472, %v468
        %v565 = vpack.c.bf16 %v482, %v478
        %v566 = vpack.c.bf16 %v492, %v488
        %v567 = vpack.c.bf16 %v532, %v529
        %v568 = vpack.c.bf16 %v540, %v537
        %v569 = vpack.c.bf16 %v548, %v545
        %v570 = vpack.c.bf16 %v556, %v553
        %vm571 = vcmask 130048
        %v573 = vsel %vm571, %v559, 0
        %v576 = vsel %vm571, %v563, 0
        %578 = vmatprep.subr.bf16.mxu0 0
        %579 = vmatpush1.bf16.xpose.msra.mxu0 %v576
        %580 = vmatprep.subr.bf16.mxu0 0
        %581 = vmatpush1.bf16.xpose.msra.mxu0 0
        %582 = vmatprep.subr.bf16.mxu0 0
        %583 = vmatpush1.bf16.xpose.msra.mxu0 0
        %584 = vmatprep.subr.bf16.mxu0 0
        %585 = vmatpush1.bf16.xpose.msra.mxu0 0
        %586 = vmatprep.subr.bf16.mxu0 0
        %587 = vmatpush1.bf16.xpose.msra.mxu0 0
        %588 = vmatprep.subr.bf16.mxu0 0
        %589 = vmatpush1.bf16.xpose.msra.mxu0 0
        %590 = vmatprep.subr.bf16.mxu0 0
        %591 = vmatpush1.bf16.xpose.msra.mxu0 0
        %592 = vmatprep.subr.bf16.mxu0 0
        %593 = vmatpush1.bf16.xpose.msra.mxu0 0
        %594 = vmatprep.subr.bf16.mxu0 0
        %595 = vmatpush1.bf16.xpose.msra.mxu0 0
        %596 = vmatprep.subr.bf16.mxu0 0
        %597 = vmatpush1.bf16.xpose.msra.mxu0 0
        %598 = vmatprep.subr.bf16.mxu0 0
        %599 = vmatpush1.bf16.xpose.msra.mxu0 0
        %600 = vmatprep.subr.bf16.mxu0 0
        %601 = vmatpush1.bf16.xpose.msra.mxu0 0
        %602 = vmatprep.subr.bf16.mxu0 0
        %603 = vmatpush1.bf16.xpose.msra.mxu0 0
        %604 = vmatprep.subr.bf16.mxu0 0
        %605 = vmatpush1.bf16.xpose.msra.mxu0 0
        %606 = vmatprep.subr.bf16.mxu0 0
        %607 = vmatpush1.bf16.xpose.msra.mxu0 0
        %608 = vmatprep.subr.bf16.mxu0 0
        %609 = vmatpush1.bf16.xpose.msra.mxu0 0
        %610 = vmatprep.mubr.bf16.mxu0 0
        %611 = vmatmul.mubr.bf16.gmra.mrb[0].mxu0 %v573
        %v612 = vpop.f32.mrb[0].mxu0
        %v613 = vadd.f32 0.0, %v612
        %v614 = vpop.f32.mrb[0].mxu0
        %v615 = vpop.f32.mrb[0].mxu0
        %v616 = vadd.f32 0.0, %v615
        %v617 = vpop.f32.mrb[0].mxu0
        %618 = vdwg.mxu0
        %v620 = vsel %vm571, %v560, 0
        %v623 = vsel %vm571, %v564, 0
        %625 = vmatprep.subr.bf16.mxu0 0
        %626 = vmatpush1.bf16.xpose.msra.mxu0 %v623
        %627 = vmatprep.subr.bf16.mxu0 0
        %628 = vmatpush1.bf16.xpose.msra.mxu0 0
        %629 = vmatprep.subr.bf16.mxu0 0
        %630 = vmatpush1.bf16.xpose.msra.mxu0 0
        %631 = vmatprep.subr.bf16.mxu0 0
        %632 = vmatpush1.bf16.xpose.msra.mxu0 0
        %633 = vmatprep.subr.bf16.mxu0 0
        %634 = vmatpush1.bf16.xpose.msra.mxu0 0
        %635 = vmatprep.subr.bf16.mxu0 0
        %636 = vmatpush1.bf16.xpose.msra.mxu0 0
        %637 = vmatprep.subr.bf16.mxu0 0
        %638 = vmatpush1.bf16.xpose.msra.mxu0 0
        %639 = vmatprep.subr.bf16.mxu0 0
        %640 = vmatpush1.bf16.xpose.msra.mxu0 0
        %641 = vmatprep.subr.bf16.mxu0 0
        %642 = vmatpush1.bf16.xpose.msra.mxu0 0
        %643 = vmatprep.subr.bf16.mxu0 0
        %644 = vmatpush1.bf16.xpose.msra.mxu0 0
        %645 = vmatprep.subr.bf16.mxu0 0
        %646 = vmatpush1.bf16.xpose.msra.mxu0 0
        %647 = vmatprep.subr.bf16.mxu0 0
        %648 = vmatpush1.bf16.xpose.msra.mxu0 0
        %649 = vmatprep.subr.bf16.mxu0 0
        %650 = vmatpush1.bf16.xpose.msra.mxu0 0
        %651 = vmatprep.subr.bf16.mxu0 0
        %652 = vmatpush1.bf16.xpose.msra.mxu0 0
        %653 = vmatprep.subr.bf16.mxu0 0
        %654 = vmatpush1.bf16.xpose.msra.mxu0 0
        %655 = vmatprep.subr.bf16.mxu0 0
        %656 = vmatpush1.bf16.xpose.msra.mxu0 0
        %657 = vmatprep.mubr.bf16.mxu0 0
        %658 = vmatmul.mubr.bf16.gmra.mrb[0].mxu0 %v620
        %v659 = vpop.f32.mrb[0].mxu0
        %v660 = vadd.f32 0.0, %v659
        %v661 = vpop.f32.mrb[0].mxu0
        %v662 = vpop.f32.mrb[0].mxu0
        %v663 = vadd.f32 0.0, %v662
        %v664 = vpop.f32.mrb[0].mxu0
        %665 = vdwg.mxu0
        %v667 = vsel %vm571, %v561, 0
        %v670 = vsel %vm571, %v565, 0
        %672 = vmatprep.subr.bf16.mxu0 0
        %673 = vmatpush1.bf16.xpose.msra.mxu0 %v670
        %674 = vmatprep.subr.bf16.mxu0 0
        %675 = vmatpush1.bf16.xpose.msra.mxu0 0
        %676 = vmatprep.subr.bf16.mxu0 0
        %677 = vmatpush1.bf16.xpose.msra.mxu0 0
        %678 = vmatprep.subr.bf16.mxu0 0
        %679 = vmatpush1.bf16.xpose.msra.mxu0 0
        %680 = vmatprep.subr.bf16.mxu0 0
        %681 = vmatpush1.bf16.xpose.msra.mxu0 0
        %682 = vmatprep.subr.bf16.mxu0 0
        %683 = vmatpush1.bf16.xpose.msra.mxu0 0
        %684 = vmatprep.subr.bf16.mxu0 0
        %685 = vmatpush1.bf16.xpose.msra.mxu0 0
        %686 = vmatprep.subr.bf16.mxu0 0
        %687 = vmatpush1.bf16.xpose.msra.mxu0 0
        %688 = vmatprep.subr.bf16.mxu0 0
        %689 = vmatpush1.bf16.xpose.msra.mxu0 0
        %690 = vmatprep.subr.bf16.mxu0 0
        %691 = vmatpush1.bf16.xpose.msra.mxu0 0
        %692 = vmatprep.subr.bf16.mxu0 0
        %693 = vmatpush1.bf16.xpose.msra.mxu0 0
        %694 = vmatprep.subr.bf16.mxu0 0
        %695 = vmatpush1.bf16.xpose.msra.mxu0 0
        %696 = vmatprep.subr.bf16.mxu0 0
        %697 = vmatpush1.bf16.xpose.msra.mxu0 0
        %698 = vmatprep.subr.bf16.mxu0 0
        %699 = vmatpush1.bf16.xpose.msra.mxu0 0
        %700 = vmatprep.subr.bf16.mxu0 0
        %701 = vmatpush1.bf16.xpose.msra.mxu0 0
        %702 = vmatprep.subr.bf16.mxu0 0
        %703 = vmatpush1.bf16.xpose.msra.mxu0 0
        %704 = vmatprep.mubr.bf16.mxu0 0
        %705 = vmatmul.mubr.bf16.gmra.mrb[0].mxu0 %v667
        %v706 = vpop.f32.mrb[0].mxu0
        %v707 = vadd.f32 0.0, %v706
        %v708 = vpop.f32.mrb[0].mxu0
        %v709 = vpop.f32.mrb[0].mxu0
        %v710 = vadd.f32 0.0, %v709
        %v711 = vpop.f32.mrb[0].mxu0
        %712 = vdwg.mxu0
        %v714 = vsel %vm571, %v562, 0
        %v717 = vsel %vm571, %v566, 0
        %719 = vmatprep.subr.bf16.mxu0 0
        %720 = vmatpush1.bf16.xpose.msra.mxu0 %v717
        %721 = vmatprep.subr.bf16.mxu0 0
        %722 = vmatpush1.bf16.xpose.msra.mxu0 0
        %723 = vmatprep.subr.bf16.mxu0 0
        %724 = vmatpush1.bf16.xpose.msra.mxu0 0
        %725 = vmatprep.subr.bf16.mxu0 0
        %726 = vmatpush1.bf16.xpose.msra.mxu0 0
        %727 = vmatprep.subr.bf16.mxu0 0
        %728 = vmatpush1.bf16.xpose.msra.mxu0 0
        %729 = vmatprep.subr.bf16.mxu0 0
        %730 = vmatpush1.bf16.xpose.msra.mxu0 0
        %731 = vmatprep.subr.bf16.mxu0 0
        %732 = vmatpush1.bf16.xpose.msra.mxu0 0
        %733 = vmatprep.subr.bf16.mxu0 0
        %734 = vmatpush1.bf16.xpose.msra.mxu0 0
        %735 = vmatprep.subr.bf16.mxu0 0
        %736 = vmatpush1.bf16.xpose.msra.mxu0 0
        %737 = vmatprep.subr.bf16.mxu0 0
        %738 = vmatpush1.bf16.xpose.msra.mxu0 0
        %739 = vmatprep.subr.bf16.mxu0 0
        %740 = vmatpush1.bf16.xpose.msra.mxu0 0
        %741 = vmatprep.subr.bf16.mxu0 0
        %742 = vmatpush1.bf16.xpose.msra.mxu0 0
        %743 = vmatprep.subr.bf16.mxu0 0
        %744 = vmatpush1.bf16.xpose.msra.mxu0 0
        %745 = vmatprep.subr.bf16.mxu0 0
        %746 = vmatpush1.bf16.xpose.msra.mxu0 0
        %747 = vmatprep.subr.bf16.mxu0 0
        %748 = vmatpush1.bf16.xpose.msra.mxu0 0
        %749 = vmatprep.subr.bf16.mxu0 0
        %750 = vmatpush1.bf16.xpose.msra.mxu0 0
        %751 = vmatprep.mubr.bf16.mxu0 0
        %752 = vmatmul.mubr.bf16.gmra.mrb[0].mxu0 %v714
        %v753 = vpop.f32.mrb[0].mxu0
        %v754 = vadd.f32 0.0, %v753
        %v755 = vpop.f32.mrb[0].mxu0
        %v756 = vpop.f32.mrb[0].mxu0
        %v757 = vadd.f32 0.0, %v756
        %v758 = vpop.f32.mrb[0].mxu0
        %759 = vdwg.mxu0
        %v760 = vsel %vm571, %v613, -inf
        %761 = vmax.xlane.f32.xlu0 %v760
        %v762 = vpop.xlane.xlu0 %761
        %v763 = vsel %vm571, %v616, -inf
        %764 = vmax.xlane.f32.xlu0 %v763
        %v765 = vpop.xlane.xlu0 %764
        %v766 = vsel %vm571, %v660, -inf
        %767 = vmax.xlane.f32.xlu0 %v766
        %v768 = vpop.xlane.xlu0 %767
        %v769 = vsel %vm571, %v663, -inf
        %770 = vmax.xlane.f32.xlu0 %v769
        %v771 = vpop.xlane.xlu0 %770
        %v772 = vsel %vm571, %v707, -inf
        %773 = vmax.xlane.f32.xlu0 %v772
        %v774 = vpop.xlane.xlu0 %773
        %v775 = vsel %vm571, %v710, -inf
        %776 = vmax.xlane.f32.xlu0 %v775
        %v777 = vpop.xlane.xlu0 %776
        %v778 = vsel %vm571, %v754, -inf
        %779 = vmax.xlane.f32.xlu0 %v778
        %v780 = vpop.xlane.xlu0 %779
        %v781 = vsel %vm571, %v757, -inf
        %782 = vmax.xlane.f32.xlu0 %v781
        %v783 = vpop.xlane.xlu0 %782
        %v784 = vsub.f32 %v613, %v762
        %v785 = vsub.f32 %v616, %v765
        %v786 = vsub.f32 %v660, %v768
        %v787 = vsub.f32 %v663, %v771
        %v788 = vsub.f32 %v707, %v774
        %v789 = vsub.f32 %v710, %v777
        %v790 = vsub.f32 %v754, %v780
        %v791 = vsub.f32 %v757, %v783
        %v792 = vmul.f32 %v784, 1.442695
        %v793 = vpow.pop %v792
        %v794 = vmul.f32 %v785, 1.442695
        %v795 = vpow.pop %v794
        %v796 = vmul.f32 %v786, 1.442695
        %v797 = vpow.pop %v796
        %v798 = vmul.f32 %v787, 1.442695
        %v799 = vpow.pop %v798
        %v800 = vmul.f32 %v788, 1.442695
        %v801 = vpow.pop %v800
        %v802 = vmul.f32 %v789, 1.442695
        %v803 = vpow.pop %v802
        %v804 = vmul.f32 %v790, 1.442695
        %v805 = vpow.pop %v804
        %v806 = vmul.f32 %v791, 1.442695
        %v807 = vpow.pop %v806
        %v808 = vsel %vm571, %v793, 0.0
        %809 = vadd.xlane.f32.xlu0 %v808
        %v810 = vpop.xlane.xlu0 %809
        %v811 = vsel %vm571, %v795, 0.0
        %812 = vadd.xlane.f32.xlu0 %v811
        %v813 = vpop.xlane.xlu0 %812
        %v814 = vsel %vm571, %v797, 0.0
        %815 = vadd.xlane.f32.xlu0 %v814
        %v816 = vpop.xlane.xlu0 %815
        %v817 = vsel %vm571, %v799, 0.0
        %818 = vadd.xlane.f32.xlu0 %v817
        %v819 = vpop.xlane.xlu0 %818
        %v820 = vsel %vm571, %v801, 0.0
        %821 = vadd.xlane.f32.xlu0 %v820
        %v822 = vpop.xlane.xlu0 %821
        %v823 = vsel %vm571, %v803, 0.0
        %824 = vadd.xlane.f32.xlu0 %v823
        %v825 = vpop.xlane.xlu0 %824
        %v826 = vsel %vm571, %v805, 0.0
        %827 = vadd.xlane.f32.xlu0 %v826
        %v828 = vpop.xlane.xlu0 %827
        %v829 = vsel %vm571, %v807, 0.0
        %830 = vadd.xlane.f32.xlu0 %v829
        %v831 = vpop.xlane.xlu0 %830
        %v832 = vrcp.pop %v810
        %v833 = vrcp.pop %v813
        %v834 = vrcp.pop %v816
        %v835 = vrcp.pop %v819
        %v836 = vrcp.pop %v822
        %v837 = vrcp.pop %v825
        %v838 = vrcp.pop %v828
        %v839 = vrcp.pop %v831
        %v840 = vmul.f32 %v793, %v832
        %v841 = vmul.f32 %v795, %v833
        %v842 = vmul.f32 %v797, %v834
        %v843 = vmul.f32 %v799, %v835
        %v844 = vmul.f32 %v801, %v836
        %v845 = vmul.f32 %v803, %v837
        %v846 = vmul.f32 %v805, %v838
        %v847 = vmul.f32 %v807, %v839
        %v848 = vpack.c.bf16 %v841, %v840
        %v849 = vpack.c.bf16 %v843, %v842
        %v850 = vpack.c.bf16 %v845, %v844
        %v851 = vpack.c.bf16 %v847, %v846
        %v853 = vsel %vm571, %v848, 0
        %855 = vmatprep.subr.bf16.mxu0 0
        %856 = vmatpush1.bf16.msra.mxu0 %v567
        %857 = vmatprep.subr.bf16.mxu0 0
        %858 = vmatpush1.bf16.msra.mxu0 0
        %859 = vmatprep.subr.bf16.mxu0 0
        %860 = vmatpush1.bf16.msra.mxu0 0
        %861 = vmatprep.subr.bf16.mxu0 0
        %862 = vmatpush1.bf16.msra.mxu0 0
        %863 = vmatprep.subr.bf16.mxu0 0
        %864 = vmatpush1.bf16.msra.mxu0 0
        %865 = vmatprep.subr.bf16.mxu0 0
        %866 = vmatpush1.bf16.msra.mxu0 0
        %867 = vmatprep.subr.bf16.mxu0 0
        %868 = vmatpush1.bf16.msra.mxu0 0
        %869 = vmatprep.subr.bf16.mxu0 0
        %870 = vmatpush1.bf16.msra.mxu0 0
        %871 = vmatprep.subr.bf16.mxu0 0
        %872 = vmatpush1.bf16.msra.mxu0 0
        %873 = vmatprep.subr.bf16.mxu0 0
        %874 = vmatpush1.bf16.msra.mxu0 0
        %875 = vmatprep.subr.bf16.mxu0 0
        %876 = vmatpush1.bf16.msra.mxu0 0
        %877 = vmatprep.subr.bf16.mxu0 0
        %878 = vmatpush1.bf16.msra.mxu0 0
        %879 = vmatprep.subr.bf16.mxu0 0
        %880 = vmatpush1.bf16.msra.mxu0 0
        %881 = vmatprep.subr.bf16.mxu0 0
        %882 = vmatpush1.bf16.msra.mxu0 0
        %883 = vmatprep.subr.bf16.mxu0 0
        %884 = vmatpush1.bf16.msra.mxu0 0
        %885 = vmatprep.subr.bf16.mxu0 0
        %886 = vmatpush1.bf16.msra.mxu0 0
        %887 = vmatprep.mubr.bf16.mxu0 0
        %888 = vmatmul.mubr.bf16.gmra.mrb[0].mxu0 %v853
        %v889 = vpop.f32.mrb[0].mxu0
        %v890 = vadd.f32 0.0, %v889
        %v891 = vpop.f32.mrb[0].mxu0
        %v892 = vpop.f32.mrb[0].mxu0
        %v893 = vadd.f32 0.0, %v892
        %v894 = vpop.f32.mrb[0].mxu0
        %895 = vdwg.mxu0
        %v897 = vsel %vm571, %v849, 0
        %899 = vmatprep.subr.bf16.mxu0 0
        %900 = vmatpush1.bf16.msra.mxu0 %v568
        %901 = vmatprep.subr.bf16.mxu0 0
        %902 = vmatpush1.bf16.msra.mxu0 0
        %903 = vmatprep.subr.bf16.mxu0 0
        %904 = vmatpush1.bf16.msra.mxu0 0
        %905 = vmatprep.subr.bf16.mxu0 0
        %906 = vmatpush1.bf16.msra.mxu0 0
        %907 = vmatprep.subr.bf16.mxu0 0
        %908 = vmatpush1.bf16.msra.mxu0 0
        %909 = vmatprep.subr.bf16.mxu0 0
        %910 = vmatpush1.bf16.msra.mxu0 0
        %911 = vmatprep.subr.bf16.mxu0 0
        %912 = vmatpush1.bf16.msra.mxu0 0
        %913 = vmatprep.subr.bf16.mxu0 0
        %914 = vmatpush1.bf16.msra.mxu0 0
        %915 = vmatprep.subr.bf16.mxu0 0
        %916 = vmatpush1.bf16.msra.mxu0 0
        %917 = vmatprep.subr.bf16.mxu0 0
        %918 = vmatpush1.bf16.msra.mxu0 0
        %919 = vmatprep.subr.bf16.mxu0 0
        %920 = vmatpush1.bf16.msra.mxu0 0
        %921 = vmatprep.subr.bf16.mxu0 0
        %922 = vmatpush1.bf16.msra.mxu0 0
        %923 = vmatprep.subr.bf16.mxu0 0
        %924 = vmatpush1.bf16.msra.mxu0 0
        %925 = vmatprep.subr.bf16.mxu0 0
        %926 = vmatpush1.bf16.msra.mxu0 0
        %927 = vmatprep.subr.bf16.mxu0 0
        %928 = vmatpush1.bf16.msra.mxu0 0
        %929 = vmatprep.subr.bf16.mxu0 0
        %930 = vmatpush1.bf16.msra.mxu0 0
        %931 = vmatprep.mubr.bf16.mxu0 0
        %932 = vmatmul.mubr.bf16.gmra.mrb[0].mxu0 %v897
        %v933 = vpop.f32.mrb[0].mxu0
        %v934 = vadd.f32 0.0, %v933
        %v935 = vpop.f32.mrb[0].mxu0
        %v936 = vpop.f32.mrb[0].mxu0
        %v937 = vadd.f32 0.0, %v936
        %v938 = vpop.f32.mrb[0].mxu0
        %939 = vdwg.mxu0
        %v941 = vsel %vm571, %v850, 0
        %943 = vmatprep.subr.bf16.mxu0 0
        %944 = vmatpush1.bf16.msra.mxu0 %v569
        %945 = vmatprep.subr.bf16.mxu0 0
        %946 = vmatpush1.bf16.msra.mxu0 0
        %947 = vmatprep.subr.bf16.mxu0 0
        %948 = vmatpush1.bf16.msra.mxu0 0
        %949 = vmatprep.subr.bf16.mxu0 0
        %950 = vmatpush1.bf16.msra.mxu0 0
        %951 = vmatprep.subr.bf16.mxu0 0
        %952 = vmatpush1.bf16.msra.mxu0 0
        %953 = vmatprep.subr.bf16.mxu0 0
        %954 = vmatpush1.bf16.msra.mxu0 0
        %955 = vmatprep.subr.bf16.mxu0 0
        %956 = vmatpush1.bf16.msra.mxu0 0
        %957 = vmatprep.subr.bf16.mxu0 0
        %958 = vmatpush1.bf16.msra.mxu0 0
        %959 = vmatprep.subr.bf16.mxu0 0
        %960 = vmatpush1.bf16.msra.mxu0 0
        %961 = vmatprep.subr.bf16.mxu0 0
        %962 = vmatpush1.bf16.msra.mxu0 0
        %963 = vmatprep.subr.bf16.mxu0 0
        %964 = vmatpush1.bf16.msra.mxu0 0
        %965 = vmatprep.subr.bf16.mxu0 0
        %966 = vmatpush1.bf16.msra.mxu0 0
        %967 = vmatprep.subr.bf16.mxu0 0
        %968 = vmatpush1.bf16.msra.mxu0 0
        %969 = vmatprep.subr.bf16.mxu0 0
        %970 = vmatpush1.bf16.msra.mxu0 0
        %971 = vmatprep.subr.bf16.mxu0 0
        %972 = vmatpush1.bf16.msra.mxu0 0
        %973 = vmatprep.subr.bf16.mxu0 0
        %974 = vmatpush1.bf16.msra.mxu0 0
        %975 = vmatprep.mubr.bf16.mxu0 0
        %976 = vmatmul.mubr.bf16.gmra.mrb[0].mxu0 %v941
        %v977 = vpop.f32.mrb[0].mxu0
        %v978 = vadd.f32 0.0, %v977
        %v979 = vpop.f32.mrb[0].mxu0
        %v980 = vpop.f32.mrb[0].mxu0
        %v981 = vadd.f32 0.0, %v980
        %v982 = vpop.f32.mrb[0].mxu0
        %983 = vdwg.mxu0
        %v985 = vsel %vm571, %v851, 0
        %987 = vmatprep.subr.bf16.mxu0 0
        %988 = vmatpush1.bf16.msra.mxu0 %v570
        %989 = vmatprep.subr.bf16.mxu0 0
        %990 = vmatpush1.bf16.msra.mxu0 0
        %991 = vmatprep.subr.bf16.mxu0 0
        %992 = vmatpush1.bf16.msra.mxu0 0
        %993 = vmatprep.subr.bf16.mxu0 0
        %994 = vmatpush1.bf16.msra.mxu0 0
        %995 = vmatprep.subr.bf16.mxu0 0
        %996 = vmatpush1.bf16.msra.mxu0 0
        %997 = vmatprep.subr.bf16.mxu0 0
        %998 = vmatpush1.bf16.msra.mxu0 0
        %999 = vmatprep.subr.bf16.mxu0 0
        %1000 = vmatpush1.bf16.msra.mxu0 0
        %1001 = vmatprep.subr.bf16.mxu0 0
        %1002 = vmatpush1.bf16.msra.mxu0 0
        %1003 = vmatprep.subr.bf16.mxu0 0
        %1004 = vmatpush1.bf16.msra.mxu0 0
        %1005 = vmatprep.subr.bf16.mxu0 0
        %1006 = vmatpush1.bf16.msra.mxu0 0
        %1007 = vmatprep.subr.bf16.mxu0 0
        %1008 = vmatpush1.bf16.msra.mxu0 0
        %1009 = vmatprep.subr.bf16.mxu0 0
        %1010 = vmatpush1.bf16.msra.mxu0 0
        %1011 = vmatprep.subr.bf16.mxu0 0
        %1012 = vmatpush1.bf16.msra.mxu0 0
        %1013 = vmatprep.subr.bf16.mxu0 0
        %1014 = vmatpush1.bf16.msra.mxu0 0
        %1015 = vmatprep.subr.bf16.mxu0 0
        %1016 = vmatpush1.bf16.msra.mxu0 0
        %1017 = vmatprep.subr.bf16.mxu0 0
        %1018 = vmatpush1.bf16.msra.mxu0 0
        %1019 = vmatprep.mubr.bf16.mxu0 0
        %1020 = vmatmul.mubr.bf16.gmra.mrb[0].mxu0 %v985
        %v1021 = vpop.f32.mrb[0].mxu0
        %v1022 = vadd.f32 0.0, %v1021
        %v1023 = vpop.f32.mrb[0].mxu0
        %v1024 = vpop.f32.mrb[0].mxu0
        %v1025 = vadd.f32 0.0, %v1024
        %v1026 = vpop.f32.mrb[0].mxu0
        %1027 = vdwg.mxu0
        %v1028 = vpack.c.bf16 %v893, %v890
        %v1029 = vpack.c.bf16 %v937, %v934
        %v1030 = vpack.c.bf16 %v981, %v978
        %v1031 = vpack.c.bf16 %v1025, %v1022
        %v1032 = vld [vmem:[#allocation7] sm:$0xf]
        %v1033 = vld [vmem:[#allocation7 + $0x4] sm:$0xf]
        %1035 = vrot.lane.b32.xlu0 %v559, 112
        %v1036 = vpop.permute.xlu0 %1035
        %1038 = vrot.lane.b32.xlu0 %v563, 112
        %v1039 = vpop.permute.xlu0 %1038
        %v1041 = vsel %vm571, %v1036, 0
        %v1044 = vsel %vm571, %v1039, 0
        %1046 = vmatprep.subr.bf16.mxu0 0
        %1047 = vmatpush1.bf16.xpose.msra.mxu0 %v1044
        %1048 = vmatprep.subr.bf16.mxu0 0
        %1049 = vmatpush1.bf16.xpose.msra.mxu0 0
        %1050 = vmatprep.subr.bf16.mxu0 0
        %1051 = vmatpush1.bf16.xpose.msra.mxu0 0
        %1052 = vmatprep.subr.bf16.mxu0 0
        %1053 = vmatpush1.bf16.xpose.msra.mxu0 0
        %1054 = vmatprep.subr.bf16.mxu0 0
        %1055 = vmatpush1.bf16.xpose.msra.mxu0 0
        %1056 = vmatprep.subr.bf16.mxu0 0
        %1057 = vmatpush1.bf16.xpose.msra.mxu0 0
        %1058 = vmatprep.subr.bf16.mxu0 0
        %1059 = vmatpush1.bf16.xpose.msra.mxu0 0
        %1060 = vmatprep.subr.bf16.mxu0 0
        %1061 = vmatpush1.bf16.xpose.msra.mxu0 0
        %1062 = vmatprep.subr.bf16.mxu0 0
        %1063 = vmatpush1.bf16.xpose.msra.mxu0 0
        %1064 = vmatprep.subr.bf16.mxu0 0
        %1065 = vmatpush1.bf16.xpose.msra.mxu0 0
        %1066 = vmatprep.subr.bf16.mxu0 0
        %1067 = vmatpush1.bf16.xpose.msra.mxu0 0
        %1068 = vmatprep.subr.bf16.mxu0 0
        %1069 = vmatpush1.bf16.xpose.msra.mxu0 0
        %1070 = vmatprep.subr.bf16.mxu0 0
        %1071 = vmatpush1.bf16.xpose.msra.mxu0 0
        %1072 = vmatprep.subr.bf16.mxu0 0
        %1073 = vmatpush1.bf16.xpose.msra.mxu0 0
        %1074 = vmatprep.subr.bf16.mxu0 0
        %1075 = vmatpush1.bf16.xpose.msra.mxu0 0
        %1076 = vmatprep.subr.bf16.mxu0 0
        %1077 = vmatpush1.bf16.xpose.msra.mxu0 0
        %1078 = vmatprep.mubr.bf16.mxu0 0
        %1079 = vmatmul.mubr.bf16.gmra.mrb[0].mxu0 %v1041
        %v1080 = vpop.f32.mrb[0].mxu0
        %v1081 = vadd.f32 0.0, %v1080
        %v1082 = vpop.f32.mrb[0].mxu0
        %v1083 = vpop.f32.mrb[0].mxu0
        %v1084 = vadd.f32 0.0, %v1083
        %v1085 = vpop.f32.mrb[0].mxu0
        %1086 = vdwg.mxu0
        %1088 = vrot.lane.b32.xlu0 %v560, 112
        %v1089 = vpop.permute.xlu0 %1088
        %1091 = vrot.lane.b32.xlu0 %v564, 112
        %v1092 = vpop.permute.xlu0 %1091
        %v1094 = vsel %vm571, %v1089, 0
        %v1097 = vsel %vm571, %v1092, 0
        %1099 = vmatprep.subr.bf16.mxu0 0
        %1100 = vmatpush1.bf16.xpose.msra.mxu0 %v1097
        %1101 = vmatprep.subr.bf16.mxu0 0
        %1102 = vmatpush1.bf16.xpose.msra.mxu0 0
        %1103 = vmatprep.subr.bf16.mxu0 0
        %1104 = vmatpush1.bf16.xpose.msra.mxu0 0
        %1105 = vmatprep.subr.bf16.mxu0 0
        %1106 = vmatpush1.bf16.xpose.msra.mxu0 0
        %1107 = vmatprep.subr.bf16.mxu0 0
        %1108 = vmatpush1.bf16.xpose.msra.mxu0 0
        %1109 = vmatprep.subr.bf16.mxu0 0
        %1110 = vmatpush1.bf16.xpose.msra.mxu0 0
        %1111 = vmatprep.subr.bf16.mxu0 0
        %1112 = vmatpush1.bf16.xpose.msra.mxu0 0
        %1113 = vmatprep.subr.bf16.mxu0 0
        %1114 = vmatpush1.bf16.xpose.msra.mxu0 0
        %1115 = vmatprep.subr.bf16.mxu0 0
        %1116 = vmatpush1.bf16.xpose.msra.mxu0 0
        %1117 = vmatprep.subr.bf16.mxu0 0
        %1118 = vmatpush1.bf16.xpose.msra.mxu0 0
        %1119 = vmatprep.subr.bf16.mxu0 0
        %1120 = vmatpush1.bf16.xpose.msra.mxu0 0
        %1121 = vmatprep.subr.bf16.mxu0 0
        %1122 = vmatpush1.bf16.xpose.msra.mxu0 0
        %1123 = vmatprep.subr.bf16.mxu0 0
        %1124 = vmatpush1.bf16.xpose.msra.mxu0 0
        %1125 = vmatprep.subr.bf16.mxu0 0
        %1126 = vmatpush1.bf16.xpose.msra.mxu0 0
        %1127 = vmatprep.subr.bf16.mxu0 0
        %1128 = vmatpush1.bf16.xpose.msra.mxu0 0
        %1129 = vmatprep.subr.bf16.mxu0 0
        %1130 = vmatpush1.bf16.xpose.msra.mxu0 0
        %1131 = vmatprep.mubr.bf16.mxu0 0
        %1132 = vmatmul.mubr.bf16.gmra.mrb[0].mxu0 %v1094
        %v1133 = vpop.f32.mrb[0].mxu0
        %v1134 = vadd.f32 0.0, %v1133
        %v1135 = vpop.f32.mrb[0].mxu0
        %v1136 = vpop.f32.mrb[0].mxu0
        %v1137 = vadd.f32 0.0, %v1136
        %v1138 = vpop.f32.mrb[0].mxu0
        %1139 = vdwg.mxu0
        %1141 = vrot.lane.b32.xlu0 %v561, 112
        %v1142 = vpop.permute.xlu0 %1141
        %1144 = vrot.lane.b32.xlu0 %v565, 112
        %v1145 = vpop.permute.xlu0 %1144
        %v1147 = vsel %vm571, %v1142, 0
        %v1150 = vsel %vm571, %v1145, 0
        %1152 = vmatprep.subr.bf16.mxu0 0
        %1153 = vmatpush1.bf16.xpose.msra.mxu0 %v1150
        %1154 = vmatprep.subr.bf16.mxu0 0
        %1155 = vmatpush1.bf16.xpose.msra.mxu0 0
        %1156 = vmatprep.subr.bf16.mxu0 0
        %1157 = vmatpush1.bf16.xpose.msra.mxu0 0
        %1158 = vmatprep.subr.bf16.mxu0 0
        %1159 = vmatpush1.bf16.xpose.msra.mxu0 0
        %1160 = vmatprep.subr.bf16.mxu0 0
        %1161 = vmatpush1.bf16.xpose.msra.mxu0 0
        %1162 = vmatprep.subr.bf16.mxu0 0
        %1163 = vmatpush1.bf16.xpose.msra.mxu0 0
        %1164 = vmatprep.subr.bf16.mxu0 0
        %1165 = vmatpush1.bf16.xpose.msra.mxu0 0
        %1166 = vmatprep.subr.bf16.mxu0 0
        %1167 = vmatpush1.bf16.xpose.msra.mxu0 0
        %1168 = vmatprep.subr.bf16.mxu0 0
        %1169 = vmatpush1.bf16.xpose.msra.mxu0 0
        %1170 = vmatprep.subr.bf16.mxu0 0
        %1171 = vmatpush1.bf16.xpose.msra.mxu0 0
        %1172 = vmatprep.subr.bf16.mxu0 0
        %1173 = vmatpush1.bf16.xpose.msra.mxu0 0
        %1174 = vmatprep.subr.bf16.mxu0 0
        %1175 = vmatpush1.bf16.xpose.msra.mxu0 0
        %1176 = vmatprep.subr.bf16.mxu0 0
        %1177 = vmatpush1.bf16.xpose.msra.mxu0 0
        %1178 = vmatprep.subr.bf16.mxu0 0
        %1179 = vmatpush1.bf16.xpose.msra.mxu0 0
        %1180 = vmatprep.subr.bf16.mxu0 0
        %1181 = vmatpush1.bf16.xpose.msra.mxu0 0
        %1182 = vmatprep.subr.bf16.mxu0 0
        %1183 = vmatpush1.bf16.xpose.msra.mxu0 0
        %1184 = vmatprep.mubr.bf16.mxu0 0
        %1185 = vmatmul.mubr.bf16.gmra.mrb[0].mxu0 %v1147
        %v1186 = vpop.f32.mrb[0].mxu0
        %v1187 = vadd.f32 0.0, %v1186
        %v1188 = vpop.f32.mrb[0].mxu0
        %v1189 = vpop.f32.mrb[0].mxu0
        %v1190 = vadd.f32 0.0, %v1189
        %v1191 = vpop.f32.mrb[0].mxu0
        %1192 = vdwg.mxu0
        %1194 = vrot.lane.b32.xlu0 %v562, 112
        %v1195 = vpop.permute.xlu0 %1194
        %1197 = vrot.lane.b32.xlu0 %v566, 112
        %v1198 = vpop.permute.xlu0 %1197
        %v1200 = vsel %vm571, %v1195, 0
        %v1203 = vsel %vm571, %v1198, 0
        %1205 = vmatprep.subr.bf16.mxu0 0
        %1206 = vmatpush1.bf16.xpose.msra.mxu0 %v1203
        %1207 = vmatprep.subr.bf16.mxu0 0
        %1208 = vmatpush1.bf16.xpose.msra.mxu0 0
        %1209 = vmatprep.subr.bf16.mxu0 0
        %1210 = vmatpush1.bf16.xpose.msra.mxu0 0
        %1211 = vmatprep.subr.bf16.mxu0 0
        %1212 = vmatpush1.bf16.xpose.msra.mxu0 0
        %1213 = vmatprep.subr.bf16.mxu0 0
        %1214 = vmatpush1.bf16.xpose.msra.mxu0 0
        %1215 = vmatprep.subr.bf16.mxu0 0
        %1216 = vmatpush1.bf16.xpose.msra.mxu0 0
        %1217 = vmatprep.subr.bf16.mxu0 0
        %1218 = vmatpush1.bf16.xpose.msra.mxu0 0
        %1219 = vmatprep.subr.bf16.mxu0 0
        %1220 = vmatpush1.bf16.xpose.msra.mxu0 0
        %1221 = vmatprep.subr.bf16.mxu0 0
        %1222 = vmatpush1.bf16.xpose.msra.mxu0 0
        %1223 = vmatprep.subr.bf16.mxu0 0
        %1224 = vmatpush1.bf16.xpose.msra.mxu0 0
        %1225 = vmatprep.subr.bf16.mxu0 0
        %1226 = vmatpush1.bf16.xpose.msra.mxu0 0
        %1227 = vmatprep.subr.bf16.mxu0 0
        %1228 = vmatpush1.bf16.xpose.msra.mxu0 0
        %1229 = vmatprep.subr.bf16.mxu0 0
        %1230 = vmatpush1.bf16.xpose.msra.mxu0 0
        %1231 = vmatprep.subr.bf16.mxu0 0
        %1232 = vmatpush1.bf16.xpose.msra.mxu0 0
        %1233 = vmatprep.subr.bf16.mxu0 0
        %1234 = vmatpush1.bf16.xpose.msra.mxu0 0
        %1235 = vmatprep.subr.bf16.mxu0 0
        %1236 = vmatpush1.bf16.xpose.msra.mxu0 0
        %1237 = vmatprep.mubr.bf16.mxu0 0
        %1238 = vmatmul.mubr.bf16.gmra.mrb[0].mxu0 %v1200
        %v1239 = vpop.f32.mrb[0].mxu0
        %v1240 = vadd.f32 0.0, %v1239
        %v1241 = vpop.f32.mrb[0].mxu0
        %v1242 = vpop.f32.mrb[0].mxu0
        %v1243 = vadd.f32 0.0, %v1242
        %v1244 = vpop.f32.mrb[0].mxu0
        %1245 = vdwg.mxu0
        %v1246 = vsel %vm571, %v1081, -inf
        %1247 = vmax.xlane.f32.xlu0 %v1246
        %v1248 = vpop.xlane.xlu0 %1247
        %v1249 = vsel %vm571, %v1084, -inf
        %1250 = vmax.xlane.f32.xlu0 %v1249
        %v1251 = vpop.xlane.xlu0 %1250
        %v1252 = vsel %vm571, %v1134, -inf
        %1253 = vmax.xlane.f32.xlu0 %v1252
        %v1254 = vpop.xlane.xlu0 %1253
        %v1255 = vsel %vm571, %v1137, -inf
        %1256 = vmax.xlane.f32.xlu0 %v1255
        %v1257 = vpop.xlane.xlu0 %1256
        %v1258 = vsel %vm571, %v1187, -inf
        %1259 = vmax.xlane.f32.xlu0 %v1258
        %v1260 = vpop.xlane.xlu0 %1259
        %v1261 = vsel %vm571, %v1190, -inf
        %1262 = vmax.xlane.f32.xlu0 %v1261
        %v1263 = vpop.xlane.xlu0 %1262
        %v1264 = vsel %vm571, %v1240, -inf
        %1265 = vmax.xlane.f32.xlu0 %v1264
        %v1266 = vpop.xlane.xlu0 %1265
        %v1267 = vsel %vm571, %v1243, -inf
        %1268 = vmax.xlane.f32.xlu0 %v1267
        %v1269 = vpop.xlane.xlu0 %1268
        %v1270 = vsub.f32 %v1081, %v1248
        %v1271 = vsub.f32 %v1084, %v1251
        %v1272 = vsub.f32 %v1134, %v1254
        %v1273 = vsub.f32 %v1137, %v1257
        %v1274 = vsub.f32 %v1187, %v1260
        %v1275 = vsub.f32 %v1190, %v1263
        %v1276 = vsub.f32 %v1240, %v1266
        %v1277 = vsub.f32 %v1243, %v1269
        %v1278 = vmul.f32 %v1270, 1.442695
        %v1279 = vpow.pop %v1278
        %v1280 = vmul.f32 %v1271, 1.442695
        %v1281 = vpow.pop %v1280
        %v1282 = vmul.f32 %v1272, 1.442695
        %v1283 = vpow.pop %v1282
        %v1284 = vmul.f32 %v1273, 1.442695
        %v1285 = vpow.pop %v1284
        %v1286 = vmul.f32 %v1274, 1.442695
        %v1287 = vpow.pop %v1286
        %v1288 = vmul.f32 %v1275, 1.442695
        %v1289 = vpow.pop %v1288
        %v1290 = vmul.f32 %v1276, 1.442695
        %v1291 = vpow.pop %v1290
        %v1292 = vmul.f32 %v1277, 1.442695
        %v1293 = vpow.pop %v1292
        %v1294 = vsel %vm571, %v1279, 0.0
        %1295 = vadd.xlane.f32.xlu0 %v1294
        %v1296 = vpop.xlane.xlu0 %1295
        %v1297 = vsel %vm571, %v1281, 0.0
        %1298 = vadd.xlane.f32.xlu0 %v1297
        %v1299 = vpop.xlane.xlu0 %1298
        %v1300 = vsel %vm571, %v1283, 0.0
        %1301 = vadd.xlane.f32.xlu0 %v1300
        %v1302 = vpop.xlane.xlu0 %1301
        %v1303 = vsel %vm571, %v1285, 0.0
        %1304 = vadd.xlane.f32.xlu0 %v1303
        %v1305 = vpop.xlane.xlu0 %1304
        %v1306 = vsel %vm571, %v1287, 0.0
        %1307 = vadd.xlane.f32.xlu0 %v1306
        %v1308 = vpop.xlane.xlu0 %1307
        %v1309 = vsel %vm571, %v1289, 0.0
        %1310 = vadd.xlane.f32.xlu0 %v1309
        %v1311 = vpop.xlane.xlu0 %1310
        %v1312 = vsel %vm571, %v1291, 0.0
        %1313 = vadd.xlane.f32.xlu0 %v1312
        %v1314 = vpop.xlane.xlu0 %1313
        %v1315 = vsel %vm571, %v1293, 0.0
        %1316 = vadd.xlane.f32.xlu0 %v1315
        %v1317 = vpop.xlane.xlu0 %1316
        %v1318 = vrcp.pop %v1296
        %v1319 = vrcp.pop %v1299
        %v1320 = vrcp.pop %v1302
        %v1321 = vrcp.pop %v1305
        %v1322 = vrcp.pop %v1308
        %v1323 = vrcp.pop %v1311
        %v1324 = vrcp.pop %v1314
        %v1325 = vrcp.pop %v1317
        %v1326 = vmul.f32 %v1279, %v1318
        %v1327 = vmul.f32 %v1281, %v1319
        %v1328 = vmul.f32 %v1283, %v1320
        %v1329 = vmul.f32 %v1285, %v1321
        %v1330 = vmul.f32 %v1287, %v1322
        %v1331 = vmul.f32 %v1289, %v1323
        %v1332 = vmul.f32 %v1291, %v1324
        %v1333 = vmul.f32 %v1293, %v1325
        %v1334 = vpack.c.bf16 %v1327, %v1326
        %v1335 = vpack.c.bf16 %v1329, %v1328
        %v1336 = vpack.c.bf16 %v1331, %v1330
        %v1337 = vpack.c.bf16 %v1333, %v1332
        %1339 = vrot.lane.b32.xlu0 %v567, 112
        %v1340 = vpop.permute.xlu0 %1339
        %v1343 = vsel %vm571, %v1334, 0
        %1345 = vmatprep.subr.bf16.mxu0 0
        %1346 = vmatpush1.bf16.msra.mxu0 %v1340
        %1347 = vmatprep.subr.bf16.mxu0 0
        %1348 = vmatpush1.bf16.msra.mxu0 0
        %1349 = vmatprep.subr.bf16.mxu0 0
        %1350 = vmatpush1.bf16.msra.mxu0 0
        %1351 = vmatprep.subr.bf16.mxu0 0
        %1352 = vmatpush1.bf16.msra.mxu0 0
        %1353 = vmatprep.subr.bf16.mxu0 0
        %1354 = vmatpush1.bf16.msra.mxu0 0
        %1355 = vmatprep.subr.bf16.mxu0 0
        %1356 = vmatpush1.bf16.msra.mxu0 0
        %1357 = vmatprep.subr.bf16.mxu0 0
        %1358 = vmatpush1.bf16.msra.mxu0 0
        %1359 = vmatprep.subr.bf16.mxu0 0
        %1360 = vmatpush1.bf16.msra.mxu0 0
        %1361 = vmatprep.subr.bf16.mxu0 0
        %1362 = vmatpush1.bf16.msra.mxu0 0
        %1363 = vmatprep.subr.bf16.mxu0 0
        %1364 = vmatpush1.bf16.msra.mxu0 0
        %1365 = vmatprep.subr.bf16.mxu0 0
        %1366 = vmatpush1.bf16.msra.mxu0 0
        %1367 = vmatprep.subr.bf16.mxu0 0
        %1368 = vmatpush1.bf16.msra.mxu0 0
        %1369 = vmatprep.subr.bf16.mxu0 0
        %1370 = vmatpush1.bf16.msra.mxu0 0
        %1371 = vmatprep.subr.bf16.mxu0 0
        %1372 = vmatpush1.bf16.msra.mxu0 0
        %1373 = vmatprep.subr.bf16.mxu0 0
        %1374 = vmatpush1.bf16.msra.mxu0 0
        %1375 = vmatprep.subr.bf16.mxu0 0
        %1376 = vmatpush1.bf16.msra.mxu0 0
        %1377 = vmatprep.mubr.bf16.mxu0 0
        %1378 = vmatmul.mubr.bf16.gmra.mrb[0].mxu0 %v1343
        %v1379 = vpop.f32.mrb[0].mxu0
        %v1380 = vadd.f32 0.0, %v1379
        %v1381 = vpop.f32.mrb[0].mxu0
        %v1382 = vpop.f32.mrb[0].mxu0
        %v1383 = vadd.f32 0.0, %v1382
        %v1384 = vpop.f32.mrb[0].mxu0
        %1385 = vdwg.mxu0
        %1387 = vrot.lane.b32.xlu0 %v568, 112
        %v1388 = vpop.permute.xlu0 %1387
        %v1391 = vsel %vm571, %v1335, 0
        %1393 = vmatprep.subr.bf16.mxu0 0
        %1394 = vmatpush1.bf16.msra.mxu0 %v1388
        %1395 = vmatprep.subr.bf16.mxu0 0
        %1396 = vmatpush1.bf16.msra.mxu0 0
        %1397 = vmatprep.subr.bf16.mxu0 0
        %1398 = vmatpush1.bf16.msra.mxu0 0
        %1399 = vmatprep.subr.bf16.mxu0 0
        %1400 = vmatpush1.bf16.msra.mxu0 0
        %1401 = vmatprep.subr.bf16.mxu0 0
        %1402 = vmatpush1.bf16.msra.mxu0 0
        %1403 = vmatprep.subr.bf16.mxu0 0
        %1404 = vmatpush1.bf16.msra.mxu0 0
        %1405 = vmatprep.subr.bf16.mxu0 0
        %1406 = vmatpush1.bf16.msra.mxu0 0
        %1407 = vmatprep.subr.bf16.mxu0 0
        %1408 = vmatpush1.bf16.msra.mxu0 0
        %1409 = vmatprep.subr.bf16.mxu0 0
        %1410 = vmatpush1.bf16.msra.mxu0 0
        %1411 = vmatprep.subr.bf16.mxu0 0
        %1412 = vmatpush1.bf16.msra.mxu0 0
        %1413 = vmatprep.subr.bf16.mxu0 0
        %1414 = vmatpush1.bf16.msra.mxu0 0
        %1415 = vmatprep.subr.bf16.mxu0 0
        %1416 = vmatpush1.bf16.msra.mxu0 0
        %1417 = vmatprep.subr.bf16.mxu0 0
        %1418 = vmatpush1.bf16.msra.mxu0 0
        %1419 = vmatprep.subr.bf16.mxu0 0
        %1420 = vmatpush1.bf16.msra.mxu0 0
        %1421 = vmatprep.subr.bf16.mxu0 0
        %1422 = vmatpush1.bf16.msra.mxu0 0
        %1423 = vmatprep.subr.bf16.mxu0 0
        %1424 = vmatpush1.bf16.msra.mxu0 0
        %1425 = vmatprep.mubr.bf16.mxu0 0
        %1426 = vmatmul.mubr.bf16.gmra.mrb[0].mxu0 %v1391
        %v1427 = vpop.f32.mrb[0].mxu0
        %v1428 = vadd.f32 0.0, %v1427
        %v1429 = vpop.f32.mrb[0].mxu0
        %v1430 = vpop.f32.mrb[0].mxu0
        %v1431 = vadd.f32 0.0, %v1430
        %v1432 = vpop.f32.mrb[0].mxu0
        %1433 = vdwg.mxu0
        %1435 = vrot.lane.b32.xlu0 %v569, 112
        %v1436 = vpop.permute.xlu0 %1435
        %v1439 = vsel %vm571, %v1336, 0
        %1441 = vmatprep.subr.bf16.mxu0 0
        %1442 = vmatpush1.bf16.msra.mxu0 %v1436
        %1443 = vmatprep.subr.bf16.mxu0 0
        %1444 = vmatpush1.bf16.msra.mxu0 0
        %1445 = vmatprep.subr.bf16.mxu0 0
        %1446 = vmatpush1.bf16.msra.mxu0 0
        %1447 = vmatprep.subr.bf16.mxu0 0
        %1448 = vmatpush1.bf16.msra.mxu0 0
        %1449 = vmatprep.subr.bf16.mxu0 0
        %1450 = vmatpush1.bf16.msra.mxu0 0
        %1451 = vmatprep.subr.bf16.mxu0 0
        %1452 = vmatpush1.bf16.msra.mxu0 0
        %1453 = vmatprep.subr.bf16.mxu0 0
        %1454 = vmatpush1.bf16.msra.mxu0 0
        %1455 = vmatprep.subr.bf16.mxu0 0
        %1456 = vmatpush1.bf16.msra.mxu0 0
        %1457 = vmatprep.subr.bf16.mxu0 0
        %1458 = vmatpush1.bf16.msra.mxu0 0
        %1459 = vmatprep.subr.bf16.mxu0 0
        %1460 = vmatpush1.bf16.msra.mxu0 0
        %1461 = vmatprep.subr.bf16.mxu0 0
        %1462 = vmatpush1.bf16.msra.mxu0 0
        %1463 = vmatprep.subr.bf16.mxu0 0
        %1464 = vmatpush1.bf16.msra.mxu0 0
        %1465 = vmatprep.subr.bf16.mxu0 0
        %1466 = vmatpush1.bf16.msra.mxu0 0
        %1467 = vmatprep.subr.bf16.mxu0 0
        %1468 = vmatpush1.bf16.msra.mxu0 0
        %1469 = vmatprep.subr.bf16.mxu0 0
        %1470 = vmatpush1.bf16.msra.mxu0 0
        %1471 = vmatprep.subr.bf16.mxu0 0
        %1472 = vmatpush1.bf16.msra.mxu0 0
        %1473 = vmatprep.mubr.bf16.mxu0 0
        %1474 = vmatmul.mubr.bf16.gmra.mrb[0].mxu0 %v1439
        %v1475 = vpop.f32.mrb[0].mxu0
        %v1476 = vadd.f32 0.0, %v1475
        %v1477 = vpop.f32.mrb[0].mxu0
        %v1478 = vpop.f32.mrb[0].mxu0
        %v1479 = vadd.f32 0.0, %v1478
        %v1480 = vpop.f32.mrb[0].mxu0
        %1481 = vdwg.mxu0
        %1483 = vrot.lane.b32.xlu0 %v570, 112
        %v1484 = vpop.permute.xlu0 %1483
        %v1487 = vsel %vm571, %v1337, 0
        %1489 = vmatprep.subr.bf16.mxu0 0
        %1490 = vmatpush1.bf16.msra.mxu0 %v1484
        %1491 = vmatprep.subr.bf16.mxu0 0
        %1492 = vmatpush1.bf16.msra.mxu0 0
        %1493 = vmatprep.subr.bf16.mxu0 0
        %1494 = vmatpush1.bf16.msra.mxu0 0
        %1495 = vmatprep.subr.bf16.mxu0 0
        %1496 = vmatpush1.bf16.msra.mxu0 0
        %1497 = vmatprep.subr.bf16.mxu0 0
        %1498 = vmatpush1.bf16.msra.mxu0 0
        %1499 = vmatprep.subr.bf16.mxu0 0
        %1500 = vmatpush1.bf16.msra.mxu0 0
        %1501 = vmatprep.subr.bf16.mxu0 0
        %1502 = vmatpush1.bf16.msra.mxu0 0
        %1503 = vmatprep.subr.bf16.mxu0 0
        %1504 = vmatpush1.bf16.msra.mxu0 0
        %1505 = vmatprep.subr.bf16.mxu0 0
        %1506 = vmatpush1.bf16.msra.mxu0 0
        %1507 = vmatprep.subr.bf16.mxu0 0
        %1508 = vmatpush1.bf16.msra.mxu0 0
        %1509 = vmatprep.subr.bf16.mxu0 0
        %1510 = vmatpush1.bf16.msra.mxu0 0
        %1511 = vmatprep.subr.bf16.mxu0 0
        %1512 = vmatpush1.bf16.msra.mxu0 0
        %1513 = vmatprep.subr.bf16.mxu0 0
        %1514 = vmatpush1.bf16.msra.mxu0 0
        %1515 = vmatprep.subr.bf16.mxu0 0
        %1516 = vmatpush1.bf16.msra.mxu0 0
        %1517 = vmatprep.subr.bf16.mxu0 0
        %1518 = vmatpush1.bf16.msra.mxu0 0
        %1519 = vmatprep.subr.bf16.mxu0 0
        %1520 = vmatpush1.bf16.msra.mxu0 0
        %1521 = vmatprep.mubr.bf16.mxu0 0
        %1522 = vmatmul.mubr.bf16.gmra.mrb[0].mxu0 %v1487
        %v1523 = vpop.f32.mrb[0].mxu0
        %v1524 = vadd.f32 0.0, %v1523
        %v1525 = vpop.f32.mrb[0].mxu0
        %v1526 = vpop.f32.mrb[0].mxu0
        %v1527 = vadd.f32 0.0, %v1526
        %v1528 = vpop.f32.mrb[0].mxu0
        %1529 = vdwg.mxu0
        %v1530 = vpack.c.bf16 %v1383, %v1380
        %v1531 = vpack.c.bf16 %v1431, %v1428
        %v1532 = vpack.c.bf16 %v1479, %v1476
        %v1533 = vpack.c.bf16 %v1527, %v1524
        %s1534 = scalar_lea.vmem [#allocation7], 8
        %v1535 = vld [vmem:[%s1534] sm:$0xf]
        %v1536 = vld [vmem:[%s1534 + $0x4] sm:$0xf]
        %v1539 = vunpack.c.l.b16 %v1535
        %v1540 = vunpack.c.l.b16 %v1536
        %v1541 = vpack.c.b16 %v1540, %v1539
        %v1544 = vsel %vm571, %v1530, 0
        %v1547 = vsel %vm571, %v1531, 0
        %v1550 = vsel %vm571, %v1532, 0
        %v1553 = vsel %vm571, %v1533, 0
        %1555 = vmatprep.subr.bf16.mxu0 0
        %1556 = vmatpush1.bf16.msra.mxu0 %v1541
        %1557 = vmatprep.subr.bf16.mxu0 0
        %1558 = vmatpush1.bf16.msra.mxu0 0
        %1559 = vmatprep.subr.bf16.mxu0 0
        %1560 = vmatpush1.bf16.msra.mxu0 0
        %1561 = vmatprep.subr.bf16.mxu0 0
        %1562 = vmatpush1.bf16.msra.mxu0 0
        %1563 = vmatprep.subr.bf16.mxu0 0
        %1564 = vmatpush1.bf16.msra.mxu0 0
        %1565 = vmatprep.subr.bf16.mxu0 0
        %1566 = vmatpush1.bf16.msra.mxu0 0
        %1567 = vmatprep.subr.bf16.mxu0 0
        %1568 = vmatpush1.bf16.msra.mxu0 0
        %1569 = vmatprep.subr.bf16.mxu0 0
        %1570 = vmatpush1.bf16.msra.mxu0 0
        %1571 = vmatprep.subr.bf16.mxu0 0
        %1572 = vmatpush1.bf16.msra.mxu0 0
        %1573 = vmatprep.subr.bf16.mxu0 0
        %1574 = vmatpush1.bf16.msra.mxu0 0
        %1575 = vmatprep.subr.bf16.mxu0 0
        %1576 = vmatpush1.bf16.msra.mxu0 0
        %1577 = vmatprep.subr.bf16.mxu0 0
        %1578 = vmatpush1.bf16.msra.mxu0 0
        %1579 = vmatprep.subr.bf16.mxu0 0
        %1580 = vmatpush1.bf16.msra.mxu0 0
        %1581 = vmatprep.subr.bf16.mxu0 0
        %1582 = vmatpush1.bf16.msra.mxu0 0
        %1583 = vmatprep.subr.bf16.mxu0 0
        %1584 = vmatpush1.bf16.msra.mxu0 0
        %1585 = vmatprep.subr.bf16.mxu0 0
        %1586 = vmatpush1.bf16.msra.mxu0 0
        %1587 = vmatprep.mubr.bf16.mxu0 0
        %1588 = vmatmul.mubr.bf16.gmra.mrb[0].mxu0 %v1544
        %v1589 = vpop.f32.mrb[0].mxu0
        %v1590 = vadd.f32 0.0, %v1589
        %v1591 = vpop.f32.mrb[0].mxu0
        %v1592 = vpop.f32.mrb[0].mxu0
        %v1593 = vadd.f32 0.0, %v1592
        %v1594 = vpop.f32.mrb[0].mxu0
        %1595 = vmatprep.mubr.bf16.mxu0 0
        %1596 = vmatmul.mubr.bf16.gmra.mrb[0].mxu0 %v1547
        %v1597 = vpop.f32.mrb[0].mxu0
        %v1598 = vadd.f32 0.0, %v1597
        %v1599 = vpop.f32.mrb[0].mxu0
        %v1600 = vpop.f32.mrb[0].mxu0
        %v1601 = vadd.f32 0.0, %v1600
        %v1602 = vpop.f32.mrb[0].mxu0
        %1603 = vmatprep.mubr.bf16.mxu0 0
        %1604 = vmatmul.mubr.bf16.gmra.mrb[0].mxu0 %v1550
        %v1605 = vpop.f32.mrb[0].mxu0
        %v1606 = vadd.f32 0.0, %v1605
        %v1607 = vpop.f32.mrb[0].mxu0
        %v1608 = vpop.f32.mrb[0].mxu0
        %v1609 = vadd.f32 0.0, %v1608
        %v1610 = vpop.f32.mrb[0].mxu0
        %1611 = vmatprep.mubr.bf16.mxu0 0
        %1612 = vmatmul.mubr.bf16.gmra.mrb[0].mxu0 %v1553
        %v1613 = vpop.f32.mrb[0].mxu0
        %v1614 = vadd.f32 0.0, %v1613
        %v1615 = vpop.f32.mrb[0].mxu0
        %v1616 = vpop.f32.mrb[0].mxu0
        %v1617 = vadd.f32 0.0, %v1616
        %v1618 = vpop.f32.mrb[0].mxu0
        %1619 = vdwg.mxu0
        %v1622 = vunpack.c.l.b16 %v1032
        %v1623 = vunpack.c.l.b16 %v1033
        %v1624 = vpack.c.b16 %v1623, %v1622
        %v1627 = vsel %vm571, %v1028, 0
        %v1630 = vsel %vm571, %v1029, 0
        %v1633 = vsel %vm571, %v1030, 0
        %v1636 = vsel %vm571, %v1031, 0
        %1638 = vmatprep.subr.bf16.mxu0 0
        %1639 = vmatpush1.bf16.msra.mxu0 %v1624
        %1640 = vmatprep.subr.bf16.mxu0 0
        %1641 = vmatpush1.bf16.msra.mxu0 0
        %1642 = vmatprep.subr.bf16.mxu0 0
        %1643 = vmatpush1.bf16.msra.mxu0 0
        %1644 = vmatprep.subr.bf16.mxu0 0
        %1645 = vmatpush1.bf16.msra.mxu0 0
        %1646 = vmatprep.subr.bf16.mxu0 0
        %1647 = vmatpush1.bf16.msra.mxu0 0
        %1648 = vmatprep.subr.bf16.mxu0 0
        %1649 = vmatpush1.bf16.msra.mxu0 0
        %1650 = vmatprep.subr.bf16.mxu0 0
        %1651 = vmatpush1.bf16.msra.mxu0 0
        %1652 = vmatprep.subr.bf16.mxu0 0
        %1653 = vmatpush1.bf16.msra.mxu0 0
        %1654 = vmatprep.subr.bf16.mxu0 0
        %1655 = vmatpush1.bf16.msra.mxu0 0
        %1656 = vmatprep.subr.bf16.mxu0 0
        %1657 = vmatpush1.bf16.msra.mxu0 0
        %1658 = vmatprep.subr.bf16.mxu0 0
        %1659 = vmatpush1.bf16.msra.mxu0 0
        %1660 = vmatprep.subr.bf16.mxu0 0
        %1661 = vmatpush1.bf16.msra.mxu0 0
        %1662 = vmatprep.subr.bf16.mxu0 0
        %1663 = vmatpush1.bf16.msra.mxu0 0
        %1664 = vmatprep.subr.bf16.mxu0 0
        %1665 = vmatpush1.bf16.msra.mxu0 0
        %1666 = vmatprep.subr.bf16.mxu0 0
        %1667 = vmatpush1.bf16.msra.mxu0 0
        %1668 = vmatprep.subr.bf16.mxu0 0
        %1669 = vmatpush1.bf16.msra.mxu0 0
        %1670 = vmatprep.mubr.bf16.mxu0 0
        %1671 = vmatmul.mubr.bf16.gmra.mrb[0].mxu0 %v1627
        %v1672 = vpop.f32.mrb[0].mxu0
        %v1673 = vadd.f32 %v1590, %v1672
        %v1674 = vpop.f32.mrb[0].mxu0
        %v1675 = vpop.f32.mrb[0].mxu0
        %v1676 = vadd.f32 %v1593, %v1675
        %v1677 = vpop.f32.mrb[0].mxu0
        %1678 = vmatprep.mubr.bf16.mxu0 0
        %1679 = vmatmul.mubr.bf16.gmra.mrb[0].mxu0 %v1630
        %v1680 = vpop.f32.mrb[0].mxu0
        %v1681 = vadd.f32 %v1598, %v1680
        %v1682 = vpop.f32.mrb[0].mxu0
        %v1683 = vpop.f32.mrb[0].mxu0
        %v1684 = vadd.f32 %v1601, %v1683
        %v1685 = vpop.f32.mrb[0].mxu0
        %1686 = vmatprep.mubr.bf16.mxu0 0
        %1687 = vmatmul.mubr.bf16.gmra.mrb[0].mxu0 %v1633
        %v1688 = vpop.f32.mrb[0].mxu0
        %v1689 = vadd.f32 %v1606, %v1688
        %v1690 = vpop.f32.mrb[0].mxu0
        %v1691 = vpop.f32.mrb[0].mxu0
        %v1692 = vadd.f32 %v1609, %v1691
        %v1693 = vpop.f32.mrb[0].mxu0
        %1694 = vmatprep.mubr.bf16.mxu0 0
        %1695 = vmatmul.mubr.bf16.gmra.mrb[0].mxu0 %v1636
        %v1696 = vpop.f32.mrb[0].mxu0
        %v1697 = vadd.f32 %v1614, %v1696
        %v1698 = vpop.f32.mrb[0].mxu0
        %v1699 = vpop.f32.mrb[0].mxu0
        %v1700 = vadd.f32 %v1617, %v1699
        %v1701 = vpop.f32.mrb[0].mxu0
        %1702 = vdwg.mxu0
        %1703 = vrot.lane.b32.xlu0 %v559, 96
        %v1704 = vpop.permute.xlu0 %1703
        %1705 = vrot.lane.b32.xlu0 %v563, 96
        %v1706 = vpop.permute.xlu0 %1705
        %v1708 = vsel %vm571, %v1704, 0
        %v1711 = vsel %vm571, %v1706, 0
        %1713 = vmatprep.subr.bf16.mxu0 0
        %1714 = vmatpush1.bf16.xpose.msra.mxu0 %v1711
        %1715 = vmatprep.subr.bf16.mxu0 0
        %1716 = vmatpush1.bf16.xpose.msra.mxu0 0
        %1717 = vmatprep.subr.bf16.mxu0 0
        %1718 = vmatpush1.bf16.xpose.msra.mxu0 0
        %1719 = vmatprep.subr.bf16.mxu0 0
        %1720 = vmatpush1.bf16.xpose.msra.mxu0 0
        %1721 = vmatprep.subr.bf16.mxu0 0
        %1722 = vmatpush1.bf16.xpose.msra.mxu0 0
        %1723 = vmatprep.subr.bf16.mxu0 0
        %1724 = vmatpush1.bf16.xpose.msra.mxu0 0
        %1725 = vmatprep.subr.bf16.mxu0 0
        %1726 = vmatpush1.bf16.xpose.msra.mxu0 0
        %1727 = vmatprep.subr.bf16.mxu0 0
        %1728 = vmatpush1.bf16.xpose.msra.mxu0 0
        %1729 = vmatprep.subr.bf16.mxu0 0
        %1730 = vmatpush1.bf16.xpose.msra.mxu0 0
        %1731 = vmatprep.subr.bf16.mxu0 0
        %1732 = vmatpush1.bf16.xpose.msra.mxu0 0
        %1733 = vmatprep.subr.bf16.mxu0 0
        %1734 = vmatpush1.bf16.xpose.msra.mxu0 0
        %1735 = vmatprep.subr.bf16.mxu0 0
        %1736 = vmatpush1.bf16.xpose.msra.mxu0 0
        %1737 = vmatprep.subr.bf16.mxu0 0
        %1738 = vmatpush1.bf16.xpose.msra.mxu0 0
        %1739 = vmatprep.subr.bf16.mxu0 0
        %1740 = vmatpush1.bf16.xpose.msra.mxu0 0
        %1741 = vmatprep.subr.bf16.mxu0 0
        %1742 = vmatpush1.bf16.xpose.msra.mxu0 0
        %1743 = vmatprep.subr.bf16.mxu0 0
        %1744 = vmatpush1.bf16.xpose.msra.mxu0 0
        %1745 = vmatprep.mubr.bf16.mxu0 0
        %1746 = vmatmul.mubr.bf16.gmra.mrb[0].mxu0 %v1708
        %v1747 = vpop.f32.mrb[0].mxu0
        %v1748 = vadd.f32 0.0, %v1747
        %v1749 = vpop.f32.mrb[0].mxu0
        %v1750 = vpop.f32.mrb[0].mxu0
        %v1751 = vadd.f32 0.0, %v1750
        %v1752 = vpop.f32.mrb[0].mxu0
        %1753 = vdwg.mxu0
        %1754 = vrot.lane.b32.xlu0 %v560, 96
        %v1755 = vpop.permute.xlu0 %1754
        %1756 = vrot.lane.b32.xlu0 %v564, 96
        %v1757 = vpop.permute.xlu0 %1756
        %v1759 = vsel %vm571, %v1755, 0
        %v1762 = vsel %vm571, %v1757, 0
        %1764 = vmatprep.subr.bf16.mxu0 0
        %1765 = vmatpush1.bf16.xpose.msra.mxu0 %v1762
        %1766 = vmatprep.subr.bf16.mxu0 0
        %1767 = vmatpush1.bf16.xpose.msra.mxu0 0
        %1768 = vmatprep.subr.bf16.mxu0 0
        %1769 = vmatpush1.bf16.xpose.msra.mxu0 0
        %1770 = vmatprep.subr.bf16.mxu0 0
        %1771 = vmatpush1.bf16.xpose.msra.mxu0 0
        %1772 = vmatprep.subr.bf16.mxu0 0
        %1773 = vmatpush1.bf16.xpose.msra.mxu0 0
        %1774 = vmatprep.subr.bf16.mxu0 0
        %1775 = vmatpush1.bf16.xpose.msra.mxu0 0
        %1776 = vmatprep.subr.bf16.mxu0 0
        %1777 = vmatpush1.bf16.xpose.msra.mxu0 0
        %1778 = vmatprep.subr.bf16.mxu0 0
        %1779 = vmatpush1.bf16.xpose.msra.mxu0 0
        %1780 = vmatprep.subr.bf16.mxu0 0
        %1781 = vmatpush1.bf16.xpose.msra.mxu0 0
        %1782 = vmatprep.subr.bf16.mxu0 0
        %1783 = vmatpush1.bf16.xpose.msra.mxu0 0
        %1784 = vmatprep.subr.bf16.mxu0 0
        %1785 = vmatpush1.bf16.xpose.msra.mxu0 0
        %1786 = vmatprep.subr.bf16.mxu0 0
        %1787 = vmatpush1.bf16.xpose.msra.mxu0 0
        %1788 = vmatprep.subr.bf16.mxu0 0
        %1789 = vmatpush1.bf16.xpose.msra.mxu0 0
        %1790 = vmatprep.subr.bf16.mxu0 0
        %1791 = vmatpush1.bf16.xpose.msra.mxu0 0
        %1792 = vmatprep.subr.bf16.mxu0 0
        %1793 = vmatpush1.bf16.xpose.msra.mxu0 0
        %1794 = vmatprep.subr.bf16.mxu0 0
        %1795 = vmatpush1.bf16.xpose.msra.mxu0 0
        %1796 = vmatprep.mubr.bf16.mxu0 0
        %1797 = vmatmul.mubr.bf16.gmra.mrb[0].mxu0 %v1759
        %v1798 = vpop.f32.mrb[0].mxu0
        %v1799 = vadd.f32 0.0, %v1798
        %v1800 = vpop.f32.mrb[0].mxu0
        %v1801 = vpop.f32.mrb[0].mxu0
        %v1802 = vadd.f32 0.0, %v1801
        %v1803 = vpop.f32.mrb[0].mxu0
        %1804 = vdwg.mxu0
        %1805 = vrot.lane.b32.xlu0 %v561, 96
        %v1806 = vpop.permute.xlu0 %1805
        %1807 = vrot.lane.b32.xlu0 %v565, 96
        %v1808 = vpop.permute.xlu0 %1807
        %v1810 = vsel %vm571, %v1806, 0
        %v1813 = vsel %vm571, %v1808, 0
        %1815 = vmatprep.subr.bf16.mxu0 0
        %1816 = vmatpush1.bf16.xpose.msra.mxu0 %v1813
        %1817 = vmatprep.subr.bf16.mxu0 0
        %1818 = vmatpush1.bf16.xpose.msra.mxu0 0
        %1819 = vmatprep.subr.bf16.mxu0 0
        %1820 = vmatpush1.bf16.xpose.msra.mxu0 0
        %1821 = vmatprep.subr.bf16.mxu0 0
        %1822 = vmatpush1.bf16.xpose.msra.mxu0 0
        %1823 = vmatprep.subr.bf16.mxu0 0
        %1824 = vmatpush1.bf16.xpose.msra.mxu0 0
        %1825 = vmatprep.subr.bf16.mxu0 0
        %1826 = vmatpush1.bf16.xpose.msra.mxu0 0
        %1827 = vmatprep.subr.bf16.mxu0 0
        %1828 = vmatpush1.bf16.xpose.msra.mxu0 0
        %1829 = vmatprep.subr.bf16.mxu0 0
        %1830 = vmatpush1.bf16.xpose.msra.mxu0 0
        %1831 = vmatprep.subr.bf16.mxu0 0
        %1832 = vmatpush1.bf16.xpose.msra.mxu0 0
        %1833 = vmatprep.subr.bf16.mxu0 0
        %1834 = vmatpush1.bf16.xpose.msra.mxu0 0
        %1835 = vmatprep.subr.bf16.mxu0 0
        %1836 = vmatpush1.bf16.xpose.msra.mxu0 0
        %1837 = vmatprep.subr.bf16.mxu0 0
        %1838 = vmatpush1.bf16.xpose.msra.mxu0 0
        %1839 = vmatprep.subr.bf16.mxu0 0
        %1840 = vmatpush1.bf16.xpose.msra.mxu0 0
        %1841 = vmatprep.subr.bf16.mxu0 0
        %1842 = vmatpush1.bf16.xpose.msra.mxu0 0
        %1843 = vmatprep.subr.bf16.mxu0 0
        %1844 = vmatpush1.bf16.xpose.msra.mxu0 0
        %1845 = vmatprep.subr.bf16.mxu0 0
        %1846 = vmatpush1.bf16.xpose.msra.mxu0 0
        %1847 = vmatprep.mubr.bf16.mxu0 0
        %1848 = vmatmul.mubr.bf16.gmra.mrb[0].mxu0 %v1810
        %v1849 = vpop.f32.mrb[0].mxu0
        %v1850 = vadd.f32 0.0, %v1849
        %v1851 = vpop.f32.mrb[0].mxu0
        %v1852 = vpop.f32.mrb[0].mxu0
        %v1853 = vadd.f32 0.0, %v1852
        %v1854 = vpop.f32.mrb[0].mxu0
        %1855 = vdwg.mxu0
        %1856 = vrot.lane.b32.xlu0 %v562, 96
        %v1857 = vpop.permute.xlu0 %1856
        %1858 = vrot.lane.b32.xlu0 %v566, 96
        %v1859 = vpop.permute.xlu0 %1858
        %v1861 = vsel %vm571, %v1857, 0
        %v1864 = vsel %vm571, %v1859, 0
        %1866 = vmatprep.subr.bf16.mxu0 0
        %1867 = vmatpush1.bf16.xpose.msra.mxu0 %v1864
        %1868 = vmatprep.subr.bf16.mxu0 0
        %1869 = vmatpush1.bf16.xpose.msra.mxu0 0
        %1870 = vmatprep.subr.bf16.mxu0 0
        %1871 = vmatpush1.bf16.xpose.msra.mxu0 0
        %1872 = vmatprep.subr.bf16.mxu0 0
        %1873 = vmatpush1.bf16.xpose.msra.mxu0 0
        %1874 = vmatprep.subr.bf16.mxu0 0
        %1875 = vmatpush1.bf16.xpose.msra.mxu0 0
        %1876 = vmatprep.subr.bf16.mxu0 0
        %1877 = vmatpush1.bf16.xpose.msra.mxu0 0
        %1878 = vmatprep.subr.bf16.mxu0 0
        %1879 = vmatpush1.bf16.xpose.msra.mxu0 0
        %1880 = vmatprep.subr.bf16.mxu0 0
        %1881 = vmatpush1.bf16.xpose.msra.mxu0 0
        %1882 = vmatprep.subr.bf16.mxu0 0
        %1883 = vmatpush1.bf16.xpose.msra.mxu0 0
        %1884 = vmatprep.subr.bf16.mxu0 0
        %1885 = vmatpush1.bf16.xpose.msra.mxu0 0
        %1886 = vmatprep.subr.bf16.mxu0 0
        %1887 = vmatpush1.bf16.xpose.msra.mxu0 0
        %1888 = vmatprep.subr.bf16.mxu0 0
        %1889 = vmatpush1.bf16.xpose.msra.mxu0 0
        %1890 = vmatprep.subr.bf16.mxu0 0
        %1891 = vmatpush1.bf16.xpose.msra.mxu0 0
        %1892 = vmatprep.subr.bf16.mxu0 0
        %1893 = vmatpush1.bf16.xpose.msra.mxu0 0
        %1894 = vmatprep.subr.bf16.mxu0 0
        %1895 = vmatpush1.bf16.xpose.msra.mxu0 0
        %1896 = vmatprep.subr.bf16.mxu0 0
        %1897 = vmatpush1.bf16.xpose.msra.mxu0 0
        %1898 = vmatprep.mubr.bf16.mxu0 0
        %1899 = vmatmul.mubr.bf16.gmra.mrb[0].mxu0 %v1861
        %v1900 = vpop.f32.mrb[0].mxu0
        %v1901 = vadd.f32 0.0, %v1900
        %v1902 = vpop.f32.mrb[0].mxu0
        %v1903 = vpop.f32.mrb[0].mxu0
        %v1904 = vadd.f32 0.0, %v1903
        %v1905 = vpop.f32.mrb[0].mxu0
        %1906 = vdwg.mxu0
        %v1907 = vsel %vm571, %v1748, -inf
        %1908 = vmax.xlane.f32.xlu0 %v1907
        %v1909 = vpop.xlane.xlu0 %1908
        %v1910 = vsel %vm571, %v1751, -inf
        %1911 = vmax.xlane.f32.xlu0 %v1910
        %v1912 = vpop.xlane.xlu0 %1911
        %v1913 = vsel %vm571, %v1799, -inf
        %1914 = vmax.xlane.f32.xlu0 %v1913
        %v1915 = vpop.xlane.xlu0 %1914
        %v1916 = vsel %vm571, %v1802, -inf
        %1917 = vmax.xlane.f32.xlu0 %v1916
        %v1918 = vpop.xlane.xlu0 %1917
        %v1919 = vsel %vm571, %v1850, -inf
        %1920 = vmax.xlane.f32.xlu0 %v1919
        %v1921 = vpop.xlane.xlu0 %1920
        %v1922 = vsel %vm571, %v1853, -inf
        %1923 = vmax.xlane.f32.xlu0 %v1922
        %v1924 = vpop.xlane.xlu0 %1923
        %v1925 = vsel %vm571, %v1901, -inf
        %1926 = vmax.xlane.f32.xlu0 %v1925
        %v1927 = vpop.xlane.xlu0 %1926
        %v1928 = vsel %vm571, %v1904, -inf
        %1929 = vmax.xlane.f32.xlu0 %v1928
        %v1930 = vpop.xlane.xlu0 %1929
        %v1931 = vsub.f32 %v1748, %v1909
        %v1932 = vsub.f32 %v1751, %v1912
        %v1933 = vsub.f32 %v1799, %v1915
        %v1934 = vsub.f32 %v1802, %v1918
        %v1935 = vsub.f32 %v1850, %v1921
        %v1936 = vsub.f32 %v1853, %v1924
        %v1937 = vsub.f32 %v1901, %v1927
        %v1938 = vsub.f32 %v1904, %v1930
        %v1939 = vmul.f32 %v1931, 1.442695
        %v1940 = vpow.pop %v1939
        %v1941 = vmul.f32 %v1932, 1.442695
        %v1942 = vpow.pop %v1941
        %v1943 = vmul.f32 %v1933, 1.442695
        %v1944 = vpow.pop %v1943
        %v1945 = vmul.f32 %v1934, 1.442695
        %v1946 = vpow.pop %v1945
        %v1947 = vmul.f32 %v1935, 1.442695
        %v1948 = vpow.pop %v1947
        %v1949 = vmul.f32 %v1936, 1.442695
        %v1950 = vpow.pop %v1949
        %v1951 = vmul.f32 %v1937, 1.442695
        %v1952 = vpow.pop %v1951
        %v1953 = vmul.f32 %v1938, 1.442695
        %v1954 = vpow.pop %v1953
        %v1955 = vsel %vm571, %v1940, 0.0
        %1956 = vadd.xlane.f32.xlu0 %v1955
        %v1957 = vpop.xlane.xlu0 %1956
        %v1958 = vsel %vm571, %v1942, 0.0
        %1959 = vadd.xlane.f32.xlu0 %v1958
        %v1960 = vpop.xlane.xlu0 %1959
        %v1961 = vsel %vm571, %v1944, 0.0
        %1962 = vadd.xlane.f32.xlu0 %v1961
        %v1963 = vpop.xlane.xlu0 %1962
        %v1964 = vsel %vm571, %v1946, 0.0
        %1965 = vadd.xlane.f32.xlu0 %v1964
        %v1966 = vpop.xlane.xlu0 %1965
        %v1967 = vsel %vm571, %v1948, 0.0
        %1968 = vadd.xlane.f32.xlu0 %v1967
        %v1969 = vpop.xlane.xlu0 %1968
        %v1970 = vsel %vm571, %v1950, 0.0
        %1971 = vadd.xlane.f32.xlu0 %v1970
        %v1972 = vpop.xlane.xlu0 %1971
        %v1973 = vsel %vm571, %v1952, 0.0
        %1974 = vadd.xlane.f32.xlu0 %v1973
        %v1975 = vpop.xlane.xlu0 %1974
        %v1976 = vsel %vm571, %v1954, 0.0
        %1977 = vadd.xlane.f32.xlu0 %v1976
        %v1978 = vpop.xlane.xlu0 %1977
        %v1979 = vrcp.pop %v1957
        %v1980 = vrcp.pop %v1960
        %v1981 = vrcp.pop %v1963
        %v1982 = vrcp.pop %v1966
        %v1983 = vrcp.pop %v1969
        %v1984 = vrcp.pop %v1972
        %v1985 = vrcp.pop %v1975
        %v1986 = vrcp.pop %v1978
        %v1987 = vmul.f32 %v1940, %v1979
        %v1988 = vmul.f32 %v1942, %v1980
        %v1989 = vmul.f32 %v1944, %v1981
        %v1990 = vmul.f32 %v1946, %v1982
        %v1991 = vmul.f32 %v1948, %v1983
        %v1992 = vmul.f32 %v1950, %v1984
        %v1993 = vmul.f32 %v1952, %v1985
        %v1994 = vmul.f32 %v1954, %v1986
        %v1995 = vpack.c.bf16 %v1988, %v1987
        %v1996 = vpack.c.bf16 %v1990, %v1989
        %v1997 = vpack.c.bf16 %v1992, %v1991
        %v1998 = vpack.c.bf16 %v1994, %v1993
        %1999 = vrot.lane.b32.xlu0 %v567, 96
        %v2000 = vpop.permute.xlu0 %1999
        %v2003 = vsel %vm571, %v1995, 0
        %2005 = vmatprep.subr.bf16.mxu0 0
        %2006 = vmatpush1.bf16.msra.mxu0 %v2000
        %2007 = vmatprep.subr.bf16.mxu0 0
        %2008 = vmatpush1.bf16.msra.mxu0 0
        %2009 = vmatprep.subr.bf16.mxu0 0
        %2010 = vmatpush1.bf16.msra.mxu0 0
        %2011 = vmatprep.subr.bf16.mxu0 0
        %2012 = vmatpush1.bf16.msra.mxu0 0
        %2013 = vmatprep.subr.bf16.mxu0 0
        %2014 = vmatpush1.bf16.msra.mxu0 0
        %2015 = vmatprep.subr.bf16.mxu0 0
        %2016 = vmatpush1.bf16.msra.mxu0 0
        %2017 = vmatprep.subr.bf16.mxu0 0
        %2018 = vmatpush1.bf16.msra.mxu0 0
        %2019 = vmatprep.subr.bf16.mxu0 0
        %2020 = vmatpush1.bf16.msra.mxu0 0
        %2021 = vmatprep.subr.bf16.mxu0 0
        %2022 = vmatpush1.bf16.msra.mxu0 0
        %2023 = vmatprep.subr.bf16.mxu0 0
        %2024 = vmatpush1.bf16.msra.mxu0 0
        %2025 = vmatprep.subr.bf16.mxu0 0
        %2026 = vmatpush1.bf16.msra.mxu0 0
        %2027 = vmatprep.subr.bf16.mxu0 0
        %2028 = vmatpush1.bf16.msra.mxu0 0
        %2029 = vmatprep.subr.bf16.mxu0 0
        %2030 = vmatpush1.bf16.msra.mxu0 0
        %2031 = vmatprep.subr.bf16.mxu0 0
        %2032 = vmatpush1.bf16.msra.mxu0 0
        %2033 = vmatprep.subr.bf16.mxu0 0
        %2034 = vmatpush1.bf16.msra.mxu0 0
        %2035 = vmatprep.subr.bf16.mxu0 0
        %2036 = vmatpush1.bf16.msra.mxu0 0
        %2037 = vmatprep.mubr.bf16.mxu0 0
        %2038 = vmatmul.mubr.bf16.gmra.mrb[0].mxu0 %v2003
        %v2039 = vpop.f32.mrb[0].mxu0
        %v2040 = vadd.f32 0.0, %v2039
        %v2041 = vpop.f32.mrb[0].mxu0
        %v2042 = vpop.f32.mrb[0].mxu0
        %v2043 = vadd.f32 0.0, %v2042
        %v2044 = vpop.f32.mrb[0].mxu0
        %2045 = vdwg.mxu0
        %2046 = vrot.lane.b32.xlu0 %v568, 96
        %v2047 = vpop.permute.xlu0 %2046
        %v2050 = vsel %vm571, %v1996, 0
        %2052 = vmatprep.subr.bf16.mxu0 0
        %2053 = vmatpush1.bf16.msra.mxu0 %v2047
        %2054 = vmatprep.subr.bf16.mxu0 0
        %2055 = vmatpush1.bf16.msra.mxu0 0
        %2056 = vmatprep.subr.bf16.mxu0 0
        %2057 = vmatpush1.bf16.msra.mxu0 0
        %2058 = vmatprep.subr.bf16.mxu0 0
        %2059 = vmatpush1.bf16.msra.mxu0 0
        %2060 = vmatprep.subr.bf16.mxu0 0
        %2061 = vmatpush1.bf16.msra.mxu0 0
        %2062 = vmatprep.subr.bf16.mxu0 0
        %2063 = vmatpush1.bf16.msra.mxu0 0
        %2064 = vmatprep.subr.bf16.mxu0 0
        %2065 = vmatpush1.bf16.msra.mxu0 0
        %2066 = vmatprep.subr.bf16.mxu0 0
        %2067 = vmatpush1.bf16.msra.mxu0 0
        %2068 = vmatprep.subr.bf16.mxu0 0
        %2069 = vmatpush1.bf16.msra.mxu0 0
        %2070 = vmatprep.subr.bf16.mxu0 0
        %2071 = vmatpush1.bf16.msra.mxu0 0
        %2072 = vmatprep.subr.bf16.mxu0 0
        %2073 = vmatpush1.bf16.msra.mxu0 0
        %2074 = vmatprep.subr.bf16.mxu0 0
        %2075 = vmatpush1.bf16.msra.mxu0 0
        %2076 = vmatprep.subr.bf16.mxu0 0
        %2077 = vmatpush1.bf16.msra.mxu0 0
        %2078 = vmatprep.subr.bf16.mxu0 0
        %2079 = vmatpush1.bf16.msra.mxu0 0
        %2080 = vmatprep.subr.bf16.mxu0 0
        %2081 = vmatpush1.bf16.msra.mxu0 0
        %2082 = vmatprep.subr.bf16.mxu0 0
        %2083 = vmatpush1.bf16.msra.mxu0 0
        %2084 = vmatprep.mubr.bf16.mxu0 0
        %2085 = vmatmul.mubr.bf16.gmra.mrb[0].mxu0 %v2050
        %v2086 = vpop.f32.mrb[0].mxu0
        %v2087 = vadd.f32 0.0, %v2086
        %v2088 = vpop.f32.mrb[0].mxu0
        %v2089 = vpop.f32.mrb[0].mxu0
        %v2090 = vadd.f32 0.0, %v2089
        %v2091 = vpop.f32.mrb[0].mxu0
        %2092 = vdwg.mxu0
        %2093 = vrot.lane.b32.xlu0 %v569, 96
        %v2094 = vpop.permute.xlu0 %2093
        %v2097 = vsel %vm571, %v1997, 0
        %2099 = vmatprep.subr.bf16.mxu0 0
        %2100 = vmatpush1.bf16.msra.mxu0 %v2094
        %2101 = vmatprep.subr.bf16.mxu0 0
        %2102 = vmatpush1.bf16.msra.mxu0 0
        %2103 = vmatprep.subr.bf16.mxu0 0
        %2104 = vmatpush1.bf16.msra.mxu0 0
        %2105 = vmatprep.subr.bf16.mxu0 0
        %2106 = vmatpush1.bf16.msra.mxu0 0
        %2107 = vmatprep.subr.bf16.mxu0 0
        %2108 = vmatpush1.bf16.msra.mxu0 0
        %2109 = vmatprep.subr.bf16.mxu0 0
        %2110 = vmatpush1.bf16.msra.mxu0 0
        %2111 = vmatprep.subr.bf16.mxu0 0
        %2112 = vmatpush1.bf16.msra.mxu0 0
        %2113 = vmatprep.subr.bf16.mxu0 0
        %2114 = vmatpush1.bf16.msra.mxu0 0
        %2115 = vmatprep.subr.bf16.mxu0 0
        %2116 = vmatpush1.bf16.msra.mxu0 0
        %2117 = vmatprep.subr.bf16.mxu0 0
        %2118 = vmatpush1.bf16.msra.mxu0 0
        %2119 = vmatprep.subr.bf16.mxu0 0
        %2120 = vmatpush1.bf16.msra.mxu0 0
        %2121 = vmatprep.subr.bf16.mxu0 0
        %2122 = vmatpush1.bf16.msra.mxu0 0
        %2123 = vmatprep.subr.bf16.mxu0 0
        %2124 = vmatpush1.bf16.msra.mxu0 0
        %2125 = vmatprep.subr.bf16.mxu0 0
        %2126 = vmatpush1.bf16.msra.mxu0 0
        %2127 = vmatprep.subr.bf16.mxu0 0
        %2128 = vmatpush1.bf16.msra.mxu0 0
        %2129 = vmatprep.subr.bf16.mxu0 0
        %2130 = vmatpush1.bf16.msra.mxu0 0
        %2131 = vmatprep.mubr.bf16.mxu0 0
        %2132 = vmatmul.mubr.bf16.gmra.mrb[0].mxu0 %v2097
        %v2133 = vpop.f32.mrb[0].mxu0
        %v2134 = vadd.f32 0.0, %v2133
        %v2135 = vpop.f32.mrb[0].mxu0
        %v2136 = vpop.f32.mrb[0].mxu0
        %v2137 = vadd.f32 0.0, %v2136
        %v2138 = vpop.f32.mrb[0].mxu0
        %2139 = vdwg.mxu0
        %2140 = vrot.lane.b32.xlu0 %v570, 96
        %v2141 = vpop.permute.xlu0 %2140
        %v2144 = vsel %vm571, %v1998, 0
        %2146 = vmatprep.subr.bf16.mxu0 0
        %2147 = vmatpush1.bf16.msra.mxu0 %v2141
        %2148 = vmatprep.subr.bf16.mxu0 0
        %2149 = vmatpush1.bf16.msra.mxu0 0
        %2150 = vmatprep.subr.bf16.mxu0 0
        %2151 = vmatpush1.bf16.msra.mxu0 0
        %2152 = vmatprep.subr.bf16.mxu0 0
        %2153 = vmatpush1.bf16.msra.mxu0 0
        %2154 = vmatprep.subr.bf16.mxu0 0
        %2155 = vmatpush1.bf16.msra.mxu0 0
        %2156 = vmatprep.subr.bf16.mxu0 0
        %2157 = vmatpush1.bf16.msra.mxu0 0
        %2158 = vmatprep.subr.bf16.mxu0 0
        %2159 = vmatpush1.bf16.msra.mxu0 0
        %2160 = vmatprep.subr.bf16.mxu0 0
        %2161 = vmatpush1.bf16.msra.mxu0 0
        %2162 = vmatprep.subr.bf16.mxu0 0
        %2163 = vmatpush1.bf16.msra.mxu0 0
        %2164 = vmatprep.subr.bf16.mxu0 0
        %2165 = vmatpush1.bf16.msra.mxu0 0
        %2166 = vmatprep.subr.bf16.mxu0 0
        %2167 = vmatpush1.bf16.msra.mxu0 0
        %2168 = vmatprep.subr.bf16.mxu0 0
        %2169 = vmatpush1.bf16.msra.mxu0 0
        %2170 = vmatprep.subr.bf16.mxu0 0
        %2171 = vmatpush1.bf16.msra.mxu0 0
        %2172 = vmatprep.subr.bf16.mxu0 0
        %2173 = vmatpush1.bf16.msra.mxu0 0
        %2174 = vmatprep.subr.bf16.mxu0 0
        %2175 = vmatpush1.bf16.msra.mxu0 0
        %2176 = vmatprep.subr.bf16.mxu0 0
        %2177 = vmatpush1.bf16.msra.mxu0 0
        %2178 = vmatprep.mubr.bf16.mxu0 0
        %2179 = vmatmul.mubr.bf16.gmra.mrb[0].mxu0 %v2144
        %v2180 = vpop.f32.mrb[0].mxu0
        %v2181 = vadd.f32 0.0, %v2180
        %v2182 = vpop.f32.mrb[0].mxu0
        %v2183 = vpop.f32.mrb[0].mxu0
        %v2184 = vadd.f32 0.0, %v2183
        %v2185 = vpop.f32.mrb[0].mxu0
        %2186 = vdwg.mxu0
        %v2187 = vpack.c.bf16 %v2043, %v2040
        %v2188 = vpack.c.bf16 %v2090, %v2087
        %v2189 = vpack.c.bf16 %v2137, %v2134
        %v2190 = vpack.c.bf16 %v2184, %v2181
        %s2191 = scalar_lea.vmem [#allocation7], 16
        %v2192 = vld [vmem:[%s2191] sm:$0xf]
        %v2193 = vld [vmem:[%s2191 + $0x4] sm:$0xf]
        %v2196 = vunpack.c.l.b16 %v2192
        %v2197 = vunpack.c.l.b16 %v2193
        %v2198 = vpack.c.b16 %v2197, %v2196
        %v2201 = vsel %vm571, %v2187, 0
        %v2204 = vsel %vm571, %v2188, 0
        %v2207 = vsel %vm571, %v2189, 0
        %v2210 = vsel %vm571, %v2190, 0
        %2212 = vmatprep.subr.bf16.mxu0 0
        %2213 = vmatpush1.bf16.msra.mxu0 %v2198
        %2214 = vmatprep.subr.bf16.mxu0 0
        %2215 = vmatpush1.bf16.msra.mxu0 0
        %2216 = vmatprep.subr.bf16.mxu0 0
        %2217 = vmatpush1.bf16.msra.mxu0 0
        %2218 = vmatprep.subr.bf16.mxu0 0
        %2219 = vmatpush1.bf16.msra.mxu0 0
        %2220 = vmatprep.subr.bf16.mxu0 0
        %2221 = vmatpush1.bf16.msra.mxu0 0
        %2222 = vmatprep.subr.bf16.mxu0 0
        %2223 = vmatpush1.bf16.msra.mxu0 0
        %2224 = vmatprep.subr.bf16.mxu0 0
        %2225 = vmatpush1.bf16.msra.mxu0 0
        %2226 = vmatprep.subr.bf16.mxu0 0
        %2227 = vmatpush1.bf16.msra.mxu0 0
        %2228 = vmatprep.subr.bf16.mxu0 0
        %2229 = vmatpush1.bf16.msra.mxu0 0
        %2230 = vmatprep.subr.bf16.mxu0 0
        %2231 = vmatpush1.bf16.msra.mxu0 0
        %2232 = vmatprep.subr.bf16.mxu0 0
        %2233 = vmatpush1.bf16.msra.mxu0 0
        %2234 = vmatprep.subr.bf16.mxu0 0
        %2235 = vmatpush1.bf16.msra.mxu0 0
        %2236 = vmatprep.subr.bf16.mxu0 0
        %2237 = vmatpush1.bf16.msra.mxu0 0
        %2238 = vmatprep.subr.bf16.mxu0 0
        %2239 = vmatpush1.bf16.msra.mxu0 0
        %2240 = vmatprep.subr.bf16.mxu0 0
        %2241 = vmatpush1.bf16.msra.mxu0 0
        %2242 = vmatprep.subr.bf16.mxu0 0
        %2243 = vmatpush1.bf16.msra.mxu0 0
        %2244 = vmatprep.mubr.bf16.mxu0 0
        %2245 = vmatmul.mubr.bf16.gmra.mrb[0].mxu0 %v2201
        %v2246 = vpop.f32.mrb[0].mxu0
        %v2247 = vadd.f32 0.0, %v2246
        %v2248 = vpop.f32.mrb[0].mxu0
        %v2249 = vpop.f32.mrb[0].mxu0
        %v2250 = vadd.f32 0.0, %v2249
        %v2251 = vpop.f32.mrb[0].mxu0
        %2252 = vmatprep.mubr.bf16.mxu0 0
        %2253 = vmatmul.mubr.bf16.gmra.mrb[0].mxu0 %v2204
        %v2254 = vpop.f32.mrb[0].mxu0
        %v2255 = vadd.f32 0.0, %v2254
        %v2256 = vpop.f32.mrb[0].mxu0
        %v2257 = vpop.f32.mrb[0].mxu0
        %v2258 = vadd.f32 0.0, %v2257
        %v2259 = vpop.f32.mrb[0].mxu0
        %2260 = vmatprep.mubr.bf16.mxu0 0
        %2261 = vmatmul.mubr.bf16.gmra.mrb[0].mxu0 %v2207
        %v2262 = vpop.f32.mrb[0].mxu0
        %v2263 = vadd.f32 0.0, %v2262
        %v2264 = vpop.f32.mrb[0].mxu0
        %v2265 = vpop.f32.mrb[0].mxu0
        %v2266 = vadd.f32 0.0, %v2265
        %v2267 = vpop.f32.mrb[0].mxu0
        %2268 = vmatprep.mubr.bf16.mxu0 0
        %2269 = vmatmul.mubr.bf16.gmra.mrb[0].mxu0 %v2210
        %v2270 = vpop.f32.mrb[0].mxu0
        %v2271 = vadd.f32 0.0, %v2270
        %v2272 = vpop.f32.mrb[0].mxu0
        %v2273 = vpop.f32.mrb[0].mxu0
        %v2274 = vadd.f32 0.0, %v2273
        %v2275 = vpop.f32.mrb[0].mxu0
        %2276 = vdwg.mxu0
        %v2277 = vadd.f32 %v1673, %v2247
        %v2278 = vadd.f32 %v1676, %v2250
        %v2279 = vadd.f32 %v1681, %v2255
        %v2280 = vadd.f32 %v1684, %v2258
        %v2281 = vadd.f32 %v1689, %v2263
        %v2282 = vadd.f32 %v1692, %v2266
        %v2283 = vadd.f32 %v1697, %v2271
        %v2284 = vadd.f32 %v1700, %v2274
        %2285 = vrot.lane.b32.xlu0 %v559, 80
        %v2286 = vpop.permute.xlu0 %2285
        %2287 = vrot.lane.b32.xlu0 %v563, 80
        %v2288 = vpop.permute.xlu0 %2287
        %v2290 = vsel %vm571, %v2286, 0
        %v2293 = vsel %vm571, %v2288, 0
        %2295 = vmatprep.subr.bf16.mxu0 0
        %2296 = vmatpush1.bf16.xpose.msra.mxu0 %v2293
        %2297 = vmatprep.subr.bf16.mxu0 0
        %2298 = vmatpush1.bf16.xpose.msra.mxu0 0
        %2299 = vmatprep.subr.bf16.mxu0 0
        %2300 = vmatpush1.bf16.xpose.msra.mxu0 0
        %2301 = vmatprep.subr.bf16.mxu0 0
        %2302 = vmatpush1.bf16.xpose.msra.mxu0 0
        %2303 = vmatprep.subr.bf16.mxu0 0
        %2304 = vmatpush1.bf16.xpose.msra.mxu0 0
        %2305 = vmatprep.subr.bf16.mxu0 0
        %2306 = vmatpush1.bf16.xpose.msra.mxu0 0
        %2307 = vmatprep.subr.bf16.mxu0 0
        %2308 = vmatpush1.bf16.xpose.msra.mxu0 0
        %2309 = vmatprep.subr.bf16.mxu0 0
        %2310 = vmatpush1.bf16.xpose.msra.mxu0 0
        %2311 = vmatprep.subr.bf16.mxu0 0
        %2312 = vmatpush1.bf16.xpose.msra.mxu0 0
        %2313 = vmatprep.subr.bf16.mxu0 0
        %2314 = vmatpush1.bf16.xpose.msra.mxu0 0
        %2315 = vmatprep.subr.bf16.mxu0 0
        %2316 = vmatpush1.bf16.xpose.msra.mxu0 0
        %2317 = vmatprep.subr.bf16.mxu0 0
        %2318 = vmatpush1.bf16.xpose.msra.mxu0 0
        %2319 = vmatprep.subr.bf16.mxu0 0
        %2320 = vmatpush1.bf16.xpose.msra.mxu0 0
        %2321 = vmatprep.subr.bf16.mxu0 0
        %2322 = vmatpush1.bf16.xpose.msra.mxu0 0
        %2323 = vmatprep.subr.bf16.mxu0 0
        %2324 = vmatpush1.bf16.xpose.msra.mxu0 0
        %2325 = vmatprep.subr.bf16.mxu0 0
        %2326 = vmatpush1.bf16.xpose.msra.mxu0 0
        %2327 = vmatprep.mubr.bf16.mxu0 0
        %2328 = vmatmul.mubr.bf16.gmra.mrb[0].mxu0 %v2290
        %v2329 = vpop.f32.mrb[0].mxu0
        %v2330 = vadd.f32 0.0, %v2329
        %v2331 = vpop.f32.mrb[0].mxu0
        %v2332 = vpop.f32.mrb[0].mxu0
        %v2333 = vadd.f32 0.0, %v2332
        %v2334 = vpop.f32.mrb[0].mxu0
        %2335 = vdwg.mxu0
        %2336 = vrot.lane.b32.xlu0 %v560, 80
        %v2337 = vpop.permute.xlu0 %2336
        %2338 = vrot.lane.b32.xlu0 %v564, 80
        %v2339 = vpop.permute.xlu0 %2338
        %v2341 = vsel %vm571, %v2337, 0
        %v2344 = vsel %vm571, %v2339, 0
        %2346 = vmatprep.subr.bf16.mxu0 0
        %2347 = vmatpush1.bf16.xpose.msra.mxu0 %v2344
        %2348 = vmatprep.subr.bf16.mxu0 0
        %2349 = vmatpush1.bf16.xpose.msra.mxu0 0
        %2350 = vmatprep.subr.bf16.mxu0 0
        %2351 = vmatpush1.bf16.xpose.msra.mxu0 0
        %2352 = vmatprep.subr.bf16.mxu0 0
        %2353 = vmatpush1.bf16.xpose.msra.mxu0 0
        %2354 = vmatprep.subr.bf16.mxu0 0
        %2355 = vmatpush1.bf16.xpose.msra.mxu0 0
        %2356 = vmatprep.subr.bf16.mxu0 0
        %2357 = vmatpush1.bf16.xpose.msra.mxu0 0
        %2358 = vmatprep.subr.bf16.mxu0 0
        %2359 = vmatpush1.bf16.xpose.msra.mxu0 0
        %2360 = vmatprep.subr.bf16.mxu0 0
        %2361 = vmatpush1.bf16.xpose.msra.mxu0 0
        %2362 = vmatprep.subr.bf16.mxu0 0
        %2363 = vmatpush1.bf16.xpose.msra.mxu0 0
        %2364 = vmatprep.subr.bf16.mxu0 0
        %2365 = vmatpush1.bf16.xpose.msra.mxu0 0
        %2366 = vmatprep.subr.bf16.mxu0 0
        %2367 = vmatpush1.bf16.xpose.msra.mxu0 0
        %2368 = vmatprep.subr.bf16.mxu0 0
        %2369 = vmatpush1.bf16.xpose.msra.mxu0 0
        %2370 = vmatprep.subr.bf16.mxu0 0
        %2371 = vmatpush1.bf16.xpose.msra.mxu0 0
        %2372 = vmatprep.subr.bf16.mxu0 0
        %2373 = vmatpush1.bf16.xpose.msra.mxu0 0
        %2374 = vmatprep.subr.bf16.mxu0 0
        %2375 = vmatpush1.bf16.xpose.msra.mxu0 0
        %2376 = vmatprep.subr.bf16.mxu0 0
        %2377 = vmatpush1.bf16.xpose.msra.mxu0 0
        %2378 = vmatprep.mubr.bf16.mxu0 0
        %2379 = vmatmul.mubr.bf16.gmra.mrb[0].mxu0 %v2341
        %v2380 = vpop.f32.mrb[0].mxu0
        %v2381 = vadd.f32 0.0, %v2380
        %v2382 = vpop.f32.mrb[0].mxu0
        %v2383 = vpop.f32.mrb[0].mxu0
        %v2384 = vadd.f32 0.0, %v2383
        %v2385 = vpop.f32.mrb[0].mxu0
        %2386 = vdwg.mxu0
        %2387 = vrot.lane.b32.xlu0 %v561, 80
        %v2388 = vpop.permute.xlu0 %2387
        %2389 = vrot.lane.b32.xlu0 %v565, 80
        %v2390 = vpop.permute.xlu0 %2389
        %v2392 = vsel %vm571, %v2388, 0
        %v2395 = vsel %vm571, %v2390, 0
        %2397 = vmatprep.subr.bf16.mxu0 0
        %2398 = vmatpush1.bf16.xpose.msra.mxu0 %v2395
        %2399 = vmatprep.subr.bf16.mxu0 0
        %2400 = vmatpush1.bf16.xpose.msra.mxu0 0
        %2401 = vmatprep.subr.bf16.mxu0 0
        %2402 = vmatpush1.bf16.xpose.msra.mxu0 0
        %2403 = vmatprep.subr.bf16.mxu0 0
        %2404 = vmatpush1.bf16.xpose.msra.mxu0 0
        %2405 = vmatprep.subr.bf16.mxu0 0
        %2406 = vmatpush1.bf16.xpose.msra.mxu0 0
        %2407 = vmatprep.subr.bf16.mxu0 0
        %2408 = vmatpush1.bf16.xpose.msra.mxu0 0
        %2409 = vmatprep.subr.bf16.mxu0 0
        %2410 = vmatpush1.bf16.xpose.msra.mxu0 0
        %2411 = vmatprep.subr.bf16.mxu0 0
        %2412 = vmatpush1.bf16.xpose.msra.mxu0 0
        %2413 = vmatprep.subr.bf16.mxu0 0
        %2414 = vmatpush1.bf16.xpose.msra.mxu0 0
        %2415 = vmatprep.subr.bf16.mxu0 0
        %2416 = vmatpush1.bf16.xpose.msra.mxu0 0
        %2417 = vmatprep.subr.bf16.mxu0 0
        %2418 = vmatpush1.bf16.xpose.msra.mxu0 0
        %2419 = vmatprep.subr.bf16.mxu0 0
        %2420 = vmatpush1.bf16.xpose.msra.mxu0 0
        %2421 = vmatprep.subr.bf16.mxu0 0
        %2422 = vmatpush1.bf16.xpose.msra.mxu0 0
        %2423 = vmatprep.subr.bf16.mxu0 0
        %2424 = vmatpush1.bf16.xpose.msra.mxu0 0
        %2425 = vmatprep.subr.bf16.mxu0 0
        %2426 = vmatpush1.bf16.xpose.msra.mxu0 0
        %2427 = vmatprep.subr.bf16.mxu0 0
        %2428 = vmatpush1.bf16.xpose.msra.mxu0 0
        %2429 = vmatprep.mubr.bf16.mxu0 0
        %2430 = vmatmul.mubr.bf16.gmra.mrb[0].mxu0 %v2392
        %v2431 = vpop.f32.mrb[0].mxu0
        %v2432 = vadd.f32 0.0, %v2431
        %v2433 = vpop.f32.mrb[0].mxu0
        %v2434 = vpop.f32.mrb[0].mxu0
        %v2435 = vadd.f32 0.0, %v2434
        %v2436 = vpop.f32.mrb[0].mxu0
        %2437 = vdwg.mxu0
        %2438 = vrot.lane.b32.xlu0 %v562, 80
        %v2439 = vpop.permute.xlu0 %2438
        %2440 = vrot.lane.b32.xlu0 %v566, 80
        %v2441 = vpop.permute.xlu0 %2440
        %v2443 = vsel %vm571, %v2439, 0
        %v2446 = vsel %vm571, %v2441, 0
        %2448 = vmatprep.subr.bf16.mxu0 0
        %2449 = vmatpush1.bf16.xpose.msra.mxu0 %v2446
        %2450 = vmatprep.subr.bf16.mxu0 0
        %2451 = vmatpush1.bf16.xpose.msra.mxu0 0
        %2452 = vmatprep.subr.bf16.mxu0 0
        %2453 = vmatpush1.bf16.xpose.msra.mxu0 0
        %2454 = vmatprep.subr.bf16.mxu0 0
        %2455 = vmatpush1.bf16.xpose.msra.mxu0 0
        %2456 = vmatprep.subr.bf16.mxu0 0
        %2457 = vmatpush1.bf16.xpose.msra.mxu0 0
        %2458 = vmatprep.subr.bf16.mxu0 0
        %2459 = vmatpush1.bf16.xpose.msra.mxu0 0
        %2460 = vmatprep.subr.bf16.mxu0 0
        %2461 = vmatpush1.bf16.xpose.msra.mxu0 0
        %2462 = vmatprep.subr.bf16.mxu0 0
        %2463 = vmatpush1.bf16.xpose.msra.mxu0 0
        %2464 = vmatprep.subr.bf16.mxu0 0
        %2465 = vmatpush1.bf16.xpose.msra.mxu0 0
        %2466 = vmatprep.subr.bf16.mxu0 0
        %2467 = vmatpush1.bf16.xpose.msra.mxu0 0
        %2468 = vmatprep.subr.bf16.mxu0 0
        %2469 = vmatpush1.bf16.xpose.msra.mxu0 0
        %2470 = vmatprep.subr.bf16.mxu0 0
        %2471 = vmatpush1.bf16.xpose.msra.mxu0 0
        %2472 = vmatprep.subr.bf16.mxu0 0
        %2473 = vmatpush1.bf16.xpose.msra.mxu0 0
        %2474 = vmatprep.subr.bf16.mxu0 0
        %2475 = vmatpush1.bf16.xpose.msra.mxu0 0
        %2476 = vmatprep.subr.bf16.mxu0 0
        %2477 = vmatpush1.bf16.xpose.msra.mxu0 0
        %2478 = vmatprep.subr.bf16.mxu0 0
        %2479 = vmatpush1.bf16.xpose.msra.mxu0 0
        %2480 = vmatprep.mubr.bf16.mxu0 0
        %2481 = vmatmul.mubr.bf16.gmra.mrb[0].mxu0 %v2443
        %v2482 = vpop.f32.mrb[0].mxu0
        %v2483 = vadd.f32 0.0, %v2482
        %v2484 = vpop.f32.mrb[0].mxu0
        %v2485 = vpop.f32.mrb[0].mxu0
        %v2486 = vadd.f32 0.0, %v2485
        %v2487 = vpop.f32.mrb[0].mxu0
        %2488 = vdwg.mxu0
        %v2489 = vsel %vm571, %v2330, -inf
        %2490 = vmax.xlane.f32.xlu0 %v2489
        %v2491 = vpop.xlane.xlu0 %2490
        %v2492 = vsel %vm571, %v2333, -inf
        %2493 = vmax.xlane.f32.xlu0 %v2492
        %v2494 = vpop.xlane.xlu0 %2493
        %v2495 = vsel %vm571, %v2381, -inf
        %2496 = vmax.xlane.f32.xlu0 %v2495
        %v2497 = vpop.xlane.xlu0 %2496
        %v2498 = vsel %vm571, %v2384, -inf
        %2499 = vmax.xlane.f32.xlu0 %v2498
        %v2500 = vpop.xlane.xlu0 %2499
        %v2501 = vsel %vm571, %v2432, -inf
        %2502 = vmax.xlane.f32.xlu0 %v2501
        %v2503 = vpop.xlane.xlu0 %2502
        %v2504 = vsel %vm571, %v2435, -inf
        %2505 = vmax.xlane.f32.xlu0 %v2504
        %v2506 = vpop.xlane.xlu0 %2505
        %v2507 = vsel %vm571, %v2483, -inf
        %2508 = vmax.xlane.f32.xlu0 %v2507
        %v2509 = vpop.xlane.xlu0 %2508
        %v2510 = vsel %vm571, %v2486, -inf
        %2511 = vmax.xlane.f32.xlu0 %v2510
        %v2512 = vpop.xlane.xlu0 %2511
        %v2513 = vsub.f32 %v2330, %v2491
        %v2514 = vsub.f32 %v2333, %v2494
        %v2515 = vsub.f32 %v2381, %v2497
        %v2516 = vsub.f32 %v2384, %v2500
        %v2517 = vsub.f32 %v2432, %v2503
        %v2518 = vsub.f32 %v2435, %v2506
        %v2519 = vsub.f32 %v2483, %v2509
        %v2520 = vsub.f32 %v2486, %v2512
        %v2521 = vmul.f32 %v2513, 1.442695
        %v2522 = vpow.pop %v2521
        %v2523 = vmul.f32 %v2514, 1.442695
        %v2524 = vpow.pop %v2523
        %v2525 = vmul.f32 %v2515, 1.442695
        %v2526 = vpow.pop %v2525
        %v2527 = vmul.f32 %v2516, 1.442695
        %v2528 = vpow.pop %v2527
        %v2529 = vmul.f32 %v2517, 1.442695
        %v2530 = vpow.pop %v2529
        %v2531 = vmul.f32 %v2518, 1.442695
        %v2532 = vpow.pop %v2531
        %v2533 = vmul.f32 %v2519, 1.442695
        %v2534 = vpow.pop %v2533
        %v2535 = vmul.f32 %v2520, 1.442695
        %v2536 = vpow.pop %v2535
        %v2537 = vsel %vm571, %v2522, 0.0
        %2538 = vadd.xlane.f32.xlu0 %v2537
        %v2539 = vpop.xlane.xlu0 %2538
        %v2540 = vsel %vm571, %v2524, 0.0
        %2541 = vadd.xlane.f32.xlu0 %v2540
        %v2542 = vpop.xlane.xlu0 %2541
        %v2543 = vsel %vm571, %v2526, 0.0
        %2544 = vadd.xlane.f32.xlu0 %v2543
        %v2545 = vpop.xlane.xlu0 %2544
        %v2546 = vsel %vm571, %v2528, 0.0
        %2547 = vadd.xlane.f32.xlu0 %v2546
        %v2548 = vpop.xlane.xlu0 %2547
        %v2549 = vsel %vm571, %v2530, 0.0
        %2550 = vadd.xlane.f32.xlu0 %v2549
        %v2551 = vpop.xlane.xlu0 %2550
        %v2552 = vsel %vm571, %v2532, 0.0
        %2553 = vadd.xlane.f32.xlu0 %v2552
        %v2554 = vpop.xlane.xlu0 %2553
        %v2555 = vsel %vm571, %v2534, 0.0
        %2556 = vadd.xlane.f32.xlu0 %v2555
        %v2557 = vpop.xlane.xlu0 %2556
        %v2558 = vsel %vm571, %v2536, 0.0
        %2559 = vadd.xlane.f32.xlu0 %v2558
        %v2560 = vpop.xlane.xlu0 %2559
        %v2561 = vrcp.pop %v2539
        %v2562 = vrcp.pop %v2542
        %v2563 = vrcp.pop %v2545
        %v2564 = vrcp.pop %v2548
        %v2565 = vrcp.pop %v2551
        %v2566 = vrcp.pop %v2554
        %v2567 = vrcp.pop %v2557
        %v2568 = vrcp.pop %v2560
        %v2569 = vmul.f32 %v2522, %v2561
        %v2570 = vmul.f32 %v2524, %v2562
        %v2571 = vmul.f32 %v2526, %v2563
        %v2572 = vmul.f32 %v2528, %v2564
        %v2573 = vmul.f32 %v2530, %v2565
        %v2574 = vmul.f32 %v2532, %v2566
        %v2575 = vmul.f32 %v2534, %v2567
        %v2576 = vmul.f32 %v2536, %v2568
        %v2577 = vpack.c.bf16 %v2570, %v2569
        %v2578 = vpack.c.bf16 %v2572, %v2571
        %v2579 = vpack.c.bf16 %v2574, %v2573
        %v2580 = vpack.c.bf16 %v2576, %v2575
        %2581 = vrot.lane.b32.xlu0 %v567, 80
        %v2582 = vpop.permute.xlu0 %2581
        %v2585 = vsel %vm571, %v2577, 0
        %2587 = vmatprep.subr.bf16.mxu0 0
        %2588 = vmatpush1.bf16.msra.mxu0 %v2582
        %2589 = vmatprep.subr.bf16.mxu0 0
        %2590 = vmatpush1.bf16.msra.mxu0 0
        %2591 = vmatprep.subr.bf16.mxu0 0
        %2592 = vmatpush1.bf16.msra.mxu0 0
        %2593 = vmatprep.subr.bf16.mxu0 0
        %2594 = vmatpush1.bf16.msra.mxu0 0
        %2595 = vmatprep.subr.bf16.mxu0 0
        %2596 = vmatpush1.bf16.msra.mxu0 0
        %2597 = vmatprep.subr.bf16.mxu0 0
        %2598 = vmatpush1.bf16.msra.mxu0 0
        %2599 = vmatprep.subr.bf16.mxu0 0
        %2600 = vmatpush1.bf16.msra.mxu0 0
        %2601 = vmatprep.subr.bf16.mxu0 0
        %2602 = vmatpush1.bf16.msra.mxu0 0
        %2603 = vmatprep.subr.bf16.mxu0 0
        %2604 = vmatpush1.bf16.msra.mxu0 0
        %2605 = vmatprep.subr.bf16.mxu0 0
        %2606 = vmatpush1.bf16.msra.mxu0 0
        %2607 = vmatprep.subr.bf16.mxu0 0
        %2608 = vmatpush1.bf16.msra.mxu0 0
        %2609 = vmatprep.subr.bf16.mxu0 0
        %2610 = vmatpush1.bf16.msra.mxu0 0
        %2611 = vmatprep.subr.bf16.mxu0 0
        %2612 = vmatpush1.bf16.msra.mxu0 0
        %2613 = vmatprep.subr.bf16.mxu0 0
        %2614 = vmatpush1.bf16.msra.mxu0 0
        %2615 = vmatprep.subr.bf16.mxu0 0
        %2616 = vmatpush1.bf16.msra.mxu0 0
        %2617 = vmatprep.subr.bf16.mxu0 0
        %2618 = vmatpush1.bf16.msra.mxu0 0
        %2619 = vmatprep.mubr.bf16.mxu0 0
        %2620 = vmatmul.mubr.bf16.gmra.mrb[0].mxu0 %v2585
        %v2621 = vpop.f32.mrb[0].mxu0
        %v2622 = vadd.f32 0.0, %v2621
        %v2623 = vpop.f32.mrb[0].mxu0
        %v2624 = vpop.f32.mrb[0].mxu0
        %v2625 = vadd.f32 0.0, %v2624
        %v2626 = vpop.f32.mrb[0].mxu0
        %2627 = vdwg.mxu0
        %2628 = vrot.lane.b32.xlu0 %v568, 80
        %v2629 = vpop.permute.xlu0 %2628
        %v2632 = vsel %vm571, %v2578, 0
        %2634 = vmatprep.subr.bf16.mxu0 0
        %2635 = vmatpush1.bf16.msra.mxu0 %v2629
        %2636 = vmatprep.subr.bf16.mxu0 0
        %2637 = vmatpush1.bf16.msra.mxu0 0
        %2638 = vmatprep.subr.bf16.mxu0 0
        %2639 = vmatpush1.bf16.msra.mxu0 0
        %2640 = vmatprep.subr.bf16.mxu0 0
        %2641 = vmatpush1.bf16.msra.mxu0 0
        %2642 = vmatprep.subr.bf16.mxu0 0
        %2643 = vmatpush1.bf16.msra.mxu0 0
        %2644 = vmatprep.subr.bf16.mxu0 0
        %2645 = vmatpush1.bf16.msra.mxu0 0
        %2646 = vmatprep.subr.bf16.mxu0 0
        %2647 = vmatpush1.bf16.msra.mxu0 0
        %2648 = vmatprep.subr.bf16.mxu0 0
        %2649 = vmatpush1.bf16.msra.mxu0 0
        %2650 = vmatprep.subr.bf16.mxu0 0
        %2651 = vmatpush1.bf16.msra.mxu0 0
        %2652 = vmatprep.subr.bf16.mxu0 0
        %2653 = vmatpush1.bf16.msra.mxu0 0
        %2654 = vmatprep.subr.bf16.mxu0 0
        %2655 = vmatpush1.bf16.msra.mxu0 0
        %2656 = vmatprep.subr.bf16.mxu0 0
        %2657 = vmatpush1.bf16.msra.mxu0 0
        %2658 = vmatprep.subr.bf16.mxu0 0
        %2659 = vmatpush1.bf16.msra.mxu0 0
        %2660 = vmatprep.subr.bf16.mxu0 0
        %2661 = vmatpush1.bf16.msra.mxu0 0
        %2662 = vmatprep.subr.bf16.mxu0 0
        %2663 = vmatpush1.bf16.msra.mxu0 0
        %2664 = vmatprep.subr.bf16.mxu0 0
        %2665 = vmatpush1.bf16.msra.mxu0 0
        %2666 = vmatprep.mubr.bf16.mxu0 0
        %2667 = vmatmul.mubr.bf16.gmra.mrb[0].mxu0 %v2632
        %v2668 = vpop.f32.mrb[0].mxu0
        %v2669 = vadd.f32 0.0, %v2668
        %v2670 = vpop.f32.mrb[0].mxu0
        %v2671 = vpop.f32.mrb[0].mxu0
        %v2672 = vadd.f32 0.0, %v2671
        %v2673 = vpop.f32.mrb[0].mxu0
        %2674 = vdwg.mxu0
        %2675 = vrot.lane.b32.xlu0 %v569, 80
        %v2676 = vpop.permute.xlu0 %2675
        %v2679 = vsel %vm571, %v2579, 0
        %2681 = vmatprep.subr.bf16.mxu0 0
        %2682 = vmatpush1.bf16.msra.mxu0 %v2676
        %2683 = vmatprep.subr.bf16.mxu0 0
        %2684 = vmatpush1.bf16.msra.mxu0 0
        %2685 = vmatprep.subr.bf16.mxu0 0
        %2686 = vmatpush1.bf16.msra.mxu0 0
        %2687 = vmatprep.subr.bf16.mxu0 0
        %2688 = vmatpush1.bf16.msra.mxu0 0
        %2689 = vmatprep.subr.bf16.mxu0 0
        %2690 = vmatpush1.bf16.msra.mxu0 0
        %2691 = vmatprep.subr.bf16.mxu0 0
        %2692 = vmatpush1.bf16.msra.mxu0 0
        %2693 = vmatprep.subr.bf16.mxu0 0
        %2694 = vmatpush1.bf16.msra.mxu0 0
        %2695 = vmatprep.subr.bf16.mxu0 0
        %2696 = vmatpush1.bf16.msra.mxu0 0
        %2697 = vmatprep.subr.bf16.mxu0 0
        %2698 = vmatpush1.bf16.msra.mxu0 0
        %2699 = vmatprep.subr.bf16.mxu0 0
        %2700 = vmatpush1.bf16.msra.mxu0 0
        %2701 = vmatprep.subr.bf16.mxu0 0
        %2702 = vmatpush1.bf16.msra.mxu0 0
        %2703 = vmatprep.subr.bf16.mxu0 0
        %2704 = vmatpush1.bf16.msra.mxu0 0
        %2705 = vmatprep.subr.bf16.mxu0 0
        %2706 = vmatpush1.bf16.msra.mxu0 0
        %2707 = vmatprep.subr.bf16.mxu0 0
        %2708 = vmatpush1.bf16.msra.mxu0 0
        %2709 = vmatprep.subr.bf16.mxu0 0
        %2710 = vmatpush1.bf16.msra.mxu0 0
        %2711 = vmatprep.subr.bf16.mxu0 0
        %2712 = vmatpush1.bf16.msra.mxu0 0
        %2713 = vmatprep.mubr.bf16.mxu0 0
        %2714 = vmatmul.mubr.bf16.gmra.mrb[0].mxu0 %v2679
        %v2715 = vpop.f32.mrb[0].mxu0
        %v2716 = vadd.f32 0.0, %v2715
        %v2717 = vpop.f32.mrb[0].mxu0
        %v2718 = vpop.f32.mrb[0].mxu0
        %v2719 = vadd.f32 0.0, %v2718
        %v2720 = vpop.f32.mrb[0].mxu0
        %2721 = vdwg.mxu0
        %2722 = vrot.lane.b32.xlu0 %v570, 80
        %v2723 = vpop.permute.xlu0 %2722
        %v2726 = vsel %vm571, %v2580, 0
        %2728 = vmatprep.subr.bf16.mxu0 0
        %2729 = vmatpush1.bf16.msra.mxu0 %v2723
        %2730 = vmatprep.subr.bf16.mxu0 0
        %2731 = vmatpush1.bf16.msra.mxu0 0
        %2732 = vmatprep.subr.bf16.mxu0 0
        %2733 = vmatpush1.bf16.msra.mxu0 0
        %2734 = vmatprep.subr.bf16.mxu0 0
        %2735 = vmatpush1.bf16.msra.mxu0 0
        %2736 = vmatprep.subr.bf16.mxu0 0
        %2737 = vmatpush1.bf16.msra.mxu0 0
        %2738 = vmatprep.subr.bf16.mxu0 0
        %2739 = vmatpush1.bf16.msra.mxu0 0
        %2740 = vmatprep.subr.bf16.mxu0 0
        %2741 = vmatpush1.bf16.msra.mxu0 0
        %2742 = vmatprep.subr.bf16.mxu0 0
        %2743 = vmatpush1.bf16.msra.mxu0 0
        %2744 = vmatprep.subr.bf16.mxu0 0
        %2745 = vmatpush1.bf16.msra.mxu0 0
        %2746 = vmatprep.subr.bf16.mxu0 0
        %2747 = vmatpush1.bf16.msra.mxu0 0
        %2748 = vmatprep.subr.bf16.mxu0 0
        %2749 = vmatpush1.bf16.msra.mxu0 0
        %2750 = vmatprep.subr.bf16.mxu0 0
        %2751 = vmatpush1.bf16.msra.mxu0 0
        %2752 = vmatprep.subr.bf16.mxu0 0
        %2753 = vmatpush1.bf16.msra.mxu0 0
        %2754 = vmatprep.subr.bf16.mxu0 0
        %2755 = vmatpush1.bf16.msra.mxu0 0
        %2756 = vmatprep.subr.bf16.mxu0 0
        %2757 = vmatpush1.bf16.msra.mxu0 0
        %2758 = vmatprep.subr.bf16.mxu0 0
        %2759 = vmatpush1.bf16.msra.mxu0 0
        %2760 = vmatprep.mubr.bf16.mxu0 0
        %2761 = vmatmul.mubr.bf16.gmra.mrb[0].mxu0 %v2726
        %v2762 = vpop.f32.mrb[0].mxu0
        %v2763 = vadd.f32 0.0, %v2762
        %v2764 = vpop.f32.mrb[0].mxu0
        %v2765 = vpop.f32.mrb[0].mxu0
        %v2766 = vadd.f32 0.0, %v2765
        %v2767 = vpop.f32.mrb[0].mxu0
        %2768 = vdwg.mxu0
        %v2769 = vpack.c.bf16 %v2625, %v2622
        %v2770 = vpack.c.bf16 %v2672, %v2669
        %v2771 = vpack.c.bf16 %v2719, %v2716
        %v2772 = vpack.c.bf16 %v2766, %v2763
        %s2773 = scalar_lea.vmem [#allocation7], 24
        %v2774 = vld [vmem:[%s2773] sm:$0xf]
        %v2775 = vld [vmem:[%s2773 + $0x4] sm:$0xf]
        %v2778 = vunpack.c.l.b16 %v2774
        %v2779 = vunpack.c.l.b16 %v2775
        %v2780 = vpack.c.b16 %v2779, %v2778
        %v2783 = vsel %vm571, %v2769, 0
        %v2786 = vsel %vm571, %v2770, 0
        %v2789 = vsel %vm571, %v2771, 0
        %v2792 = vsel %vm571, %v2772, 0
        %2794 = vmatprep.subr.bf16.mxu0 0
        %2795 = vmatpush1.bf16.msra.mxu0 %v2780
        %2796 = vmatprep.subr.bf16.mxu0 0
        %2797 = vmatpush1.bf16.msra.mxu0 0
        %2798 = vmatprep.subr.bf16.mxu0 0
        %2799 = vmatpush1.bf16.msra.mxu0 0
        %2800 = vmatprep.subr.bf16.mxu0 0
        %2801 = vmatpush1.bf16.msra.mxu0 0
        %2802 = vmatprep.subr.bf16.mxu0 0
        %2803 = vmatpush1.bf16.msra.mxu0 0
        %2804 = vmatprep.subr.bf16.mxu0 0
        %2805 = vmatpush1.bf16.msra.mxu0 0
        %2806 = vmatprep.subr.bf16.mxu0 0
        %2807 = vmatpush1.bf16.msra.mxu0 0
        %2808 = vmatprep.subr.bf16.mxu0 0
        %2809 = vmatpush1.bf16.msra.mxu0 0
        %2810 = vmatprep.subr.bf16.mxu0 0
        %2811 = vmatpush1.bf16.msra.mxu0 0
        %2812 = vmatprep.subr.bf16.mxu0 0
        %2813 = vmatpush1.bf16.msra.mxu0 0
        %2814 = vmatprep.subr.bf16.mxu0 0
        %2815 = vmatpush1.bf16.msra.mxu0 0
        %2816 = vmatprep.subr.bf16.mxu0 0
        %2817 = vmatpush1.bf16.msra.mxu0 0
        %2818 = vmatprep.subr.bf16.mxu0 0
        %2819 = vmatpush1.bf16.msra.mxu0 0
        %2820 = vmatprep.subr.bf16.mxu0 0
        %2821 = vmatpush1.bf16.msra.mxu0 0
        %2822 = vmatprep.subr.bf16.mxu0 0
        %2823 = vmatpush1.bf16.msra.mxu0 0
        %2824 = vmatprep.subr.bf16.mxu0 0
        %2825 = vmatpush1.bf16.msra.mxu0 0
        %2826 = vmatprep.mubr.bf16.mxu0 0
        %2827 = vmatmul.mubr.bf16.gmra.mrb[0].mxu0 %v2783
        %v2828 = vpop.f32.mrb[0].mxu0
        %v2829 = vadd.f32 0.0, %v2828
        %v2830 = vpop.f32.mrb[0].mxu0
        %v2831 = vpop.f32.mrb[0].mxu0
        %v2832 = vadd.f32 0.0, %v2831
        %v2833 = vpop.f32.mrb[0].mxu0
        %2834 = vmatprep.mubr.bf16.mxu0 0
        %2835 = vmatmul.mubr.bf16.gmra.mrb[0].mxu0 %v2786
        %v2836 = vpop.f32.mrb[0].mxu0
        %v2837 = vadd.f32 0.0, %v2836
        %v2838 = vpop.f32.mrb[0].mxu0
        %v2839 = vpop.f32.mrb[0].mxu0
        %v2840 = vadd.f32 0.0, %v2839
        %v2841 = vpop.f32.mrb[0].mxu0
        %2842 = vmatprep.mubr.bf16.mxu0 0
        %2843 = vmatmul.mubr.bf16.gmra.mrb[0].mxu0 %v2789
        %v2844 = vpop.f32.mrb[0].mxu0
        %v2845 = vadd.f32 0.0, %v2844
        %v2846 = vpop.f32.mrb[0].mxu0
        %v2847 = vpop.f32.mrb[0].mxu0
        %v2848 = vadd.f32 0.0, %v2847
        %v2849 = vpop.f32.mrb[0].mxu0
        %2850 = vmatprep.mubr.bf16.mxu0 0
        %2851 = vmatmul.mubr.bf16.gmra.mrb[0].mxu0 %v2792
        %v2852 = vpop.f32.mrb[0].mxu0
        %v2853 = vadd.f32 0.0, %v2852
        %v2854 = vpop.f32.mrb[0].mxu0
        %v2855 = vpop.f32.mrb[0].mxu0
        %v2856 = vadd.f32 0.0, %v2855
        %v2857 = vpop.f32.mrb[0].mxu0
        %2858 = vdwg.mxu0
        %v2859 = vadd.f32 %v2277, %v2829
        %v2860 = vadd.f32 %v2278, %v2832
        %v2861 = vadd.f32 %v2279, %v2837
        %v2862 = vadd.f32 %v2280, %v2840
        %v2863 = vadd.f32 %v2281, %v2845
        %v2864 = vadd.f32 %v2282, %v2848
        %v2865 = vadd.f32 %v2283, %v2853
        %v2866 = vadd.f32 %v2284, %v2856
        %2867 = vrot.lane.b32.xlu0 %v559, 64
        %v2868 = vpop.permute.xlu0 %2867
        %2869 = vrot.lane.b32.xlu0 %v563, 64
        %v2870 = vpop.permute.xlu0 %2869
        %v2872 = vsel %vm571, %v2868, 0
        %v2875 = vsel %vm571, %v2870, 0
        %2877 = vmatprep.subr.bf16.mxu0 0
        %2878 = vmatpush1.bf16.xpose.msra.mxu0 %v2875
        %2879 = vmatprep.subr.bf16.mxu0 0
        %2880 = vmatpush1.bf16.xpose.msra.mxu0 0
        %2881 = vmatprep.subr.bf16.mxu0 0
        %2882 = vmatpush1.bf16.xpose.msra.mxu0 0
        %2883 = vmatprep.subr.bf16.mxu0 0
        %2884 = vmatpush1.bf16.xpose.msra.mxu0 0
        %2885 = vmatprep.subr.bf16.mxu0 0
        %2886 = vmatpush1.bf16.xpose.msra.mxu0 0
        %2887 = vmatprep.subr.bf16.mxu0 0
        %2888 = vmatpush1.bf16.xpose.msra.mxu0 0
        %2889 = vmatprep.subr.bf16.mxu0 0
        %2890 = vmatpush1.bf16.xpose.msra.mxu0 0
        %2891 = vmatprep.subr.bf16.mxu0 0
        %2892 = vmatpush1.bf16.xpose.msra.mxu0 0
        %2893 = vmatprep.subr.bf16.mxu0 0
        %2894 = vmatpush1.bf16.xpose.msra.mxu0 0
        %2895 = vmatprep.subr.bf16.mxu0 0
        %2896 = vmatpush1.bf16.xpose.msra.mxu0 0
        %2897 = vmatprep.subr.bf16.mxu0 0
        %2898 = vmatpush1.bf16.xpose.msra.mxu0 0
        %2899 = vmatprep.subr.bf16.mxu0 0
        %2900 = vmatpush1.bf16.xpose.msra.mxu0 0
        %2901 = vmatprep.subr.bf16.mxu0 0
        %2902 = vmatpush1.bf16.xpose.msra.mxu0 0
        %2903 = vmatprep.subr.bf16.mxu0 0
        %2904 = vmatpush1.bf16.xpose.msra.mxu0 0
        %2905 = vmatprep.subr.bf16.mxu0 0
        %2906 = vmatpush1.bf16.xpose.msra.mxu0 0
        %2907 = vmatprep.subr.bf16.mxu0 0
        %2908 = vmatpush1.bf16.xpose.msra.mxu0 0
        %2909 = vmatprep.mubr.bf16.mxu0 0
        %2910 = vmatmul.mubr.bf16.gmra.mrb[0].mxu0 %v2872
        %v2911 = vpop.f32.mrb[0].mxu0
        %v2912 = vadd.f32 0.0, %v2911
        %v2913 = vpop.f32.mrb[0].mxu0
        %v2914 = vpop.f32.mrb[0].mxu0
        %v2915 = vadd.f32 0.0, %v2914
        %v2916 = vpop.f32.mrb[0].mxu0
        %2917 = vdwg.mxu0
        %2918 = vrot.lane.b32.xlu0 %v560, 64
        %v2919 = vpop.permute.xlu0 %2918
        %2920 = vrot.lane.b32.xlu0 %v564, 64
        %v2921 = vpop.permute.xlu0 %2920
        %v2923 = vsel %vm571, %v2919, 0
        %v2926 = vsel %vm571, %v2921, 0
        %2928 = vmatprep.subr.bf16.mxu0 0
        %2929 = vmatpush1.bf16.xpose.msra.mxu0 %v2926
        %2930 = vmatprep.subr.bf16.mxu0 0
        %2931 = vmatpush1.bf16.xpose.msra.mxu0 0
        %2932 = vmatprep.subr.bf16.mxu0 0
        %2933 = vmatpush1.bf16.xpose.msra.mxu0 0
        %2934 = vmatprep.subr.bf16.mxu0 0
        %2935 = vmatpush1.bf16.xpose.msra.mxu0 0
        %2936 = vmatprep.subr.bf16.mxu0 0
        %2937 = vmatpush1.bf16.xpose.msra.mxu0 0
        %2938 = vmatprep.subr.bf16.mxu0 0
        %2939 = vmatpush1.bf16.xpose.msra.mxu0 0
        %2940 = vmatprep.subr.bf16.mxu0 0
        %2941 = vmatpush1.bf16.xpose.msra.mxu0 0
        %2942 = vmatprep.subr.bf16.mxu0 0
        %2943 = vmatpush1.bf16.xpose.msra.mxu0 0
        %2944 = vmatprep.subr.bf16.mxu0 0
        %2945 = vmatpush1.bf16.xpose.msra.mxu0 0
        %2946 = vmatprep.subr.bf16.mxu0 0
        %2947 = vmatpush1.bf16.xpose.msra.mxu0 0
        %2948 = vmatprep.subr.bf16.mxu0 0
        %2949 = vmatpush1.bf16.xpose.msra.mxu0 0
        %2950 = vmatprep.subr.bf16.mxu0 0
        %2951 = vmatpush1.bf16.xpose.msra.mxu0 0
        %2952 = vmatprep.subr.bf16.mxu0 0
        %2953 = vmatpush1.bf16.xpose.msra.mxu0 0
        %2954 = vmatprep.subr.bf16.mxu0 0
        %2955 = vmatpush1.bf16.xpose.msra.mxu0 0
        %2956 = vmatprep.subr.bf16.mxu0 0
        %2957 = vmatpush1.bf16.xpose.msra.mxu0 0
        %2958 = vmatprep.subr.bf16.mxu0 0
        %2959 = vmatpush1.bf16.xpose.msra.mxu0 0
        %2960 = vmatprep.mubr.bf16.mxu0 0
        %2961 = vmatmul.mubr.bf16.gmra.mrb[0].mxu0 %v2923
        %v2962 = vpop.f32.mrb[0].mxu0
        %v2963 = vadd.f32 0.0, %v2962
        %v2964 = vpop.f32.mrb[0].mxu0
        %v2965 = vpop.f32.mrb[0].mxu0
        %v2966 = vadd.f32 0.0, %v2965
        %v2967 = vpop.f32.mrb[0].mxu0
        %2968 = vdwg.mxu0
        %2969 = vrot.lane.b32.xlu0 %v561, 64
        %v2970 = vpop.permute.xlu0 %2969
        %2971 = vrot.lane.b32.xlu0 %v565, 64
        %v2972 = vpop.permute.xlu0 %2971
        %v2974 = vsel %vm571, %v2970, 0
        %v2977 = vsel %vm571, %v2972, 0
        %2979 = vmatprep.subr.bf16.mxu0 0
        %2980 = vmatpush1.bf16.xpose.msra.mxu0 %v2977
        %2981 = vmatprep.subr.bf16.mxu0 0
        %2982 = vmatpush1.bf16.xpose.msra.mxu0 0
        %2983 = vmatprep.subr.bf16.mxu0 0
        %2984 = vmatpush1.bf16.xpose.msra.mxu0 0
        %2985 = vmatprep.subr.bf16.mxu0 0
        %2986 = vmatpush1.bf16.xpose.msra.mxu0 0
        %2987 = vmatprep.subr.bf16.mxu0 0
        %2988 = vmatpush1.bf16.xpose.msra.mxu0 0
        %2989 = vmatprep.subr.bf16.mxu0 0
        %2990 = vmatpush1.bf16.xpose.msra.mxu0 0
        %2991 = vmatprep.subr.bf16.mxu0 0
        %2992 = vmatpush1.bf16.xpose.msra.mxu0 0
        %2993 = vmatprep.subr.bf16.mxu0 0
        %2994 = vmatpush1.bf16.xpose.msra.mxu0 0
        %2995 = vmatprep.subr.bf16.mxu0 0
        %2996 = vmatpush1.bf16.xpose.msra.mxu0 0
        %2997 = vmatprep.subr.bf16.mxu0 0
        %2998 = vmatpush1.bf16.xpose.msra.mxu0 0
        %2999 = vmatprep.subr.bf16.mxu0 0
        %3000 = vmatpush1.bf16.xpose.msra.mxu0 0
        %3001 = vmatprep.subr.bf16.mxu0 0
        %3002 = vmatpush1.bf16.xpose.msra.mxu0 0
        %3003 = vmatprep.subr.bf16.mxu0 0
        %3004 = vmatpush1.bf16.xpose.msra.mxu0 0
        %3005 = vmatprep.subr.bf16.mxu0 0
        %3006 = vmatpush1.bf16.xpose.msra.mxu0 0
        %3007 = vmatprep.subr.bf16.mxu0 0
        %3008 = vmatpush1.bf16.xpose.msra.mxu0 0
        %3009 = vmatprep.subr.bf16.mxu0 0
        %3010 = vmatpush1.bf16.xpose.msra.mxu0 0
        %3011 = vmatprep.mubr.bf16.mxu0 0
        %3012 = vmatmul.mubr.bf16.gmra.mrb[0].mxu0 %v2974
        %v3013 = vpop.f32.mrb[0].mxu0
        %v3014 = vadd.f32 0.0, %v3013
        %v3015 = vpop.f32.mrb[0].mxu0
        %v3016 = vpop.f32.mrb[0].mxu0
        %v3017 = vadd.f32 0.0, %v3016
        %v3018 = vpop.f32.mrb[0].mxu0
        %3019 = vdwg.mxu0
        %3020 = vrot.lane.b32.xlu0 %v562, 64
        %v3021 = vpop.permute.xlu0 %3020
        %3022 = vrot.lane.b32.xlu0 %v566, 64
        %v3023 = vpop.permute.xlu0 %3022
        %v3025 = vsel %vm571, %v3021, 0
        %v3028 = vsel %vm571, %v3023, 0
        %3030 = vmatprep.subr.bf16.mxu0 0
        %3031 = vmatpush1.bf16.xpose.msra.mxu0 %v3028
        %3032 = vmatprep.subr.bf16.mxu0 0
        %3033 = vmatpush1.bf16.xpose.msra.mxu0 0
        %3034 = vmatprep.subr.bf16.mxu0 0
        %3035 = vmatpush1.bf16.xpose.msra.mxu0 0
        %3036 = vmatprep.subr.bf16.mxu0 0
        %3037 = vmatpush1.bf16.xpose.msra.mxu0 0
        %3038 = vmatprep.subr.bf16.mxu0 0
        %3039 = vmatpush1.bf16.xpose.msra.mxu0 0
        %3040 = vmatprep.subr.bf16.mxu0 0
        %3041 = vmatpush1.bf16.xpose.msra.mxu0 0
        %3042 = vmatprep.subr.bf16.mxu0 0
        %3043 = vmatpush1.bf16.xpose.msra.mxu0 0
        %3044 = vmatprep.subr.bf16.mxu0 0
        %3045 = vmatpush1.bf16.xpose.msra.mxu0 0
        %3046 = vmatprep.subr.bf16.mxu0 0
        %3047 = vmatpush1.bf16.xpose.msra.mxu0 0
        %3048 = vmatprep.subr.bf16.mxu0 0
        %3049 = vmatpush1.bf16.xpose.msra.mxu0 0
        %3050 = vmatprep.subr.bf16.mxu0 0
        %3051 = vmatpush1.bf16.xpose.msra.mxu0 0
        %3052 = vmatprep.subr.bf16.mxu0 0
        %3053 = vmatpush1.bf16.xpose.msra.mxu0 0
        %3054 = vmatprep.subr.bf16.mxu0 0
        %3055 = vmatpush1.bf16.xpose.msra.mxu0 0
        %3056 = vmatprep.subr.bf16.mxu0 0
        %3057 = vmatpush1.bf16.xpose.msra.mxu0 0
        %3058 = vmatprep.subr.bf16.mxu0 0
        %3059 = vmatpush1.bf16.xpose.msra.mxu0 0
        %3060 = vmatprep.subr.bf16.mxu0 0
        %3061 = vmatpush1.bf16.xpose.msra.mxu0 0
        %3062 = vmatprep.mubr.bf16.mxu0 0
        %3063 = vmatmul.mubr.bf16.gmra.mrb[0].mxu0 %v3025
        %v3064 = vpop.f32.mrb[0].mxu0
        %v3065 = vadd.f32 0.0, %v3064
        %v3066 = vpop.f32.mrb[0].mxu0
        %v3067 = vpop.f32.mrb[0].mxu0
        %v3068 = vadd.f32 0.0, %v3067
        %v3069 = vpop.f32.mrb[0].mxu0
        %3070 = vdwg.mxu0
        %v3071 = vsel %vm571, %v2912, -inf
        %3072 = vmax.xlane.f32.xlu0 %v3071
        %v3073 = vpop.xlane.xlu0 %3072
        %v3074 = vsel %vm571, %v2915, -inf
        %3075 = vmax.xlane.f32.xlu0 %v3074
        %v3076 = vpop.xlane.xlu0 %3075
        %v3077 = vsel %vm571, %v2963, -inf
        %3078 = vmax.xlane.f32.xlu0 %v3077
        %v3079 = vpop.xlane.xlu0 %3078
        %v3080 = vsel %vm571, %v2966, -inf
        %3081 = vmax.xlane.f32.xlu0 %v3080
        %v3082 = vpop.xlane.xlu0 %3081
        %v3083 = vsel %vm571, %v3014, -inf
        %3084 = vmax.xlane.f32.xlu0 %v3083
        %v3085 = vpop.xlane.xlu0 %3084
        %v3086 = vsel %vm571, %v3017, -inf
        %3087 = vmax.xlane.f32.xlu0 %v3086
        %v3088 = vpop.xlane.xlu0 %3087
        %v3089 = vsel %vm571, %v3065, -inf
        %3090 = vmax.xlane.f32.xlu0 %v3089
        %v3091 = vpop.xlane.xlu0 %3090
        %v3092 = vsel %vm571, %v3068, -inf
        %3093 = vmax.xlane.f32.xlu0 %v3092
        %v3094 = vpop.xlane.xlu0 %3093
        %v3095 = vsub.f32 %v2912, %v3073
        %v3096 = vsub.f32 %v2915, %v3076
        %v3097 = vsub.f32 %v2963, %v3079
        %v3098 = vsub.f32 %v2966, %v3082
        %v3099 = vsub.f32 %v3014, %v3085
        %v3100 = vsub.f32 %v3017, %v3088
        %v3101 = vsub.f32 %v3065, %v3091
        %v3102 = vsub.f32 %v3068, %v3094
        %v3103 = vmul.f32 %v3095, 1.442695
        %v3104 = vpow.pop %v3103
        %v3105 = vmul.f32 %v3096, 1.442695
        %v3106 = vpow.pop %v3105
        %v3107 = vmul.f32 %v3097, 1.442695
        %v3108 = vpow.pop %v3107
        %v3109 = vmul.f32 %v3098, 1.442695
        %v3110 = vpow.pop %v3109
        %v3111 = vmul.f32 %v3099, 1.442695
        %v3112 = vpow.pop %v3111
        %v3113 = vmul.f32 %v3100, 1.442695
        %v3114 = vpow.pop %v3113
        %v3115 = vmul.f32 %v3101, 1.442695
        %v3116 = vpow.pop %v3115
        %v3117 = vmul.f32 %v3102, 1.442695
        %v3118 = vpow.pop %v3117
        %v3119 = vsel %vm571, %v3104, 0.0
        %3120 = vadd.xlane.f32.xlu0 %v3119
        %v3121 = vpop.xlane.xlu0 %3120
        %v3122 = vsel %vm571, %v3106, 0.0
        %3123 = vadd.xlane.f32.xlu0 %v3122
        %v3124 = vpop.xlane.xlu0 %3123
        %v3125 = vsel %vm571, %v3108, 0.0
        %3126 = vadd.xlane.f32.xlu0 %v3125
        %v3127 = vpop.xlane.xlu0 %3126
        %v3128 = vsel %vm571, %v3110, 0.0
        %3129 = vadd.xlane.f32.xlu0 %v3128
        %v3130 = vpop.xlane.xlu0 %3129
        %v3131 = vsel %vm571, %v3112, 0.0
        %3132 = vadd.xlane.f32.xlu0 %v3131
        %v3133 = vpop.xlane.xlu0 %3132
        %v3134 = vsel %vm571, %v3114, 0.0
        %3135 = vadd.xlane.f32.xlu0 %v3134
        %v3136 = vpop.xlane.xlu0 %3135
        %v3137 = vsel %vm571, %v3116, 0.0
        %3138 = vadd.xlane.f32.xlu0 %v3137
        %v3139 = vpop.xlane.xlu0 %3138
        %v3140 = vsel %vm571, %v3118, 0.0
        %3141 = vadd.xlane.f32.xlu0 %v3140
        %v3142 = vpop.xlane.xlu0 %3141
        %v3143 = vrcp.pop %v3121
        %v3144 = vrcp.pop %v3124
        %v3145 = vrcp.pop %v3127
        %v3146 = vrcp.pop %v3130
        %v3147 = vrcp.pop %v3133
        %v3148 = vrcp.pop %v3136
        %v3149 = vrcp.pop %v3139
        %v3150 = vrcp.pop %v3142
        %v3151 = vmul.f32 %v3104, %v3143
        %v3152 = vmul.f32 %v3106, %v3144
        %v3153 = vmul.f32 %v3108, %v3145
        %v3154 = vmul.f32 %v3110, %v3146
        %v3155 = vmul.f32 %v3112, %v3147
        %v3156 = vmul.f32 %v3114, %v3148
        %v3157 = vmul.f32 %v3116, %v3149
        %v3158 = vmul.f32 %v3118, %v3150
        %v3159 = vpack.c.bf16 %v3152, %v3151
        %v3160 = vpack.c.bf16 %v3154, %v3153
        %v3161 = vpack.c.bf16 %v3156, %v3155
        %v3162 = vpack.c.bf16 %v3158, %v3157
        %3163 = vrot.lane.b32.xlu0 %v567, 64
        %v3164 = vpop.permute.xlu0 %3163
        %v3167 = vsel %vm571, %v3159, 0
        %3169 = vmatprep.subr.bf16.mxu0 0
        %3170 = vmatpush1.bf16.msra.mxu0 %v3164
        %3171 = vmatprep.subr.bf16.mxu0 0
        %3172 = vmatpush1.bf16.msra.mxu0 0
        %3173 = vmatprep.subr.bf16.mxu0 0
        %3174 = vmatpush1.bf16.msra.mxu0 0
        %3175 = vmatprep.subr.bf16.mxu0 0
        %3176 = vmatpush1.bf16.msra.mxu0 0
        %3177 = vmatprep.subr.bf16.mxu0 0
        %3178 = vmatpush1.bf16.msra.mxu0 0
        %3179 = vmatprep.subr.bf16.mxu0 0
        %3180 = vmatpush1.bf16.msra.mxu0 0
        %3181 = vmatprep.subr.bf16.mxu0 0
        %3182 = vmatpush1.bf16.msra.mxu0 0
        %3183 = vmatprep.subr.bf16.mxu0 0
        %3184 = vmatpush1.bf16.msra.mxu0 0
        %3185 = vmatprep.subr.bf16.mxu0 0
        %3186 = vmatpush1.bf16.msra.mxu0 0
        %3187 = vmatprep.subr.bf16.mxu0 0
        %3188 = vmatpush1.bf16.msra.mxu0 0
        %3189 = vmatprep.subr.bf16.mxu0 0
        %3190 = vmatpush1.bf16.msra.mxu0 0
        %3191 = vmatprep.subr.bf16.mxu0 0
        %3192 = vmatpush1.bf16.msra.mxu0 0
        %3193 = vmatprep.subr.bf16.mxu0 0
        %3194 = vmatpush1.bf16.msra.mxu0 0
        %3195 = vmatprep.subr.bf16.mxu0 0
        %3196 = vmatpush1.bf16.msra.mxu0 0
        %3197 = vmatprep.subr.bf16.mxu0 0
        %3198 = vmatpush1.bf16.msra.mxu0 0
        %3199 = vmatprep.subr.bf16.mxu0 0
        %3200 = vmatpush1.bf16.msra.mxu0 0
        %3201 = vmatprep.mubr.bf16.mxu0 0
        %3202 = vmatmul.mubr.bf16.gmra.mrb[0].mxu0 %v3167
        %v3203 = vpop.f32.mrb[0].mxu0
        %v3204 = vadd.f32 0.0, %v3203
        %v3205 = vpop.f32.mrb[0].mxu0
        %v3206 = vpop.f32.mrb[0].mxu0
        %v3207 = vadd.f32 0.0, %v3206
        %v3208 = vpop.f32.mrb[0].mxu0
        %3209 = vdwg.mxu0
        %3210 = vrot.lane.b32.xlu0 %v568, 64
        %v3211 = vpop.permute.xlu0 %3210
        %v3214 = vsel %vm571, %v3160, 0
        %3216 = vmatprep.subr.bf16.mxu0 0
        %3217 = vmatpush1.bf16.msra.mxu0 %v3211
        %3218 = vmatprep.subr.bf16.mxu0 0
        %3219 = vmatpush1.bf16.msra.mxu0 0
        %3220 = vmatprep.subr.bf16.mxu0 0
        %3221 = vmatpush1.bf16.msra.mxu0 0
        %3222 = vmatprep.subr.bf16.mxu0 0
        %3223 = vmatpush1.bf16.msra.mxu0 0
        %3224 = vmatprep.subr.bf16.mxu0 0
        %3225 = vmatpush1.bf16.msra.mxu0 0
        %3226 = vmatprep.subr.bf16.mxu0 0
        %3227 = vmatpush1.bf16.msra.mxu0 0
        %3228 = vmatprep.subr.bf16.mxu0 0
        %3229 = vmatpush1.bf16.msra.mxu0 0
        %3230 = vmatprep.subr.bf16.mxu0 0
        %3231 = vmatpush1.bf16.msra.mxu0 0
        %3232 = vmatprep.subr.bf16.mxu0 0
        %3233 = vmatpush1.bf16.msra.mxu0 0
        %3234 = vmatprep.subr.bf16.mxu0 0
        %3235 = vmatpush1.bf16.msra.mxu0 0
        %3236 = vmatprep.subr.bf16.mxu0 0
        %3237 = vmatpush1.bf16.msra.mxu0 0
        %3238 = vmatprep.subr.bf16.mxu0 0
        %3239 = vmatpush1.bf16.msra.mxu0 0
        %3240 = vmatprep.subr.bf16.mxu0 0
        %3241 = vmatpush1.bf16.msra.mxu0 0
        %3242 = vmatprep.subr.bf16.mxu0 0
        %3243 = vmatpush1.bf16.msra.mxu0 0
        %3244 = vmatprep.subr.bf16.mxu0 0
        %3245 = vmatpush1.bf16.msra.mxu0 0
        %3246 = vmatprep.subr.bf16.mxu0 0
        %3247 = vmatpush1.bf16.msra.mxu0 0
        %3248 = vmatprep.mubr.bf16.mxu0 0
        %3249 = vmatmul.mubr.bf16.gmra.mrb[0].mxu0 %v3214
        %v3250 = vpop.f32.mrb[0].mxu0
        %v3251 = vadd.f32 0.0, %v3250
        %v3252 = vpop.f32.mrb[0].mxu0
        %v3253 = vpop.f32.mrb[0].mxu0
        %v3254 = vadd.f32 0.0, %v3253
        %v3255 = vpop.f32.mrb[0].mxu0
        %3256 = vdwg.mxu0
        %3257 = vrot.lane.b32.xlu0 %v569, 64
        %v3258 = vpop.permute.xlu0 %3257
        %v3261 = vsel %vm571, %v3161, 0
        %3263 = vmatprep.subr.bf16.mxu0 0
        %3264 = vmatpush1.bf16.msra.mxu0 %v3258
        %3265 = vmatprep.subr.bf16.mxu0 0
        %3266 = vmatpush1.bf16.msra.mxu0 0
        %3267 = vmatprep.subr.bf16.mxu0 0
        %3268 = vmatpush1.bf16.msra.mxu0 0
        %3269 = vmatprep.subr.bf16.mxu0 0
        %3270 = vmatpush1.bf16.msra.mxu0 0
        %3271 = vmatprep.subr.bf16.mxu0 0
        %3272 = vmatpush1.bf16.msra.mxu0 0
        %3273 = vmatprep.subr.bf16.mxu0 0
        %3274 = vmatpush1.bf16.msra.mxu0 0
        %3275 = vmatprep.subr.bf16.mxu0 0
        %3276 = vmatpush1.bf16.msra.mxu0 0
        %3277 = vmatprep.subr.bf16.mxu0 0
        %3278 = vmatpush1.bf16.msra.mxu0 0
        %3279 = vmatprep.subr.bf16.mxu0 0
        %3280 = vmatpush1.bf16.msra.mxu0 0
        %3281 = vmatprep.subr.bf16.mxu0 0
        %3282 = vmatpush1.bf16.msra.mxu0 0
        %3283 = vmatprep.subr.bf16.mxu0 0
        %3284 = vmatpush1.bf16.msra.mxu0 0
        %3285 = vmatprep.subr.bf16.mxu0 0
        %3286 = vmatpush1.bf16.msra.mxu0 0
        %3287 = vmatprep.subr.bf16.mxu0 0
        %3288 = vmatpush1.bf16.msra.mxu0 0
        %3289 = vmatprep.subr.bf16.mxu0 0
        %3290 = vmatpush1.bf16.msra.mxu0 0
        %3291 = vmatprep.subr.bf16.mxu0 0
        %3292 = vmatpush1.bf16.msra.mxu0 0
        %3293 = vmatprep.subr.bf16.mxu0 0
        %3294 = vmatpush1.bf16.msra.mxu0 0
        %3295 = vmatprep.mubr.bf16.mxu0 0
        %3296 = vmatmul.mubr.bf16.gmra.mrb[0].mxu0 %v3261
        %v3297 = vpop.f32.mrb[0].mxu0
        %v3298 = vadd.f32 0.0, %v3297
        %v3299 = vpop.f32.mrb[0].mxu0
        %v3300 = vpop.f32.mrb[0].mxu0
        %v3301 = vadd.f32 0.0, %v3300
        %v3302 = vpop.f32.mrb[0].mxu0
        %3303 = vdwg.mxu0
        %3304 = vrot.lane.b32.xlu0 %v570, 64
        %v3305 = vpop.permute.xlu0 %3304
        %v3308 = vsel %vm571, %v3162, 0
        %3310 = vmatprep.subr.bf16.mxu0 0
        %3311 = vmatpush1.bf16.msra.mxu0 %v3305
        %3312 = vmatprep.subr.bf16.mxu0 0
        %3313 = vmatpush1.bf16.msra.mxu0 0
        %3314 = vmatprep.subr.bf16.mxu0 0
        %3315 = vmatpush1.bf16.msra.mxu0 0
        %3316 = vmatprep.subr.bf16.mxu0 0
        %3317 = vmatpush1.bf16.msra.mxu0 0
        %3318 = vmatprep.subr.bf16.mxu0 0
        %3319 = vmatpush1.bf16.msra.mxu0 0
        %3320 = vmatprep.subr.bf16.mxu0 0
        %3321 = vmatpush1.bf16.msra.mxu0 0
        %3322 = vmatprep.subr.bf16.mxu0 0
        %3323 = vmatpush1.bf16.msra.mxu0 0
        %3324 = vmatprep.subr.bf16.mxu0 0
        %3325 = vmatpush1.bf16.msra.mxu0 0
        %3326 = vmatprep.subr.bf16.mxu0 0
        %3327 = vmatpush1.bf16.msra.mxu0 0
        %3328 = vmatprep.subr.bf16.mxu0 0
        %3329 = vmatpush1.bf16.msra.mxu0 0
        %3330 = vmatprep.subr.bf16.mxu0 0
        %3331 = vmatpush1.bf16.msra.mxu0 0
        %3332 = vmatprep.subr.bf16.mxu0 0
        %3333 = vmatpush1.bf16.msra.mxu0 0
        %3334 = vmatprep.subr.bf16.mxu0 0
        %3335 = vmatpush1.bf16.msra.mxu0 0
        %3336 = vmatprep.subr.bf16.mxu0 0
        %3337 = vmatpush1.bf16.msra.mxu0 0
        %3338 = vmatprep.subr.bf16.mxu0 0
        %3339 = vmatpush1.bf16.msra.mxu0 0
        %3340 = vmatprep.subr.bf16.mxu0 0
        %3341 = vmatpush1.bf16.msra.mxu0 0
        %3342 = vmatprep.mubr.bf16.mxu0 0
        %3343 = vmatmul.mubr.bf16.gmra.mrb[0].mxu0 %v3308
        %v3344 = vpop.f32.mrb[0].mxu0
        %v3345 = vadd.f32 0.0, %v3344
        %v3346 = vpop.f32.mrb[0].mxu0
        %v3347 = vpop.f32.mrb[0].mxu0
        %v3348 = vadd.f32 0.0, %v3347
        %v3349 = vpop.f32.mrb[0].mxu0
        %3350 = vdwg.mxu0
        %v3351 = vpack.c.bf16 %v3207, %v3204
        %v3352 = vpack.c.bf16 %v3254, %v3251
        %v3353 = vpack.c.bf16 %v3301, %v3298
        %v3354 = vpack.c.bf16 %v3348, %v3345
        %s3355 = scalar_lea.vmem [#allocation7], 32
        %v3356 = vld [vmem:[%s3355] sm:$0xf]
        %v3357 = vld [vmem:[%s3355 + $0x4] sm:$0xf]
        %v3360 = vunpack.c.l.b16 %v3356
        %v3361 = vunpack.c.l.b16 %v3357
        %v3362 = vpack.c.b16 %v3361, %v3360
        %v3365 = vsel %vm571, %v3351, 0
        %v3368 = vsel %vm571, %v3352, 0
        %v3371 = vsel %vm571, %v3353, 0
        %v3374 = vsel %vm571, %v3354, 0
        %3376 = vmatprep.subr.bf16.mxu0 0
        %3377 = vmatpush1.bf16.msra.mxu0 %v3362
        %3378 = vmatprep.subr.bf16.mxu0 0
        %3379 = vmatpush1.bf16.msra.mxu0 0
        %3380 = vmatprep.subr.bf16.mxu0 0
        %3381 = vmatpush1.bf16.msra.mxu0 0
        %3382 = vmatprep.subr.bf16.mxu0 0
        %3383 = vmatpush1.bf16.msra.mxu0 0
        %3384 = vmatprep.subr.bf16.mxu0 0
        %3385 = vmatpush1.bf16.msra.mxu0 0
        %3386 = vmatprep.subr.bf16.mxu0 0
        %3387 = vmatpush1.bf16.msra.mxu0 0
        %3388 = vmatprep.subr.bf16.mxu0 0
        %3389 = vmatpush1.bf16.msra.mxu0 0
        %3390 = vmatprep.subr.bf16.mxu0 0
        %3391 = vmatpush1.bf16.msra.mxu0 0
        %3392 = vmatprep.subr.bf16.mxu0 0
        %3393 = vmatpush1.bf16.msra.mxu0 0
        %3394 = vmatprep.subr.bf16.mxu0 0
        %3395 = vmatpush1.bf16.msra.mxu0 0
        %3396 = vmatprep.subr.bf16.mxu0 0
        %3397 = vmatpush1.bf16.msra.mxu0 0
        %3398 = vmatprep.subr.bf16.mxu0 0
        %3399 = vmatpush1.bf16.msra.mxu0 0
        %3400 = vmatprep.subr.bf16.mxu0 0
        %3401 = vmatpush1.bf16.msra.mxu0 0
        %3402 = vmatprep.subr.bf16.mxu0 0
        %3403 = vmatpush1.bf16.msra.mxu0 0
        %3404 = vmatprep.subr.bf16.mxu0 0
        %3405 = vmatpush1.bf16.msra.mxu0 0
        %3406 = vmatprep.subr.bf16.mxu0 0
        %3407 = vmatpush1.bf16.msra.mxu0 0
        %3408 = vmatprep.mubr.bf16.mxu0 0
        %3409 = vmatmul.mubr.bf16.gmra.mrb[0].mxu0 %v3365
        %v3410 = vpop.f32.mrb[0].mxu0
        %v3411 = vadd.f32 0.0, %v3410
        %v3412 = vpop.f32.mrb[0].mxu0
        %v3413 = vpop.f32.mrb[0].mxu0
        %v3414 = vadd.f32 0.0, %v3413
        %v3415 = vpop.f32.mrb[0].mxu0
        %3416 = vmatprep.mubr.bf16.mxu0 0
        %3417 = vmatmul.mubr.bf16.gmra.mrb[0].mxu0 %v3368
        %v3418 = vpop.f32.mrb[0].mxu0
        %v3419 = vadd.f32 0.0, %v3418
        %v3420 = vpop.f32.mrb[0].mxu0
        %v3421 = vpop.f32.mrb[0].mxu0
        %v3422 = vadd.f32 0.0, %v3421
        %v3423 = vpop.f32.mrb[0].mxu0
        %3424 = vmatprep.mubr.bf16.mxu0 0
        %3425 = vmatmul.mubr.bf16.gmra.mrb[0].mxu0 %v3371
        %v3426 = vpop.f32.mrb[0].mxu0
        %v3427 = vadd.f32 0.0, %v3426
        %v3428 = vpop.f32.mrb[0].mxu0
        %v3429 = vpop.f32.mrb[0].mxu0
        %v3430 = vadd.f32 0.0, %v3429
        %v3431 = vpop.f32.mrb[0].mxu0
        %3432 = vmatprep.mubr.bf16.mxu0 0
        %3433 = vmatmul.mubr.bf16.gmra.mrb[0].mxu0 %v3374
        %v3434 = vpop.f32.mrb[0].mxu0
        %v3435 = vadd.f32 0.0, %v3434
        %v3436 = vpop.f32.mrb[0].mxu0
        %v3437 = vpop.f32.mrb[0].mxu0
        %v3438 = vadd.f32 0.0, %v3437
        %v3439 = vpop.f32.mrb[0].mxu0
        %3440 = vdwg.mxu0
        %v3441 = vadd.f32 %v2859, %v3411
        %v3442 = vadd.f32 %v2860, %v3414
        %v3443 = vadd.f32 %v2861, %v3419
        %v3444 = vadd.f32 %v2862, %v3422
        %v3445 = vadd.f32 %v2863, %v3427
        %v3446 = vadd.f32 %v2864, %v3430
        %v3447 = vadd.f32 %v2865, %v3435
        %v3448 = vadd.f32 %v2866, %v3438
        %3449 = vrot.lane.b32.xlu0 %v559, 48
        %v3450 = vpop.permute.xlu0 %3449
        %3451 = vrot.lane.b32.xlu0 %v563, 48
        %v3452 = vpop.permute.xlu0 %3451
        %v3454 = vsel %vm571, %v3450, 0
        %v3457 = vsel %vm571, %v3452, 0
        %3459 = vmatprep.subr.bf16.mxu0 0
        %3460 = vmatpush1.bf16.xpose.msra.mxu0 %v3457
        %3461 = vmatprep.subr.bf16.mxu0 0
        %3462 = vmatpush1.bf16.xpose.msra.mxu0 0
        %3463 = vmatprep.subr.bf16.mxu0 0
        %3464 = vmatpush1.bf16.xpose.msra.mxu0 0
        %3465 = vmatprep.subr.bf16.mxu0 0
        %3466 = vmatpush1.bf16.xpose.msra.mxu0 0
        %3467 = vmatprep.subr.bf16.mxu0 0
        %3468 = vmatpush1.bf16.xpose.msra.mxu0 0
        %3469 = vmatprep.subr.bf16.mxu0 0
        %3470 = vmatpush1.bf16.xpose.msra.mxu0 0
        %3471 = vmatprep.subr.bf16.mxu0 0
        %3472 = vmatpush1.bf16.xpose.msra.mxu0 0
        %3473 = vmatprep.subr.bf16.mxu0 0
        %3474 = vmatpush1.bf16.xpose.msra.mxu0 0
        %3475 = vmatprep.subr.bf16.mxu0 0
        %3476 = vmatpush1.bf16.xpose.msra.mxu0 0
        %3477 = vmatprep.subr.bf16.mxu0 0
        %3478 = vmatpush1.bf16.xpose.msra.mxu0 0
        %3479 = vmatprep.subr.bf16.mxu0 0
        %3480 = vmatpush1.bf16.xpose.msra.mxu0 0
        %3481 = vmatprep.subr.bf16.mxu0 0
        %3482 = vmatpush1.bf16.xpose.msra.mxu0 0
        %3483 = vmatprep.subr.bf16.mxu0 0
        %3484 = vmatpush1.bf16.xpose.msra.mxu0 0
        %3485 = vmatprep.subr.bf16.mxu0 0
        %3486 = vmatpush1.bf16.xpose.msra.mxu0 0
        %3487 = vmatprep.subr.bf16.mxu0 0
        %3488 = vmatpush1.bf16.xpose.msra.mxu0 0
        %3489 = vmatprep.subr.bf16.mxu0 0
        %3490 = vmatpush1.bf16.xpose.msra.mxu0 0
        %3491 = vmatprep.mubr.bf16.mxu0 0
        %3492 = vmatmul.mubr.bf16.gmra.mrb[0].mxu0 %v3454
        %v3493 = vpop.f32.mrb[0].mxu0
        %v3494 = vadd.f32 0.0, %v3493
        %v3495 = vpop.f32.mrb[0].mxu0
        %v3496 = vpop.f32.mrb[0].mxu0
        %v3497 = vadd.f32 0.0, %v3496
        %v3498 = vpop.f32.mrb[0].mxu0
        %3499 = vdwg.mxu0
        %3500 = vrot.lane.b32.xlu0 %v560, 48
        %v3501 = vpop.permute.xlu0 %3500
        %3502 = vrot.lane.b32.xlu0 %v564, 48
        %v3503 = vpop.permute.xlu0 %3502
        %v3505 = vsel %vm571, %v3501, 0
        %v3508 = vsel %vm571, %v3503, 0
        %3510 = vmatprep.subr.bf16.mxu0 0
        %3511 = vmatpush1.bf16.xpose.msra.mxu0 %v3508
        %3512 = vmatprep.subr.bf16.mxu0 0
        %3513 = vmatpush1.bf16.xpose.msra.mxu0 0
        %3514 = vmatprep.subr.bf16.mxu0 0
        %3515 = vmatpush1.bf16.xpose.msra.mxu0 0
        %3516 = vmatprep.subr.bf16.mxu0 0
        %3517 = vmatpush1.bf16.xpose.msra.mxu0 0
        %3518 = vmatprep.subr.bf16.mxu0 0
        %3519 = vmatpush1.bf16.xpose.msra.mxu0 0
        %3520 = vmatprep.subr.bf16.mxu0 0
        %3521 = vmatpush1.bf16.xpose.msra.mxu0 0
        %3522 = vmatprep.subr.bf16.mxu0 0
        %3523 = vmatpush1.bf16.xpose.msra.mxu0 0
        %3524 = vmatprep.subr.bf16.mxu0 0
        %3525 = vmatpush1.bf16.xpose.msra.mxu0 0
        %3526 = vmatprep.subr.bf16.mxu0 0
        %3527 = vmatpush1.bf16.xpose.msra.mxu0 0
        %3528 = vmatprep.subr.bf16.mxu0 0
        %3529 = vmatpush1.bf16.xpose.msra.mxu0 0
        %3530 = vmatprep.subr.bf16.mxu0 0
        %3531 = vmatpush1.bf16.xpose.msra.mxu0 0
        %3532 = vmatprep.subr.bf16.mxu0 0
        %3533 = vmatpush1.bf16.xpose.msra.mxu0 0
        %3534 = vmatprep.subr.bf16.mxu0 0
        %3535 = vmatpush1.bf16.xpose.msra.mxu0 0
        %3536 = vmatprep.subr.bf16.mxu0 0
        %3537 = vmatpush1.bf16.xpose.msra.mxu0 0
        %3538 = vmatprep.subr.bf16.mxu0 0
        %3539 = vmatpush1.bf16.xpose.msra.mxu0 0
        %3540 = vmatprep.subr.bf16.mxu0 0
        %3541 = vmatpush1.bf16.xpose.msra.mxu0 0
        %3542 = vmatprep.mubr.bf16.mxu0 0
        %3543 = vmatmul.mubr.bf16.gmra.mrb[0].mxu0 %v3505
        %v3544 = vpop.f32.mrb[0].mxu0
        %v3545 = vadd.f32 0.0, %v3544
        %v3546 = vpop.f32.mrb[0].mxu0
        %v3547 = vpop.f32.mrb[0].mxu0
        %v3548 = vadd.f32 0.0, %v3547
        %v3549 = vpop.f32.mrb[0].mxu0
        %3550 = vdwg.mxu0
        %3551 = vrot.lane.b32.xlu0 %v561, 48
        %v3552 = vpop.permute.xlu0 %3551
        %3553 = vrot.lane.b32.xlu0 %v565, 48
        %v3554 = vpop.permute.xlu0 %3553
        %v3556 = vsel %vm571, %v3552, 0
        %v3559 = vsel %vm571, %v3554, 0
        %3561 = vmatprep.subr.bf16.mxu0 0
        %3562 = vmatpush1.bf16.xpose.msra.mxu0 %v3559
        %3563 = vmatprep.subr.bf16.mxu0 0
        %3564 = vmatpush1.bf16.xpose.msra.mxu0 0
        %3565 = vmatprep.subr.bf16.mxu0 0
        %3566 = vmatpush1.bf16.xpose.msra.mxu0 0
        %3567 = vmatprep.subr.bf16.mxu0 0
        %3568 = vmatpush1.bf16.xpose.msra.mxu0 0
        %3569 = vmatprep.subr.bf16.mxu0 0
        %3570 = vmatpush1.bf16.xpose.msra.mxu0 0
        %3571 = vmatprep.subr.bf16.mxu0 0
        %3572 = vmatpush1.bf16.xpose.msra.mxu0 0
        %3573 = vmatprep.subr.bf16.mxu0 0
        %3574 = vmatpush1.bf16.xpose.msra.mxu0 0
        %3575 = vmatprep.subr.bf16.mxu0 0
        %3576 = vmatpush1.bf16.xpose.msra.mxu0 0
        %3577 = vmatprep.subr.bf16.mxu0 0
        %3578 = vmatpush1.bf16.xpose.msra.mxu0 0
        %3579 = vmatprep.subr.bf16.mxu0 0
        %3580 = vmatpush1.bf16.xpose.msra.mxu0 0
        %3581 = vmatprep.subr.bf16.mxu0 0
        %3582 = vmatpush1.bf16.xpose.msra.mxu0 0
        %3583 = vmatprep.subr.bf16.mxu0 0
        %3584 = vmatpush1.bf16.xpose.msra.mxu0 0
        %3585 = vmatprep.subr.bf16.mxu0 0
        %3586 = vmatpush1.bf16.xpose.msra.mxu0 0
        %3587 = vmatprep.subr.bf16.mxu0 0
        %3588 = vmatpush1.bf16.xpose.msra.mxu0 0
        %3589 = vmatprep.subr.bf16.mxu0 0
        %3590 = vmatpush1.bf16.xpose.msra.mxu0 0
        %3591 = vmatprep.subr.bf16.mxu0 0
        %3592 = vmatpush1.bf16.xpose.msra.mxu0 0
        %3593 = vmatprep.mubr.bf16.mxu0 0
        %3594 = vmatmul.mubr.bf16.gmra.mrb[0].mxu0 %v3556
        %v3595 = vpop.f32.mrb[0].mxu0
        %v3596 = vadd.f32 0.0, %v3595
        %v3597 = vpop.f32.mrb[0].mxu0
        %v3598 = vpop.f32.mrb[0].mxu0
        %v3599 = vadd.f32 0.0, %v3598
        %v3600 = vpop.f32.mrb[0].mxu0
        %3601 = vdwg.mxu0
        %3602 = vrot.lane.b32.xlu0 %v562, 48
        %v3603 = vpop.permute.xlu0 %3602
        %3604 = vrot.lane.b32.xlu0 %v566, 48
        %v3605 = vpop.permute.xlu0 %3604
        %v3607 = vsel %vm571, %v3603, 0
        %v3610 = vsel %vm571, %v3605, 0
        %3612 = vmatprep.subr.bf16.mxu0 0
        %3613 = vmatpush1.bf16.xpose.msra.mxu0 %v3610
        %3614 = vmatprep.subr.bf16.mxu0 0
        %3615 = vmatpush1.bf16.xpose.msra.mxu0 0
        %3616 = vmatprep.subr.bf16.mxu0 0
        %3617 = vmatpush1.bf16.xpose.msra.mxu0 0
        %3618 = vmatprep.subr.bf16.mxu0 0
        %3619 = vmatpush1.bf16.xpose.msra.mxu0 0
        %3620 = vmatprep.subr.bf16.mxu0 0
        %3621 = vmatpush1.bf16.xpose.msra.mxu0 0
        %3622 = vmatprep.subr.bf16.mxu0 0
        %3623 = vmatpush1.bf16.xpose.msra.mxu0 0
        %3624 = vmatprep.subr.bf16.mxu0 0
        %3625 = vmatpush1.bf16.xpose.msra.mxu0 0
        %3626 = vmatprep.subr.bf16.mxu0 0
        %3627 = vmatpush1.bf16.xpose.msra.mxu0 0
        %3628 = vmatprep.subr.bf16.mxu0 0
        %3629 = vmatpush1.bf16.xpose.msra.mxu0 0
        %3630 = vmatprep.subr.bf16.mxu0 0
        %3631 = vmatpush1.bf16.xpose.msra.mxu0 0
        %3632 = vmatprep.subr.bf16.mxu0 0
        %3633 = vmatpush1.bf16.xpose.msra.mxu0 0
        %3634 = vmatprep.subr.bf16.mxu0 0
        %3635 = vmatpush1.bf16.xpose.msra.mxu0 0
        %3636 = vmatprep.subr.bf16.mxu0 0
        %3637 = vmatpush1.bf16.xpose.msra.mxu0 0
        %3638 = vmatprep.subr.bf16.mxu0 0
        %3639 = vmatpush1.bf16.xpose.msra.mxu0 0
        %3640 = vmatprep.subr.bf16.mxu0 0
        %3641 = vmatpush1.bf16.xpose.msra.mxu0 0
        %3642 = vmatprep.subr.bf16.mxu0 0
        %3643 = vmatpush1.bf16.xpose.msra.mxu0 0
        %3644 = vmatprep.mubr.bf16.mxu0 0
        %3645 = vmatmul.mubr.bf16.gmra.mrb[0].mxu0 %v3607
        %v3646 = vpop.f32.mrb[0].mxu0
        %v3647 = vadd.f32 0.0, %v3646
        %v3648 = vpop.f32.mrb[0].mxu0
        %v3649 = vpop.f32.mrb[0].mxu0
        %v3650 = vadd.f32 0.0, %v3649
        %v3651 = vpop.f32.mrb[0].mxu0
        %3652 = vdwg.mxu0
        %v3653 = vsel %vm571, %v3494, -inf
        %3654 = vmax.xlane.f32.xlu0 %v3653
        %v3655 = vpop.xlane.xlu0 %3654
        %v3656 = vsel %vm571, %v3497, -inf
        %3657 = vmax.xlane.f32.xlu0 %v3656
        %v3658 = vpop.xlane.xlu0 %3657
        %v3659 = vsel %vm571, %v3545, -inf
        %3660 = vmax.xlane.f32.xlu0 %v3659
        %v3661 = vpop.xlane.xlu0 %3660
        %v3662 = vsel %vm571, %v3548, -inf
        %3663 = vmax.xlane.f32.xlu0 %v3662
        %v3664 = vpop.xlane.xlu0 %3663
        %v3665 = vsel %vm571, %v3596, -inf
        %3666 = vmax.xlane.f32.xlu0 %v3665
        %v3667 = vpop.xlane.xlu0 %3666
        %v3668 = vsel %vm571, %v3599, -inf
        %3669 = vmax.xlane.f32.xlu0 %v3668
        %v3670 = vpop.xlane.xlu0 %3669
        %v3671 = vsel %vm571, %v3647, -inf
        %3672 = vmax.xlane.f32.xlu0 %v3671
        %v3673 = vpop.xlane.xlu0 %3672
        %v3674 = vsel %vm571, %v3650, -inf
        %3675 = vmax.xlane.f32.xlu0 %v3674
        %v3676 = vpop.xlane.xlu0 %3675
        %v3677 = vsub.f32 %v3494, %v3655
        %v3678 = vsub.f32 %v3497, %v3658
        %v3679 = vsub.f32 %v3545, %v3661
        %v3680 = vsub.f32 %v3548, %v3664
        %v3681 = vsub.f32 %v3596, %v3667
        %v3682 = vsub.f32 %v3599, %v3670
        %v3683 = vsub.f32 %v3647, %v3673
        %v3684 = vsub.f32 %v3650, %v3676
        %v3685 = vmul.f32 %v3677, 1.442695
        %v3686 = vpow.pop %v3685
        %v3687 = vmul.f32 %v3678, 1.442695
        %v3688 = vpow.pop %v3687
        %v3689 = vmul.f32 %v3679, 1.442695
        %v3690 = vpow.pop %v3689
        %v3691 = vmul.f32 %v3680, 1.442695
        %v3692 = vpow.pop %v3691
        %v3693 = vmul.f32 %v3681, 1.442695
        %v3694 = vpow.pop %v3693
        %v3695 = vmul.f32 %v3682, 1.442695
        %v3696 = vpow.pop %v3695
        %v3697 = vmul.f32 %v3683, 1.442695
        %v3698 = vpow.pop %v3697
        %v3699 = vmul.f32 %v3684, 1.442695
        %v3700 = vpow.pop %v3699
        %v3701 = vsel %vm571, %v3686, 0.0
        %3702 = vadd.xlane.f32.xlu0 %v3701
        %v3703 = vpop.xlane.xlu0 %3702
        %v3704 = vsel %vm571, %v3688, 0.0
        %3705 = vadd.xlane.f32.xlu0 %v3704
        %v3706 = vpop.xlane.xlu0 %3705
        %v3707 = vsel %vm571, %v3690, 0.0
        %3708 = vadd.xlane.f32.xlu0 %v3707
        %v3709 = vpop.xlane.xlu0 %3708
        %v3710 = vsel %vm571, %v3692, 0.0
        %3711 = vadd.xlane.f32.xlu0 %v3710
        %v3712 = vpop.xlane.xlu0 %3711
        %v3713 = vsel %vm571, %v3694, 0.0
        %3714 = vadd.xlane.f32.xlu0 %v3713
        %v3715 = vpop.xlane.xlu0 %3714
        %v3716 = vsel %vm571, %v3696, 0.0
        %3717 = vadd.xlane.f32.xlu0 %v3716
        %v3718 = vpop.xlane.xlu0 %3717
        %v3719 = vsel %vm571, %v3698, 0.0
        %3720 = vadd.xlane.f32.xlu0 %v3719
        %v3721 = vpop.xlane.xlu0 %3720
        %v3722 = vsel %vm571, %v3700, 0.0
        %3723 = vadd.xlane.f32.xlu0 %v3722
        %v3724 = vpop.xlane.xlu0 %3723
        %v3725 = vrcp.pop %v3703
        %v3726 = vrcp.pop %v3706
        %v3727 = vrcp.pop %v3709
        %v3728 = vrcp.pop %v3712
        %v3729 = vrcp.pop %v3715
        %v3730 = vrcp.pop %v3718
        %v3731 = vrcp.pop %v3721
        %v3732 = vrcp.pop %v3724
        %v3733 = vmul.f32 %v3686, %v3725
        %v3734 = vmul.f32 %v3688, %v3726
        %v3735 = vmul.f32 %v3690, %v3727
        %v3736 = vmul.f32 %v3692, %v3728
        %v3737 = vmul.f32 %v3694, %v3729
        %v3738 = vmul.f32 %v3696, %v3730
        %v3739 = vmul.f32 %v3698, %v3731
        %v3740 = vmul.f32 %v3700, %v3732
        %v3741 = vpack.c.bf16 %v3734, %v3733
        %v3742 = vpack.c.bf16 %v3736, %v3735
        %v3743 = vpack.c.bf16 %v3738, %v3737
        %v3744 = vpack.c.bf16 %v3740, %v3739
        %3745 = vrot.lane.b32.xlu0 %v567, 48
        %v3746 = vpop.permute.xlu0 %3745
        %v3749 = vsel %vm571, %v3741, 0
        %3751 = vmatprep.subr.bf16.mxu0 0
        %3752 = vmatpush1.bf16.msra.mxu0 %v3746
        %3753 = vmatprep.subr.bf16.mxu0 0
        %3754 = vmatpush1.bf16.msra.mxu0 0
        %3755 = vmatprep.subr.bf16.mxu0 0
        %3756 = vmatpush1.bf16.msra.mxu0 0
        %3757 = vmatprep.subr.bf16.mxu0 0
        %3758 = vmatpush1.bf16.msra.mxu0 0
        %3759 = vmatprep.subr.bf16.mxu0 0
        %3760 = vmatpush1.bf16.msra.mxu0 0
        %3761 = vmatprep.subr.bf16.mxu0 0
        %3762 = vmatpush1.bf16.msra.mxu0 0
        %3763 = vmatprep.subr.bf16.mxu0 0
        %3764 = vmatpush1.bf16.msra.mxu0 0
        %3765 = vmatprep.subr.bf16.mxu0 0
        %3766 = vmatpush1.bf16.msra.mxu0 0
        %3767 = vmatprep.subr.bf16.mxu0 0
        %3768 = vmatpush1.bf16.msra.mxu0 0
        %3769 = vmatprep.subr.bf16.mxu0 0
        %3770 = vmatpush1.bf16.msra.mxu0 0
        %3771 = vmatprep.subr.bf16.mxu0 0
        %3772 = vmatpush1.bf16.msra.mxu0 0
        %3773 = vmatprep.subr.bf16.mxu0 0
        %3774 = vmatpush1.bf16.msra.mxu0 0
        %3775 = vmatprep.subr.bf16.mxu0 0
        %3776 = vmatpush1.bf16.msra.mxu0 0
        %3777 = vmatprep.subr.bf16.mxu0 0
        %3778 = vmatpush1.bf16.msra.mxu0 0
        %3779 = vmatprep.subr.bf16.mxu0 0
        %3780 = vmatpush1.bf16.msra.mxu0 0
        %3781 = vmatprep.subr.bf16.mxu0 0
        %3782 = vmatpush1.bf16.msra.mxu0 0
        %3783 = vmatprep.mubr.bf16.mxu0 0
        %3784 = vmatmul.mubr.bf16.gmra.mrb[0].mxu0 %v3749
        %v3785 = vpop.f32.mrb[0].mxu0
        %v3786 = vadd.f32 0.0, %v3785
        %v3787 = vpop.f32.mrb[0].mxu0
        %v3788 = vpop.f32.mrb[0].mxu0
        %v3789 = vadd.f32 0.0, %v3788
        %v3790 = vpop.f32.mrb[0].mxu0
        %3791 = vdwg.mxu0
        %3792 = vrot.lane.b32.xlu0 %v568, 48
        %v3793 = vpop.permute.xlu0 %3792
        %v3796 = vsel %vm571, %v3742, 0
        %3798 = vmatprep.subr.bf16.mxu0 0
        %3799 = vmatpush1.bf16.msra.mxu0 %v3793
        %3800 = vmatprep.subr.bf16.mxu0 0
        %3801 = vmatpush1.bf16.msra.mxu0 0
        %3802 = vmatprep.subr.bf16.mxu0 0
        %3803 = vmatpush1.bf16.msra.mxu0 0
        %3804 = vmatprep.subr.bf16.mxu0 0
        %3805 = vmatpush1.bf16.msra.mxu0 0
        %3806 = vmatprep.subr.bf16.mxu0 0
        %3807 = vmatpush1.bf16.msra.mxu0 0
        %3808 = vmatprep.subr.bf16.mxu0 0
        %3809 = vmatpush1.bf16.msra.mxu0 0
        %3810 = vmatprep.subr.bf16.mxu0 0
        %3811 = vmatpush1.bf16.msra.mxu0 0
        %3812 = vmatprep.subr.bf16.mxu0 0
        %3813 = vmatpush1.bf16.msra.mxu0 0
        %3814 = vmatprep.subr.bf16.mxu0 0
        %3815 = vmatpush1.bf16.msra.mxu0 0
        %3816 = vmatprep.subr.bf16.mxu0 0
        %3817 = vmatpush1.bf16.msra.mxu0 0
        %3818 = vmatprep.subr.bf16.mxu0 0
        %3819 = vmatpush1.bf16.msra.mxu0 0
        %3820 = vmatprep.subr.bf16.mxu0 0
        %3821 = vmatpush1.bf16.msra.mxu0 0
        %3822 = vmatprep.subr.bf16.mxu0 0
        %3823 = vmatpush1.bf16.msra.mxu0 0
        %3824 = vmatprep.subr.bf16.mxu0 0
        %3825 = vmatpush1.bf16.msra.mxu0 0
        %3826 = vmatprep.subr.bf16.mxu0 0
        %3827 = vmatpush1.bf16.msra.mxu0 0
        %3828 = vmatprep.subr.bf16.mxu0 0
        %3829 = vmatpush1.bf16.msra.mxu0 0
        %3830 = vmatprep.mubr.bf16.mxu0 0
        %3831 = vmatmul.mubr.bf16.gmra.mrb[0].mxu0 %v3796
        %v3832 = vpop.f32.mrb[0].mxu0
        %v3833 = vadd.f32 0.0, %v3832
        %v3834 = vpop.f32.mrb[0].mxu0
        %v3835 = vpop.f32.mrb[0].mxu0
        %v3836 = vadd.f32 0.0, %v3835
        %v3837 = vpop.f32.mrb[0].mxu0
        %3838 = vdwg.mxu0
        %3839 = vrot.lane.b32.xlu0 %v569, 48
        %v3840 = vpop.permute.xlu0 %3839
        %v3843 = vsel %vm571, %v3743, 0
        %3845 = vmatprep.subr.bf16.mxu0 0
        %3846 = vmatpush1.bf16.msra.mxu0 %v3840
        %3847 = vmatprep.subr.bf16.mxu0 0
        %3848 = vmatpush1.bf16.msra.mxu0 0
        %3849 = vmatprep.subr.bf16.mxu0 0
        %3850 = vmatpush1.bf16.msra.mxu0 0
        %3851 = vmatprep.subr.bf16.mxu0 0
        %3852 = vmatpush1.bf16.msra.mxu0 0
        %3853 = vmatprep.subr.bf16.mxu0 0
        %3854 = vmatpush1.bf16.msra.mxu0 0
        %3855 = vmatprep.subr.bf16.mxu0 0
        %3856 = vmatpush1.bf16.msra.mxu0 0
        %3857 = vmatprep.subr.bf16.mxu0 0
        %3858 = vmatpush1.bf16.msra.mxu0 0
        %3859 = vmatprep.subr.bf16.mxu0 0
        %3860 = vmatpush1.bf16.msra.mxu0 0
        %3861 = vmatprep.subr.bf16.mxu0 0
        %3862 = vmatpush1.bf16.msra.mxu0 0
        %3863 = vmatprep.subr.bf16.mxu0 0
        %3864 = vmatpush1.bf16.msra.mxu0 0
        %3865 = vmatprep.subr.bf16.mxu0 0
        %3866 = vmatpush1.bf16.msra.mxu0 0
        %3867 = vmatprep.subr.bf16.mxu0 0
        %3868 = vmatpush1.bf16.msra.mxu0 0
        %3869 = vmatprep.subr.bf16.mxu0 0
        %3870 = vmatpush1.bf16.msra.mxu0 0
        %3871 = vmatprep.subr.bf16.mxu0 0
        %3872 = vmatpush1.bf16.msra.mxu0 0
        %3873 = vmatprep.subr.bf16.mxu0 0
        %3874 = vmatpush1.bf16.msra.mxu0 0
        %3875 = vmatprep.subr.bf16.mxu0 0
        %3876 = vmatpush1.bf16.msra.mxu0 0
        %3877 = vmatprep.mubr.bf16.mxu0 0
        %3878 = vmatmul.mubr.bf16.gmra.mrb[0].mxu0 %v3843
        %v3879 = vpop.f32.mrb[0].mxu0
        %v3880 = vadd.f32 0.0, %v3879
        %v3881 = vpop.f32.mrb[0].mxu0
        %v3882 = vpop.f32.mrb[0].mxu0
        %v3883 = vadd.f32 0.0, %v3882
        %v3884 = vpop.f32.mrb[0].mxu0
        %3885 = vdwg.mxu0
        %3886 = vrot.lane.b32.xlu0 %v570, 48
        %v3887 = vpop.permute.xlu0 %3886
        %v3890 = vsel %vm571, %v3744, 0
        %3892 = vmatprep.subr.bf16.mxu0 0
        %3893 = vmatpush1.bf16.msra.mxu0 %v3887
        %3894 = vmatprep.subr.bf16.mxu0 0
        %3895 = vmatpush1.bf16.msra.mxu0 0
        %3896 = vmatprep.subr.bf16.mxu0 0
        %3897 = vmatpush1.bf16.msra.mxu0 0
        %3898 = vmatprep.subr.bf16.mxu0 0
        %3899 = vmatpush1.bf16.msra.mxu0 0
        %3900 = vmatprep.subr.bf16.mxu0 0
        %3901 = vmatpush1.bf16.msra.mxu0 0
        %3902 = vmatprep.subr.bf16.mxu0 0
        %3903 = vmatpush1.bf16.msra.mxu0 0
        %3904 = vmatprep.subr.bf16.mxu0 0
        %3905 = vmatpush1.bf16.msra.mxu0 0
        %3906 = vmatprep.subr.bf16.mxu0 0
        %3907 = vmatpush1.bf16.msra.mxu0 0
        %3908 = vmatprep.subr.bf16.mxu0 0
        %3909 = vmatpush1.bf16.msra.mxu0 0
        %3910 = vmatprep.subr.bf16.mxu0 0
        %3911 = vmatpush1.bf16.msra.mxu0 0
        %3912 = vmatprep.subr.bf16.mxu0 0
        %3913 = vmatpush1.bf16.msra.mxu0 0
        %3914 = vmatprep.subr.bf16.mxu0 0
        %3915 = vmatpush1.bf16.msra.mxu0 0
        %3916 = vmatprep.subr.bf16.mxu0 0
        %3917 = vmatpush1.bf16.msra.mxu0 0
        %3918 = vmatprep.subr.bf16.mxu0 0
        %3919 = vmatpush1.bf16.msra.mxu0 0
        %3920 = vmatprep.subr.bf16.mxu0 0
        %3921 = vmatpush1.bf16.msra.mxu0 0
        %3922 = vmatprep.subr.bf16.mxu0 0
        %3923 = vmatpush1.bf16.msra.mxu0 0
        %3924 = vmatprep.mubr.bf16.mxu0 0
        %3925 = vmatmul.mubr.bf16.gmra.mrb[0].mxu0 %v3890
        %v3926 = vpop.f32.mrb[0].mxu0
        %v3927 = vadd.f32 0.0, %v3926
        %v3928 = vpop.f32.mrb[0].mxu0
        %v3929 = vpop.f32.mrb[0].mxu0
        %v3930 = vadd.f32 0.0, %v3929
        %v3931 = vpop.f32.mrb[0].mxu0
        %3932 = vdwg.mxu0
        %v3933 = vpack.c.bf16 %v3789, %v3786
        %v3934 = vpack.c.bf16 %v3836, %v3833
        %v3935 = vpack.c.bf16 %v3883, %v3880
        %v3936 = vpack.c.bf16 %v3930, %v3927
        %s3937 = scalar_lea.vmem [#allocation7], 40
        %v3938 = vld [vmem:[%s3937] sm:$0xf]
        %v3939 = vld [vmem:[%s3937 + $0x4] sm:$0xf]
        %v3942 = vunpack.c.l.b16 %v3938
        %v3943 = vunpack.c.l.b16 %v3939
        %v3944 = vpack.c.b16 %v3943, %v3942
        %v3947 = vsel %vm571, %v3933, 0
        %v3950 = vsel %vm571, %v3934, 0
        %v3953 = vsel %vm571, %v3935, 0
        %v3956 = vsel %vm571, %v3936, 0
        %3958 = vmatprep.subr.bf16.mxu0 0
        %3959 = vmatpush1.bf16.msra.mxu0 %v3944
        %3960 = vmatprep.subr.bf16.mxu0 0
        %3961 = vmatpush1.bf16.msra.mxu0 0
        %3962 = vmatprep.subr.bf16.mxu0 0
        %3963 = vmatpush1.bf16.msra.mxu0 0
        %3964 = vmatprep.subr.bf16.mxu0 0
        %3965 = vmatpush1.bf16.msra.mxu0 0
        %3966 = vmatprep.subr.bf16.mxu0 0
        %3967 = vmatpush1.bf16.msra.mxu0 0
        %3968 = vmatprep.subr.bf16.mxu0 0
        %3969 = vmatpush1.bf16.msra.mxu0 0
        %3970 = vmatprep.subr.bf16.mxu0 0
        %3971 = vmatpush1.bf16.msra.mxu0 0
        %3972 = vmatprep.subr.bf16.mxu0 0
        %3973 = vmatpush1.bf16.msra.mxu0 0
        %3974 = vmatprep.subr.bf16.mxu0 0
        %3975 = vmatpush1.bf16.msra.mxu0 0
        %3976 = vmatprep.subr.bf16.mxu0 0
        %3977 = vmatpush1.bf16.msra.mxu0 0
        %3978 = vmatprep.subr.bf16.mxu0 0
        %3979 = vmatpush1.bf16.msra.mxu0 0
        %3980 = vmatprep.subr.bf16.mxu0 0
        %3981 = vmatpush1.bf16.msra.mxu0 0
        %3982 = vmatprep.subr.bf16.mxu0 0
        %3983 = vmatpush1.bf16.msra.mxu0 0
        %3984 = vmatprep.subr.bf16.mxu0 0
        %3985 = vmatpush1.bf16.msra.mxu0 0
        %3986 = vmatprep.subr.bf16.mxu0 0
        %3987 = vmatpush1.bf16.msra.mxu0 0
        %3988 = vmatprep.subr.bf16.mxu0 0
        %3989 = vmatpush1.bf16.msra.mxu0 0
        %3990 = vmatprep.mubr.bf16.mxu0 0
        %3991 = vmatmul.mubr.bf16.gmra.mrb[0].mxu0 %v3947
        %v3992 = vpop.f32.mrb[0].mxu0
        %v3993 = vadd.f32 0.0, %v3992
        %v3994 = vpop.f32.mrb[0].mxu0
        %v3995 = vpop.f32.mrb[0].mxu0
        %v3996 = vadd.f32 0.0, %v3995
        %v3997 = vpop.f32.mrb[0].mxu0
        %3998 = vmatprep.mubr.bf16.mxu0 0
        %3999 = vmatmul.mubr.bf16.gmra.mrb[0].mxu0 %v3950
        %v4000 = vpop.f32.mrb[0].mxu0
        %v4001 = vadd.f32 0.0, %v4000
        %v4002 = vpop.f32.mrb[0].mxu0
        %v4003 = vpop.f32.mrb[0].mxu0
        %v4004 = vadd.f32 0.0, %v4003
        %v4005 = vpop.f32.mrb[0].mxu0
        %4006 = vmatprep.mubr.bf16.mxu0 0
        %4007 = vmatmul.mubr.bf16.gmra.mrb[0].mxu0 %v3953
        %v4008 = vpop.f32.mrb[0].mxu0
        %v4009 = vadd.f32 0.0, %v4008
        %v4010 = vpop.f32.mrb[0].mxu0
        %v4011 = vpop.f32.mrb[0].mxu0
        %v4012 = vadd.f32 0.0, %v4011
        %v4013 = vpop.f32.mrb[0].mxu0
        %4014 = vmatprep.mubr.bf16.mxu0 0
        %4015 = vmatmul.mubr.bf16.gmra.mrb[0].mxu0 %v3956
        %v4016 = vpop.f32.mrb[0].mxu0
        %v4017 = vadd.f32 0.0, %v4016
        %v4018 = vpop.f32.mrb[0].mxu0
        %v4019 = vpop.f32.mrb[0].mxu0
        %v4020 = vadd.f32 0.0, %v4019
        %v4021 = vpop.f32.mrb[0].mxu0
        %4022 = vdwg.mxu0
        %v4023 = vadd.f32 %v3441, %v3993
        %v4024 = vadd.f32 %v3442, %v3996
        %v4025 = vadd.f32 %v3443, %v4001
        %v4026 = vadd.f32 %v3444, %v4004
        %v4027 = vadd.f32 %v3445, %v4009
        %v4028 = vadd.f32 %v3446, %v4012
        %v4029 = vadd.f32 %v3447, %v4017
        %v4030 = vadd.f32 %v3448, %v4020
        %4031 = vrot.lane.b32.xlu0 %v559, 32
        %v4032 = vpop.permute.xlu0 %4031
        %4033 = vrot.lane.b32.xlu0 %v563, 32
        %v4034 = vpop.permute.xlu0 %4033
        %v4036 = vsel %vm571, %v4032, 0
        %v4039 = vsel %vm571, %v4034, 0
        %4041 = vmatprep.subr.bf16.mxu0 0
        %4042 = vmatpush1.bf16.xpose.msra.mxu0 %v4039
        %4043 = vmatprep.subr.bf16.mxu0 0
        %4044 = vmatpush1.bf16.xpose.msra.mxu0 0
        %4045 = vmatprep.subr.bf16.mxu0 0
        %4046 = vmatpush1.bf16.xpose.msra.mxu0 0
        %4047 = vmatprep.subr.bf16.mxu0 0
        %4048 = vmatpush1.bf16.xpose.msra.mxu0 0
        %4049 = vmatprep.subr.bf16.mxu0 0
        %4050 = vmatpush1.bf16.xpose.msra.mxu0 0
        %4051 = vmatprep.subr.bf16.mxu0 0
        %4052 = vmatpush1.bf16.xpose.msra.mxu0 0
        %4053 = vmatprep.subr.bf16.mxu0 0
        %4054 = vmatpush1.bf16.xpose.msra.mxu0 0
        %4055 = vmatprep.subr.bf16.mxu0 0
        %4056 = vmatpush1.bf16.xpose.msra.mxu0 0
        %4057 = vmatprep.subr.bf16.mxu0 0
        %4058 = vmatpush1.bf16.xpose.msra.mxu0 0
        %4059 = vmatprep.subr.bf16.mxu0 0
        %4060 = vmatpush1.bf16.xpose.msra.mxu0 0
        %4061 = vmatprep.subr.bf16.mxu0 0
        %4062 = vmatpush1.bf16.xpose.msra.mxu0 0
        %4063 = vmatprep.subr.bf16.mxu0 0
        %4064 = vmatpush1.bf16.xpose.msra.mxu0 0
        %4065 = vmatprep.subr.bf16.mxu0 0
        %4066 = vmatpush1.bf16.xpose.msra.mxu0 0
        %4067 = vmatprep.subr.bf16.mxu0 0
        %4068 = vmatpush1.bf16.xpose.msra.mxu0 0
        %4069 = vmatprep.subr.bf16.mxu0 0
        %4070 = vmatpush1.bf16.xpose.msra.mxu0 0
        %4071 = vmatprep.subr.bf16.mxu0 0
        %4072 = vmatpush1.bf16.xpose.msra.mxu0 0
        %4073 = vmatprep.mubr.bf16.mxu0 0
        %4074 = vmatmul.mubr.bf16.gmra.mrb[0].mxu0 %v4036
        %v4075 = vpop.f32.mrb[0].mxu0
        %v4076 = vadd.f32 0.0, %v4075
        %v4077 = vpop.f32.mrb[0].mxu0
        %v4078 = vpop.f32.mrb[0].mxu0
        %v4079 = vadd.f32 0.0, %v4078
        %v4080 = vpop.f32.mrb[0].mxu0
        %4081 = vdwg.mxu0
        %4082 = vrot.lane.b32.xlu0 %v560, 32
        %v4083 = vpop.permute.xlu0 %4082
        %4084 = vrot.lane.b32.xlu0 %v564, 32
        %v4085 = vpop.permute.xlu0 %4084
        %v4087 = vsel %vm571, %v4083, 0
        %v4090 = vsel %vm571, %v4085, 0
        %4092 = vmatprep.subr.bf16.mxu0 0
        %4093 = vmatpush1.bf16.xpose.msra.mxu0 %v4090
        %4094 = vmatprep.subr.bf16.mxu0 0
        %4095 = vmatpush1.bf16.xpose.msra.mxu0 0
        %4096 = vmatprep.subr.bf16.mxu0 0
        %4097 = vmatpush1.bf16.xpose.msra.mxu0 0
        %4098 = vmatprep.subr.bf16.mxu0 0
        %4099 = vmatpush1.bf16.xpose.msra.mxu0 0
        %4100 = vmatprep.subr.bf16.mxu0 0
        %4101 = vmatpush1.bf16.xpose.msra.mxu0 0
        %4102 = vmatprep.subr.bf16.mxu0 0
        %4103 = vmatpush1.bf16.xpose.msra.mxu0 0
        %4104 = vmatprep.subr.bf16.mxu0 0
        %4105 = vmatpush1.bf16.xpose.msra.mxu0 0
        %4106 = vmatprep.subr.bf16.mxu0 0
        %4107 = vmatpush1.bf16.xpose.msra.mxu0 0
        %4108 = vmatprep.subr.bf16.mxu0 0
        %4109 = vmatpush1.bf16.xpose.msra.mxu0 0
        %4110 = vmatprep.subr.bf16.mxu0 0
        %4111 = vmatpush1.bf16.xpose.msra.mxu0 0
        %4112 = vmatprep.subr.bf16.mxu0 0
        %4113 = vmatpush1.bf16.xpose.msra.mxu0 0
        %4114 = vmatprep.subr.bf16.mxu0 0
        %4115 = vmatpush1.bf16.xpose.msra.mxu0 0
        %4116 = vmatprep.subr.bf16.mxu0 0
        %4117 = vmatpush1.bf16.xpose.msra.mxu0 0
        %4118 = vmatprep.subr.bf16.mxu0 0
        %4119 = vmatpush1.bf16.xpose.msra.mxu0 0
        %4120 = vmatprep.subr.bf16.mxu0 0
        %4121 = vmatpush1.bf16.xpose.msra.mxu0 0
        %4122 = vmatprep.subr.bf16.mxu0 0
        %4123 = vmatpush1.bf16.xpose.msra.mxu0 0
        %4124 = vmatprep.mubr.bf16.mxu0 0
        %4125 = vmatmul.mubr.bf16.gmra.mrb[0].mxu0 %v4087
        %v4126 = vpop.f32.mrb[0].mxu0
        %v4127 = vadd.f32 0.0, %v4126
        %v4128 = vpop.f32.mrb[0].mxu0
        %v4129 = vpop.f32.mrb[0].mxu0
        %v4130 = vadd.f32 0.0, %v4129
        %v4131 = vpop.f32.mrb[0].mxu0
        %4132 = vdwg.mxu0
        %4133 = vrot.lane.b32.xlu0 %v561, 32
        %v4134 = vpop.permute.xlu0 %4133
        %4135 = vrot.lane.b32.xlu0 %v565, 32
        %v4136 = vpop.permute.xlu0 %4135
        %v4138 = vsel %vm571, %v4134, 0
        %v4141 = vsel %vm571, %v4136, 0
        %4143 = vmatprep.subr.bf16.mxu0 0
        %4144 = vmatpush1.bf16.xpose.msra.mxu0 %v4141
        %4145 = vmatprep.subr.bf16.mxu0 0
        %4146 = vmatpush1.bf16.xpose.msra.mxu0 0
        %4147 = vmatprep.subr.bf16.mxu0 0
        %4148 = vmatpush1.bf16.xpose.msra.mxu0 0
        %4149 = vmatprep.subr.bf16.mxu0 0
        %4150 = vmatpush1.bf16.xpose.msra.mxu0 0
        %4151 = vmatprep.subr.bf16.mxu0 0
        %4152 = vmatpush1.bf16.xpose.msra.mxu0 0
        %4153 = vmatprep.subr.bf16.mxu0 0
        %4154 = vmatpush1.bf16.xpose.msra.mxu0 0
        %4155 = vmatprep.subr.bf16.mxu0 0
        %4156 = vmatpush1.bf16.xpose.msra.mxu0 0
        %4157 = vmatprep.subr.bf16.mxu0 0
        %4158 = vmatpush1.bf16.xpose.msra.mxu0 0
        %4159 = vmatprep.subr.bf16.mxu0 0
        %4160 = vmatpush1.bf16.xpose.msra.mxu0 0
        %4161 = vmatprep.subr.bf16.mxu0 0
        %4162 = vmatpush1.bf16.xpose.msra.mxu0 0
        %4163 = vmatprep.subr.bf16.mxu0 0
        %4164 = vmatpush1.bf16.xpose.msra.mxu0 0
        %4165 = vmatprep.subr.bf16.mxu0 0
        %4166 = vmatpush1.bf16.xpose.msra.mxu0 0
        %4167 = vmatprep.subr.bf16.mxu0 0
        %4168 = vmatpush1.bf16.xpose.msra.mxu0 0
        %4169 = vmatprep.subr.bf16.mxu0 0
        %4170 = vmatpush1.bf16.xpose.msra.mxu0 0
        %4171 = vmatprep.subr.bf16.mxu0 0
        %4172 = vmatpush1.bf16.xpose.msra.mxu0 0
        %4173 = vmatprep.subr.bf16.mxu0 0
        %4174 = vmatpush1.bf16.xpose.msra.mxu0 0
        %4175 = vmatprep.mubr.bf16.mxu0 0
        %4176 = vmatmul.mubr.bf16.gmra.mrb[0].mxu0 %v4138
        %v4177 = vpop.f32.mrb[0].mxu0
        %v4178 = vadd.f32 0.0, %v4177
        %v4179 = vpop.f32.mrb[0].mxu0
        %v4180 = vpop.f32.mrb[0].mxu0
        %v4181 = vadd.f32 0.0, %v4180
        %v4182 = vpop.f32.mrb[0].mxu0
        %4183 = vdwg.mxu0
        %4184 = vrot.lane.b32.xlu0 %v562, 32
        %v4185 = vpop.permute.xlu0 %4184
        %4186 = vrot.lane.b32.xlu0 %v566, 32
        %v4187 = vpop.permute.xlu0 %4186
        %v4189 = vsel %vm571, %v4185, 0
        %v4192 = vsel %vm571, %v4187, 0
        %4194 = vmatprep.subr.bf16.mxu0 0
        %4195 = vmatpush1.bf16.xpose.msra.mxu0 %v4192
        %4196 = vmatprep.subr.bf16.mxu0 0
        %4197 = vmatpush1.bf16.xpose.msra.mxu0 0
        %4198 = vmatprep.subr.bf16.mxu0 0
        %4199 = vmatpush1.bf16.xpose.msra.mxu0 0
        %4200 = vmatprep.subr.bf16.mxu0 0
        %4201 = vmatpush1.bf16.xpose.msra.mxu0 0
        %4202 = vmatprep.subr.bf16.mxu0 0
        %4203 = vmatpush1.bf16.xpose.msra.mxu0 0
        %4204 = vmatprep.subr.bf16.mxu0 0
        %4205 = vmatpush1.bf16.xpose.msra.mxu0 0
        %4206 = vmatprep.subr.bf16.mxu0 0
        %4207 = vmatpush1.bf16.xpose.msra.mxu0 0
        %4208 = vmatprep.subr.bf16.mxu0 0
        %4209 = vmatpush1.bf16.xpose.msra.mxu0 0
        %4210 = vmatprep.subr.bf16.mxu0 0
        %4211 = vmatpush1.bf16.xpose.msra.mxu0 0
        %4212 = vmatprep.subr.bf16.mxu0 0
        %4213 = vmatpush1.bf16.xpose.msra.mxu0 0
        %4214 = vmatprep.subr.bf16.mxu0 0
        %4215 = vmatpush1.bf16.xpose.msra.mxu0 0
        %4216 = vmatprep.subr.bf16.mxu0 0
        %4217 = vmatpush1.bf16.xpose.msra.mxu0 0
        %4218 = vmatprep.subr.bf16.mxu0 0
        %4219 = vmatpush1.bf16.xpose.msra.mxu0 0
        %4220 = vmatprep.subr.bf16.mxu0 0
        %4221 = vmatpush1.bf16.xpose.msra.mxu0 0
        %4222 = vmatprep.subr.bf16.mxu0 0
        %4223 = vmatpush1.bf16.xpose.msra.mxu0 0
        %4224 = vmatprep.subr.bf16.mxu0 0
        %4225 = vmatpush1.bf16.xpose.msra.mxu0 0
        %4226 = vmatprep.mubr.bf16.mxu0 0
        %4227 = vmatmul.mubr.bf16.gmra.mrb[0].mxu0 %v4189
        %v4228 = vpop.f32.mrb[0].mxu0
        %v4229 = vadd.f32 0.0, %v4228
        %v4230 = vpop.f32.mrb[0].mxu0
        %v4231 = vpop.f32.mrb[0].mxu0
        %v4232 = vadd.f32 0.0, %v4231
        %v4233 = vpop.f32.mrb[0].mxu0
        %4234 = vdwg.mxu0
        %v4235 = vsel %vm571, %v4076, -inf
        %4236 = vmax.xlane.f32.xlu0 %v4235
        %v4237 = vpop.xlane.xlu0 %4236
        %v4238 = vsel %vm571, %v4079, -inf
        %4239 = vmax.xlane.f32.xlu0 %v4238
        %v4240 = vpop.xlane.xlu0 %4239
        %v4241 = vsel %vm571, %v4127, -inf
        %4242 = vmax.xlane.f32.xlu0 %v4241
        %v4243 = vpop.xlane.xlu0 %4242
        %v4244 = vsel %vm571, %v4130, -inf
        %4245 = vmax.xlane.f32.xlu0 %v4244
        %v4246 = vpop.xlane.xlu0 %4245
        %v4247 = vsel %vm571, %v4178, -inf
        %4248 = vmax.xlane.f32.xlu0 %v4247
        %v4249 = vpop.xlane.xlu0 %4248
        %v4250 = vsel %vm571, %v4181, -inf
        %4251 = vmax.xlane.f32.xlu0 %v4250
        %v4252 = vpop.xlane.xlu0 %4251
        %v4253 = vsel %vm571, %v4229, -inf
        %4254 = vmax.xlane.f32.xlu0 %v4253
        %v4255 = vpop.xlane.xlu0 %4254
        %v4256 = vsel %vm571, %v4232, -inf
        %4257 = vmax.xlane.f32.xlu0 %v4256
        %v4258 = vpop.xlane.xlu0 %4257
        %v4259 = vsub.f32 %v4076, %v4237
        %v4260 = vsub.f32 %v4079, %v4240
        %v4261 = vsub.f32 %v4127, %v4243
        %v4262 = vsub.f32 %v4130, %v4246
        %v4263 = vsub.f32 %v4178, %v4249
        %v4264 = vsub.f32 %v4181, %v4252
        %v4265 = vsub.f32 %v4229, %v4255
        %v4266 = vsub.f32 %v4232, %v4258
        %v4267 = vmul.f32 %v4259, 1.442695
        %v4268 = vpow.pop %v4267
        %v4269 = vmul.f32 %v4260, 1.442695
        %v4270 = vpow.pop %v4269
        %v4271 = vmul.f32 %v4261, 1.442695
        %v4272 = vpow.pop %v4271
        %v4273 = vmul.f32 %v4262, 1.442695
        %v4274 = vpow.pop %v4273
        %v4275 = vmul.f32 %v4263, 1.442695
        %v4276 = vpow.pop %v4275
        %v4277 = vmul.f32 %v4264, 1.442695
        %v4278 = vpow.pop %v4277
        %v4279 = vmul.f32 %v4265, 1.442695
        %v4280 = vpow.pop %v4279
        %v4281 = vmul.f32 %v4266, 1.442695
        %v4282 = vpow.pop %v4281
        %v4283 = vsel %vm571, %v4268, 0.0
        %4284 = vadd.xlane.f32.xlu0 %v4283
        %v4285 = vpop.xlane.xlu0 %4284
        %v4286 = vsel %vm571, %v4270, 0.0
        %4287 = vadd.xlane.f32.xlu0 %v4286
        %v4288 = vpop.xlane.xlu0 %4287
        %v4289 = vsel %vm571, %v4272, 0.0
        %4290 = vadd.xlane.f32.xlu0 %v4289
        %v4291 = vpop.xlane.xlu0 %4290
        %v4292 = vsel %vm571, %v4274, 0.0
        %4293 = vadd.xlane.f32.xlu0 %v4292
        %v4294 = vpop.xlane.xlu0 %4293
        %v4295 = vsel %vm571, %v4276, 0.0
        %4296 = vadd.xlane.f32.xlu0 %v4295
        %v4297 = vpop.xlane.xlu0 %4296
        %v4298 = vsel %vm571, %v4278, 0.0
        %4299 = vadd.xlane.f32.xlu0 %v4298
        %v4300 = vpop.xlane.xlu0 %4299
        %v4301 = vsel %vm571, %v4280, 0.0
        %4302 = vadd.xlane.f32.xlu0 %v4301
        %v4303 = vpop.xlane.xlu0 %4302
        %v4304 = vsel %vm571, %v4282, 0.0
        %4305 = vadd.xlane.f32.xlu0 %v4304
        %v4306 = vpop.xlane.xlu0 %4305
        %v4307 = vrcp.pop %v4285
        %v4308 = vrcp.pop %v4288
        %v4309 = vrcp.pop %v4291
        %v4310 = vrcp.pop %v4294
        %v4311 = vrcp.pop %v4297
        %v4312 = vrcp.pop %v4300
        %v4313 = vrcp.pop %v4303
        %v4314 = vrcp.pop %v4306
        %v4315 = vmul.f32 %v4268, %v4307
        %v4316 = vmul.f32 %v4270, %v4308
        %v4317 = vmul.f32 %v4272, %v4309
        %v4318 = vmul.f32 %v4274, %v4310
        %v4319 = vmul.f32 %v4276, %v4311
        %v4320 = vmul.f32 %v4278, %v4312
        %v4321 = vmul.f32 %v4280, %v4313
        %v4322 = vmul.f32 %v4282, %v4314
        %v4323 = vpack.c.bf16 %v4316, %v4315
        %v4324 = vpack.c.bf16 %v4318, %v4317
        %v4325 = vpack.c.bf16 %v4320, %v4319
        %v4326 = vpack.c.bf16 %v4322, %v4321
        %4327 = vrot.lane.b32.xlu0 %v567, 32
        %v4328 = vpop.permute.xlu0 %4327
        %v4331 = vsel %vm571, %v4323, 0
        %4333 = vmatprep.subr.bf16.mxu0 0
        %4334 = vmatpush1.bf16.msra.mxu0 %v4328
        %4335 = vmatprep.subr.bf16.mxu0 0
        %4336 = vmatpush1.bf16.msra.mxu0 0
        %4337 = vmatprep.subr.bf16.mxu0 0
        %4338 = vmatpush1.bf16.msra.mxu0 0
        %4339 = vmatprep.subr.bf16.mxu0 0
        %4340 = vmatpush1.bf16.msra.mxu0 0
        %4341 = vmatprep.subr.bf16.mxu0 0
        %4342 = vmatpush1.bf16.msra.mxu0 0
        %4343 = vmatprep.subr.bf16.mxu0 0
        %4344 = vmatpush1.bf16.msra.mxu0 0
        %4345 = vmatprep.subr.bf16.mxu0 0
        %4346 = vmatpush1.bf16.msra.mxu0 0
        %4347 = vmatprep.subr.bf16.mxu0 0
        %4348 = vmatpush1.bf16.msra.mxu0 0
        %4349 = vmatprep.subr.bf16.mxu0 0
        %4350 = vmatpush1.bf16.msra.mxu0 0
        %4351 = vmatprep.subr.bf16.mxu0 0
        %4352 = vmatpush1.bf16.msra.mxu0 0
        %4353 = vmatprep.subr.bf16.mxu0 0
        %4354 = vmatpush1.bf16.msra.mxu0 0
        %4355 = vmatprep.subr.bf16.mxu0 0
        %4356 = vmatpush1.bf16.msra.mxu0 0
        %4357 = vmatprep.subr.bf16.mxu0 0
        %4358 = vmatpush1.bf16.msra.mxu0 0
        %4359 = vmatprep.subr.bf16.mxu0 0
        %4360 = vmatpush1.bf16.msra.mxu0 0
        %4361 = vmatprep.subr.bf16.mxu0 0
        %4362 = vmatpush1.bf16.msra.mxu0 0
        %4363 = vmatprep.subr.bf16.mxu0 0
        %4364 = vmatpush1.bf16.msra.mxu0 0
        %4365 = vmatprep.mubr.bf16.mxu0 0
        %4366 = vmatmul.mubr.bf16.gmra.mrb[0].mxu0 %v4331
        %v4367 = vpop.f32.mrb[0].mxu0
        %v4368 = vadd.f32 0.0, %v4367
        %v4369 = vpop.f32.mrb[0].mxu0
        %v4370 = vpop.f32.mrb[0].mxu0
        %v4371 = vadd.f32 0.0, %v4370
        %v4372 = vpop.f32.mrb[0].mxu0
        %4373 = vdwg.mxu0
        %4374 = vrot.lane.b32.xlu0 %v568, 32
        %v4375 = vpop.permute.xlu0 %4374
        %v4378 = vsel %vm571, %v4324, 0
        %4380 = vmatprep.subr.bf16.mxu0 0
        %4381 = vmatpush1.bf16.msra.mxu0 %v4375
        %4382 = vmatprep.subr.bf16.mxu0 0
        %4383 = vmatpush1.bf16.msra.mxu0 0
        %4384 = vmatprep.subr.bf16.mxu0 0
        %4385 = vmatpush1.bf16.msra.mxu0 0
        %4386 = vmatprep.subr.bf16.mxu0 0
        %4387 = vmatpush1.bf16.msra.mxu0 0
        %4388 = vmatprep.subr.bf16.mxu0 0
        %4389 = vmatpush1.bf16.msra.mxu0 0
        %4390 = vmatprep.subr.bf16.mxu0 0
        %4391 = vmatpush1.bf16.msra.mxu0 0
        %4392 = vmatprep.subr.bf16.mxu0 0
        %4393 = vmatpush1.bf16.msra.mxu0 0
        %4394 = vmatprep.subr.bf16.mxu0 0
        %4395 = vmatpush1.bf16.msra.mxu0 0
        %4396 = vmatprep.subr.bf16.mxu0 0
        %4397 = vmatpush1.bf16.msra.mxu0 0
        %4398 = vmatprep.subr.bf16.mxu0 0
        %4399 = vmatpush1.bf16.msra.mxu0 0
        %4400 = vmatprep.subr.bf16.mxu0 0
        %4401 = vmatpush1.bf16.msra.mxu0 0
        %4402 = vmatprep.subr.bf16.mxu0 0
        %4403 = vmatpush1.bf16.msra.mxu0 0
        %4404 = vmatprep.subr.bf16.mxu0 0
        %4405 = vmatpush1.bf16.msra.mxu0 0
        %4406 = vmatprep.subr.bf16.mxu0 0
        %4407 = vmatpush1.bf16.msra.mxu0 0
        %4408 = vmatprep.subr.bf16.mxu0 0
        %4409 = vmatpush1.bf16.msra.mxu0 0
        %4410 = vmatprep.subr.bf16.mxu0 0
        %4411 = vmatpush1.bf16.msra.mxu0 0
        %4412 = vmatprep.mubr.bf16.mxu0 0
        %4413 = vmatmul.mubr.bf16.gmra.mrb[0].mxu0 %v4378
        %v4414 = vpop.f32.mrb[0].mxu0
        %v4415 = vadd.f32 0.0, %v4414
        %v4416 = vpop.f32.mrb[0].mxu0
        %v4417 = vpop.f32.mrb[0].mxu0
        %v4418 = vadd.f32 0.0, %v4417
        %v4419 = vpop.f32.mrb[0].mxu0
        %4420 = vdwg.mxu0
        %4421 = vrot.lane.b32.xlu0 %v569, 32
        %v4422 = vpop.permute.xlu0 %4421
        %v4425 = vsel %vm571, %v4325, 0
        %4427 = vmatprep.subr.bf16.mxu0 0
        %4428 = vmatpush1.bf16.msra.mxu0 %v4422
        %4429 = vmatprep.subr.bf16.mxu0 0
        %4430 = vmatpush1.bf16.msra.mxu0 0
        %4431 = vmatprep.subr.bf16.mxu0 0
        %4432 = vmatpush1.bf16.msra.mxu0 0
        %4433 = vmatprep.subr.bf16.mxu0 0
        %4434 = vmatpush1.bf16.msra.mxu0 0
        %4435 = vmatprep.subr.bf16.mxu0 0
        %4436 = vmatpush1.bf16.msra.mxu0 0
        %4437 = vmatprep.subr.bf16.mxu0 0
        %4438 = vmatpush1.bf16.msra.mxu0 0
        %4439 = vmatprep.subr.bf16.mxu0 0
        %4440 = vmatpush1.bf16.msra.mxu0 0
        %4441 = vmatprep.subr.bf16.mxu0 0
        %4442 = vmatpush1.bf16.msra.mxu0 0
        %4443 = vmatprep.subr.bf16.mxu0 0
        %4444 = vmatpush1.bf16.msra.mxu0 0
        %4445 = vmatprep.subr.bf16.mxu0 0
        %4446 = vmatpush1.bf16.msra.mxu0 0
        %4447 = vmatprep.subr.bf16.mxu0 0
        %4448 = vmatpush1.bf16.msra.mxu0 0
        %4449 = vmatprep.subr.bf16.mxu0 0
        %4450 = vmatpush1.bf16.msra.mxu0 0
        %4451 = vmatprep.subr.bf16.mxu0 0
        %4452 = vmatpush1.bf16.msra.mxu0 0
        %4453 = vmatprep.subr.bf16.mxu0 0
        %4454 = vmatpush1.bf16.msra.mxu0 0
        %4455 = vmatprep.subr.bf16.mxu0 0
        %4456 = vmatpush1.bf16.msra.mxu0 0
        %4457 = vmatprep.subr.bf16.mxu0 0
        %4458 = vmatpush1.bf16.msra.mxu0 0
        %4459 = vmatprep.mubr.bf16.mxu0 0
        %4460 = vmatmul.mubr.bf16.gmra.mrb[0].mxu0 %v4425
        %v4461 = vpop.f32.mrb[0].mxu0
        %v4462 = vadd.f32 0.0, %v4461
        %v4463 = vpop.f32.mrb[0].mxu0
        %v4464 = vpop.f32.mrb[0].mxu0
        %v4465 = vadd.f32 0.0, %v4464
        %v4466 = vpop.f32.mrb[0].mxu0
        %4467 = vdwg.mxu0
        %4468 = vrot.lane.b32.xlu0 %v570, 32
        %v4469 = vpop.permute.xlu0 %4468
        %v4472 = vsel %vm571, %v4326, 0
        %4474 = vmatprep.subr.bf16.mxu0 0
        %4475 = vmatpush1.bf16.msra.mxu0 %v4469
        %4476 = vmatprep.subr.bf16.mxu0 0
        %4477 = vmatpush1.bf16.msra.mxu0 0
        %4478 = vmatprep.subr.bf16.mxu0 0
        %4479 = vmatpush1.bf16.msra.mxu0 0
        %4480 = vmatprep.subr.bf16.mxu0 0
        %4481 = vmatpush1.bf16.msra.mxu0 0
        %4482 = vmatprep.subr.bf16.mxu0 0
        %4483 = vmatpush1.bf16.msra.mxu0 0
        %4484 = vmatprep.subr.bf16.mxu0 0
        %4485 = vmatpush1.bf16.msra.mxu0 0
        %4486 = vmatprep.subr.bf16.mxu0 0
        %4487 = vmatpush1.bf16.msra.mxu0 0
        %4488 = vmatprep.subr.bf16.mxu0 0
        %4489 = vmatpush1.bf16.msra.mxu0 0
        %4490 = vmatprep.subr.bf16.mxu0 0
        %4491 = vmatpush1.bf16.msra.mxu0 0
        %4492 = vmatprep.subr.bf16.mxu0 0
        %4493 = vmatpush1.bf16.msra.mxu0 0
        %4494 = vmatprep.subr.bf16.mxu0 0
        %4495 = vmatpush1.bf16.msra.mxu0 0
        %4496 = vmatprep.subr.bf16.mxu0 0
        %4497 = vmatpush1.bf16.msra.mxu0 0
        %4498 = vmatprep.subr.bf16.mxu0 0
        %4499 = vmatpush1.bf16.msra.mxu0 0
        %4500 = vmatprep.subr.bf16.mxu0 0
        %4501 = vmatpush1.bf16.msra.mxu0 0
        %4502 = vmatprep.subr.bf16.mxu0 0
        %4503 = vmatpush1.bf16.msra.mxu0 0
        %4504 = vmatprep.subr.bf16.mxu0 0
        %4505 = vmatpush1.bf16.msra.mxu0 0
        %4506 = vmatprep.mubr.bf16.mxu0 0
        %4507 = vmatmul.mubr.bf16.gmra.mrb[0].mxu0 %v4472
        %v4508 = vpop.f32.mrb[0].mxu0
        %v4509 = vadd.f32 0.0, %v4508
        %v4510 = vpop.f32.mrb[0].mxu0
        %v4511 = vpop.f32.mrb[0].mxu0
        %v4512 = vadd.f32 0.0, %v4511
        %v4513 = vpop.f32.mrb[0].mxu0
        %4514 = vdwg.mxu0
        %v4515 = vpack.c.bf16 %v4371, %v4368
        %v4516 = vpack.c.bf16 %v4418, %v4415
        %v4517 = vpack.c.bf16 %v4465, %v4462
        %v4518 = vpack.c.bf16 %v4512, %v4509
        %s4519 = scalar_lea.vmem [#allocation7], 48
        %v4520 = vld [vmem:[%s4519] sm:$0xf]
        %v4521 = vld [vmem:[%s4519 + $0x4] sm:$0xf]
        %v4524 = vunpack.c.l.b16 %v4520
        %v4525 = vunpack.c.l.b16 %v4521
        %v4526 = vpack.c.b16 %v4525, %v4524
        %v4529 = vsel %vm571, %v4515, 0
        %v4532 = vsel %vm571, %v4516, 0
        %v4535 = vsel %vm571, %v4517, 0
        %v4538 = vsel %vm571, %v4518, 0
        %4540 = vmatprep.subr.bf16.mxu0 0
        %4541 = vmatpush1.bf16.msra.mxu0 %v4526
        %4542 = vmatprep.subr.bf16.mxu0 0
        %4543 = vmatpush1.bf16.msra.mxu0 0
        %4544 = vmatprep.subr.bf16.mxu0 0
        %4545 = vmatpush1.bf16.msra.mxu0 0
        %4546 = vmatprep.subr.bf16.mxu0 0
        %4547 = vmatpush1.bf16.msra.mxu0 0
        %4548 = vmatprep.subr.bf16.mxu0 0
        %4549 = vmatpush1.bf16.msra.mxu0 0
        %4550 = vmatprep.subr.bf16.mxu0 0
        %4551 = vmatpush1.bf16.msra.mxu0 0
        %4552 = vmatprep.subr.bf16.mxu0 0
        %4553 = vmatpush1.bf16.msra.mxu0 0
        %4554 = vmatprep.subr.bf16.mxu0 0
        %4555 = vmatpush1.bf16.msra.mxu0 0
        %4556 = vmatprep.subr.bf16.mxu0 0
        %4557 = vmatpush1.bf16.msra.mxu0 0
        %4558 = vmatprep.subr.bf16.mxu0 0
        %4559 = vmatpush1.bf16.msra.mxu0 0
        %4560 = vmatprep.subr.bf16.mxu0 0
        %4561 = vmatpush1.bf16.msra.mxu0 0
        %4562 = vmatprep.subr.bf16.mxu0 0
        %4563 = vmatpush1.bf16.msra.mxu0 0
        %4564 = vmatprep.subr.bf16.mxu0 0
        %4565 = vmatpush1.bf16.msra.mxu0 0
        %4566 = vmatprep.subr.bf16.mxu0 0
        %4567 = vmatpush1.bf16.msra.mxu0 0
        %4568 = vmatprep.subr.bf16.mxu0 0
        %4569 = vmatpush1.bf16.msra.mxu0 0
        %4570 = vmatprep.subr.bf16.mxu0 0
        %4571 = vmatpush1.bf16.msra.mxu0 0
        %4572 = vmatprep.mubr.bf16.mxu0 0
        %4573 = vmatmul.mubr.bf16.gmra.mrb[0].mxu0 %v4529
        %v4574 = vpop.f32.mrb[0].mxu0
        %v4575 = vadd.f32 0.0, %v4574
        %v4576 = vpop.f32.mrb[0].mxu0
        %v4577 = vpop.f32.mrb[0].mxu0
        %v4578 = vadd.f32 0.0, %v4577
        %v4579 = vpop.f32.mrb[0].mxu0
        %4580 = vmatprep.mubr.bf16.mxu0 0
        %4581 = vmatmul.mubr.bf16.gmra.mrb[0].mxu0 %v4532
        %v4582 = vpop.f32.mrb[0].mxu0
        %v4583 = vadd.f32 0.0, %v4582
        %v4584 = vpop.f32.mrb[0].mxu0
        %v4585 = vpop.f32.mrb[0].mxu0
        %v4586 = vadd.f32 0.0, %v4585
        %v4587 = vpop.f32.mrb[0].mxu0
        %4588 = vmatprep.mubr.bf16.mxu0 0
        %4589 = vmatmul.mubr.bf16.gmra.mrb[0].mxu0 %v4535
        %v4590 = vpop.f32.mrb[0].mxu0
        %v4591 = vadd.f32 0.0, %v4590
        %v4592 = vpop.f32.mrb[0].mxu0
        %v4593 = vpop.f32.mrb[0].mxu0
        %v4594 = vadd.f32 0.0, %v4593
        %v4595 = vpop.f32.mrb[0].mxu0
        %4596 = vmatprep.mubr.bf16.mxu0 0
        %4597 = vmatmul.mubr.bf16.gmra.mrb[0].mxu0 %v4538
        %v4598 = vpop.f32.mrb[0].mxu0
        %v4599 = vadd.f32 0.0, %v4598
        %v4600 = vpop.f32.mrb[0].mxu0
        %v4601 = vpop.f32.mrb[0].mxu0
        %v4602 = vadd.f32 0.0, %v4601
        %v4603 = vpop.f32.mrb[0].mxu0
        %4604 = vdwg.mxu0
        %v4605 = vadd.f32 %v4023, %v4575
        %v4606 = vadd.f32 %v4024, %v4578
        %v4607 = vadd.f32 %v4025, %v4583
        %v4608 = vadd.f32 %v4026, %v4586
        %v4609 = vadd.f32 %v4027, %v4591
        %v4610 = vadd.f32 %v4028, %v4594
        %v4611 = vadd.f32 %v4029, %v4599
        %v4612 = vadd.f32 %v4030, %v4602
        %4613 = vrot.lane.b32.xlu0 %v559, 16
        %v4614 = vpop.permute.xlu0 %4613
        %4615 = vrot.lane.b32.xlu0 %v563, 16
        %v4616 = vpop.permute.xlu0 %4615
        %v4618 = vsel %vm571, %v4614, 0
        %v4621 = vsel %vm571, %v4616, 0
        %4623 = vmatprep.subr.bf16.mxu0 0
        %4624 = vmatpush1.bf16.xpose.msra.mxu0 %v4621
        %4625 = vmatprep.subr.bf16.mxu0 0
        %4626 = vmatpush1.bf16.xpose.msra.mxu0 0
        %4627 = vmatprep.subr.bf16.mxu0 0
        %4628 = vmatpush1.bf16.xpose.msra.mxu0 0
        %4629 = vmatprep.subr.bf16.mxu0 0
        %4630 = vmatpush1.bf16.xpose.msra.mxu0 0
        %4631 = vmatprep.subr.bf16.mxu0 0
        %4632 = vmatpush1.bf16.xpose.msra.mxu0 0
        %4633 = vmatprep.subr.bf16.mxu0 0
        %4634 = vmatpush1.bf16.xpose.msra.mxu0 0
        %4635 = vmatprep.subr.bf16.mxu0 0
        %4636 = vmatpush1.bf16.xpose.msra.mxu0 0
        %4637 = vmatprep.subr.bf16.mxu0 0
        %4638 = vmatpush1.bf16.xpose.msra.mxu0 0
        %4639 = vmatprep.subr.bf16.mxu0 0
        %4640 = vmatpush1.bf16.xpose.msra.mxu0 0
        %4641 = vmatprep.subr.bf16.mxu0 0
        %4642 = vmatpush1.bf16.xpose.msra.mxu0 0
        %4643 = vmatprep.subr.bf16.mxu0 0
        %4644 = vmatpush1.bf16.xpose.msra.mxu0 0
        %4645 = vmatprep.subr.bf16.mxu0 0
        %4646 = vmatpush1.bf16.xpose.msra.mxu0 0
        %4647 = vmatprep.subr.bf16.mxu0 0
        %4648 = vmatpush1.bf16.xpose.msra.mxu0 0
        %4649 = vmatprep.subr.bf16.mxu0 0
        %4650 = vmatpush1.bf16.xpose.msra.mxu0 0
        %4651 = vmatprep.subr.bf16.mxu0 0
        %4652 = vmatpush1.bf16.xpose.msra.mxu0 0
        %4653 = vmatprep.subr.bf16.mxu0 0
        %4654 = vmatpush1.bf16.xpose.msra.mxu0 0
        %4655 = vmatprep.mubr.bf16.mxu0 0
        %4656 = vmatmul.mubr.bf16.gmra.mrb[0].mxu0 %v4618
        %v4657 = vpop.f32.mrb[0].mxu0
        %v4658 = vadd.f32 0.0, %v4657
        %v4659 = vpop.f32.mrb[0].mxu0
        %v4660 = vpop.f32.mrb[0].mxu0
        %v4661 = vadd.f32 0.0, %v4660
        %v4662 = vpop.f32.mrb[0].mxu0
        %4663 = vdwg.mxu0
        %4664 = vrot.lane.b32.xlu0 %v560, 16
        %v4665 = vpop.permute.xlu0 %4664
        %4666 = vrot.lane.b32.xlu0 %v564, 16
        %v4667 = vpop.permute.xlu0 %4666
        %v4669 = vsel %vm571, %v4665, 0
        %v4672 = vsel %vm571, %v4667, 0
        %4674 = vmatprep.subr.bf16.mxu0 0
        %4675 = vmatpush1.bf16.xpose.msra.mxu0 %v4672
        %4676 = vmatprep.subr.bf16.mxu0 0
        %4677 = vmatpush1.bf16.xpose.msra.mxu0 0
        %4678 = vmatprep.subr.bf16.mxu0 0
        %4679 = vmatpush1.bf16.xpose.msra.mxu0 0
        %4680 = vmatprep.subr.bf16.mxu0 0
        %4681 = vmatpush1.bf16.xpose.msra.mxu0 0
        %4682 = vmatprep.subr.bf16.mxu0 0
        %4683 = vmatpush1.bf16.xpose.msra.mxu0 0
        %4684 = vmatprep.subr.bf16.mxu0 0
        %4685 = vmatpush1.bf16.xpose.msra.mxu0 0
        %4686 = vmatprep.subr.bf16.mxu0 0
        %4687 = vmatpush1.bf16.xpose.msra.mxu0 0
        %4688 = vmatprep.subr.bf16.mxu0 0
        %4689 = vmatpush1.bf16.xpose.msra.mxu0 0
        %4690 = vmatprep.subr.bf16.mxu0 0
        %4691 = vmatpush1.bf16.xpose.msra.mxu0 0
        %4692 = vmatprep.subr.bf16.mxu0 0
        %4693 = vmatpush1.bf16.xpose.msra.mxu0 0
        %4694 = vmatprep.subr.bf16.mxu0 0
        %4695 = vmatpush1.bf16.xpose.msra.mxu0 0
        %4696 = vmatprep.subr.bf16.mxu0 0
        %4697 = vmatpush1.bf16.xpose.msra.mxu0 0
        %4698 = vmatprep.subr.bf16.mxu0 0
        %4699 = vmatpush1.bf16.xpose.msra.mxu0 0
        %4700 = vmatprep.subr.bf16.mxu0 0
        %4701 = vmatpush1.bf16.xpose.msra.mxu0 0
        %4702 = vmatprep.subr.bf16.mxu0 0
        %4703 = vmatpush1.bf16.xpose.msra.mxu0 0
        %4704 = vmatprep.subr.bf16.mxu0 0
        %4705 = vmatpush1.bf16.xpose.msra.mxu0 0
        %4706 = vmatprep.mubr.bf16.mxu0 0
        %4707 = vmatmul.mubr.bf16.gmra.mrb[0].mxu0 %v4669
        %v4708 = vpop.f32.mrb[0].mxu0
        %v4709 = vadd.f32 0.0, %v4708
        %v4710 = vpop.f32.mrb[0].mxu0
        %v4711 = vpop.f32.mrb[0].mxu0
        %v4712 = vadd.f32 0.0, %v4711
        %v4713 = vpop.f32.mrb[0].mxu0
        %4714 = vdwg.mxu0
        %4715 = vrot.lane.b32.xlu0 %v561, 16
        %v4716 = vpop.permute.xlu0 %4715
        %4717 = vrot.lane.b32.xlu0 %v565, 16
        %v4718 = vpop.permute.xlu0 %4717
        %v4720 = vsel %vm571, %v4716, 0
        %v4723 = vsel %vm571, %v4718, 0
        %4725 = vmatprep.subr.bf16.mxu0 0
        %4726 = vmatpush1.bf16.xpose.msra.mxu0 %v4723
        %4727 = vmatprep.subr.bf16.mxu0 0
        %4728 = vmatpush1.bf16.xpose.msra.mxu0 0
        %4729 = vmatprep.subr.bf16.mxu0 0
        %4730 = vmatpush1.bf16.xpose.msra.mxu0 0
        %4731 = vmatprep.subr.bf16.mxu0 0
        %4732 = vmatpush1.bf16.xpose.msra.mxu0 0
        %4733 = vmatprep.subr.bf16.mxu0 0
        %4734 = vmatpush1.bf16.xpose.msra.mxu0 0
        %4735 = vmatprep.subr.bf16.mxu0 0
        %4736 = vmatpush1.bf16.xpose.msra.mxu0 0
        %4737 = vmatprep.subr.bf16.mxu0 0
        %4738 = vmatpush1.bf16.xpose.msra.mxu0 0
        %4739 = vmatprep.subr.bf16.mxu0 0
        %4740 = vmatpush1.bf16.xpose.msra.mxu0 0
        %4741 = vmatprep.subr.bf16.mxu0 0
        %4742 = vmatpush1.bf16.xpose.msra.mxu0 0
        %4743 = vmatprep.subr.bf16.mxu0 0
        %4744 = vmatpush1.bf16.xpose.msra.mxu0 0
        %4745 = vmatprep.subr.bf16.mxu0 0
        %4746 = vmatpush1.bf16.xpose.msra.mxu0 0
        %4747 = vmatprep.subr.bf16.mxu0 0
        %4748 = vmatpush1.bf16.xpose.msra.mxu0 0
        %4749 = vmatprep.subr.bf16.mxu0 0
        %4750 = vmatpush1.bf16.xpose.msra.mxu0 0
        %4751 = vmatprep.subr.bf16.mxu0 0
        %4752 = vmatpush1.bf16.xpose.msra.mxu0 0
        %4753 = vmatprep.subr.bf16.mxu0 0
        %4754 = vmatpush1.bf16.xpose.msra.mxu0 0
        %4755 = vmatprep.subr.bf16.mxu0 0
        %4756 = vmatpush1.bf16.xpose.msra.mxu0 0
        %4757 = vmatprep.mubr.bf16.mxu0 0
        %4758 = vmatmul.mubr.bf16.gmra.mrb[0].mxu0 %v4720
        %v4759 = vpop.f32.mrb[0].mxu0
        %v4760 = vadd.f32 0.0, %v4759
        %v4761 = vpop.f32.mrb[0].mxu0
        %v4762 = vpop.f32.mrb[0].mxu0
        %v4763 = vadd.f32 0.0, %v4762
        %v4764 = vpop.f32.mrb[0].mxu0
        %4765 = vdwg.mxu0
        %4766 = vrot.lane.b32.xlu0 %v562, 16
        %v4767 = vpop.permute.xlu0 %4766
        %4768 = vrot.lane.b32.xlu0 %v566, 16
        %v4769 = vpop.permute.xlu0 %4768
        %v4771 = vsel %vm571, %v4767, 0
        %v4774 = vsel %vm571, %v4769, 0
        %4776 = vmatprep.subr.bf16.mxu0 0
        %4777 = vmatpush1.bf16.xpose.msra.mxu0 %v4774
        %4778 = vmatprep.subr.bf16.mxu0 0
        %4779 = vmatpush1.bf16.xpose.msra.mxu0 0
        %4780 = vmatprep.subr.bf16.mxu0 0
        %4781 = vmatpush1.bf16.xpose.msra.mxu0 0
        %4782 = vmatprep.subr.bf16.mxu0 0
        %4783 = vmatpush1.bf16.xpose.msra.mxu0 0
        %4784 = vmatprep.subr.bf16.mxu0 0
        %4785 = vmatpush1.bf16.xpose.msra.mxu0 0
        %4786 = vmatprep.subr.bf16.mxu0 0
        %4787 = vmatpush1.bf16.xpose.msra.mxu0 0
        %4788 = vmatprep.subr.bf16.mxu0 0
        %4789 = vmatpush1.bf16.xpose.msra.mxu0 0
        %4790 = vmatprep.subr.bf16.mxu0 0
        %4791 = vmatpush1.bf16.xpose.msra.mxu0 0
        %4792 = vmatprep.subr.bf16.mxu0 0
        %4793 = vmatpush1.bf16.xpose.msra.mxu0 0
        %4794 = vmatprep.subr.bf16.mxu0 0
        %4795 = vmatpush1.bf16.xpose.msra.mxu0 0
        %4796 = vmatprep.subr.bf16.mxu0 0
        %4797 = vmatpush1.bf16.xpose.msra.mxu0 0
        %4798 = vmatprep.subr.bf16.mxu0 0
        %4799 = vmatpush1.bf16.xpose.msra.mxu0 0
        %4800 = vmatprep.subr.bf16.mxu0 0
        %4801 = vmatpush1.bf16.xpose.msra.mxu0 0
        %4802 = vmatprep.subr.bf16.mxu0 0
        %4803 = vmatpush1.bf16.xpose.msra.mxu0 0
        %4804 = vmatprep.subr.bf16.mxu0 0
        %4805 = vmatpush1.bf16.xpose.msra.mxu0 0
        %4806 = vmatprep.subr.bf16.mxu0 0
        %4807 = vmatpush1.bf16.xpose.msra.mxu0 0
        %4808 = vmatprep.mubr.bf16.mxu0 0
        %4809 = vmatmul.mubr.bf16.gmra.mrb[0].mxu0 %v4771
        %v4810 = vpop.f32.mrb[0].mxu0
        %v4811 = vadd.f32 0.0, %v4810
        %v4812 = vpop.f32.mrb[0].mxu0
        %v4813 = vpop.f32.mrb[0].mxu0
        %v4814 = vadd.f32 0.0, %v4813
        %v4815 = vpop.f32.mrb[0].mxu0
        %4816 = vdwg.mxu0
        %v4817 = vsel %vm571, %v4658, -inf
        %4818 = vmax.xlane.f32.xlu0 %v4817
        %v4819 = vpop.xlane.xlu0 %4818
        %v4820 = vsel %vm571, %v4661, -inf
        %4821 = vmax.xlane.f32.xlu0 %v4820
        %v4822 = vpop.xlane.xlu0 %4821
        %v4823 = vsel %vm571, %v4709, -inf
        %4824 = vmax.xlane.f32.xlu0 %v4823
        %v4825 = vpop.xlane.xlu0 %4824
        %v4826 = vsel %vm571, %v4712, -inf
        %4827 = vmax.xlane.f32.xlu0 %v4826
        %v4828 = vpop.xlane.xlu0 %4827
        %v4829 = vsel %vm571, %v4760, -inf
        %4830 = vmax.xlane.f32.xlu0 %v4829
        %v4831 = vpop.xlane.xlu0 %4830
        %v4832 = vsel %vm571, %v4763, -inf
        %4833 = vmax.xlane.f32.xlu0 %v4832
        %v4834 = vpop.xlane.xlu0 %4833
        %v4835 = vsel %vm571, %v4811, -inf
        %4836 = vmax.xlane.f32.xlu0 %v4835
        %v4837 = vpop.xlane.xlu0 %4836
        %v4838 = vsel %vm571, %v4814, -inf
        %4839 = vmax.xlane.f32.xlu0 %v4838
        %v4840 = vpop.xlane.xlu0 %4839
        %v4841 = vsub.f32 %v4658, %v4819
        %v4842 = vsub.f32 %v4661, %v4822
        %v4843 = vsub.f32 %v4709, %v4825
        %v4844 = vsub.f32 %v4712, %v4828
        %v4845 = vsub.f32 %v4760, %v4831
        %v4846 = vsub.f32 %v4763, %v4834
        %v4847 = vsub.f32 %v4811, %v4837
        %v4848 = vsub.f32 %v4814, %v4840
        %v4849 = vmul.f32 %v4841, 1.442695
        %v4850 = vpow.pop %v4849
        %v4851 = vmul.f32 %v4842, 1.442695
        %v4852 = vpow.pop %v4851
        %v4853 = vmul.f32 %v4843, 1.442695
        %v4854 = vpow.pop %v4853
        %v4855 = vmul.f32 %v4844, 1.442695
        %v4856 = vpow.pop %v4855
        %v4857 = vmul.f32 %v4845, 1.442695
        %v4858 = vpow.pop %v4857
        %v4859 = vmul.f32 %v4846, 1.442695
        %v4860 = vpow.pop %v4859
        %v4861 = vmul.f32 %v4847, 1.442695
        %v4862 = vpow.pop %v4861
        %v4863 = vmul.f32 %v4848, 1.442695
        %v4864 = vpow.pop %v4863
        %v4865 = vsel %vm571, %v4850, 0.0
        %4866 = vadd.xlane.f32.xlu0 %v4865
        %v4867 = vpop.xlane.xlu0 %4866
        %v4868 = vsel %vm571, %v4852, 0.0
        %4869 = vadd.xlane.f32.xlu0 %v4868
        %v4870 = vpop.xlane.xlu0 %4869
        %v4871 = vsel %vm571, %v4854, 0.0
        %4872 = vadd.xlane.f32.xlu0 %v4871
        %v4873 = vpop.xlane.xlu0 %4872
        %v4874 = vsel %vm571, %v4856, 0.0
        %4875 = vadd.xlane.f32.xlu0 %v4874
        %v4876 = vpop.xlane.xlu0 %4875
        %v4877 = vsel %vm571, %v4858, 0.0
        %4878 = vadd.xlane.f32.xlu0 %v4877
        %v4879 = vpop.xlane.xlu0 %4878
        %v4880 = vsel %vm571, %v4860, 0.0
        %4881 = vadd.xlane.f32.xlu0 %v4880
        %v4882 = vpop.xlane.xlu0 %4881
        %v4883 = vsel %vm571, %v4862, 0.0
        %4884 = vadd.xlane.f32.xlu0 %v4883
        %v4885 = vpop.xlane.xlu0 %4884
        %v4886 = vsel %vm571, %v4864, 0.0
        %4887 = vadd.xlane.f32.xlu0 %v4886
        %v4888 = vpop.xlane.xlu0 %4887
        %v4889 = vrcp.pop %v4867
        %v4890 = vrcp.pop %v4870
        %v4891 = vrcp.pop %v4873
        %v4892 = vrcp.pop %v4876
        %v4893 = vrcp.pop %v4879
        %v4894 = vrcp.pop %v4882
        %v4895 = vrcp.pop %v4885
        %v4896 = vrcp.pop %v4888
        %v4897 = vmul.f32 %v4850, %v4889
        %v4898 = vmul.f32 %v4852, %v4890
        %v4899 = vmul.f32 %v4854, %v4891
        %v4900 = vmul.f32 %v4856, %v4892
        %v4901 = vmul.f32 %v4858, %v4893
        %v4902 = vmul.f32 %v4860, %v4894
        %v4903 = vmul.f32 %v4862, %v4895
        %v4904 = vmul.f32 %v4864, %v4896
        %v4905 = vpack.c.bf16 %v4898, %v4897
        %v4906 = vpack.c.bf16 %v4900, %v4899
        %v4907 = vpack.c.bf16 %v4902, %v4901
        %v4908 = vpack.c.bf16 %v4904, %v4903
        %4909 = vrot.lane.b32.xlu0 %v567, 16
        %v4910 = vpop.permute.xlu0 %4909
        %v4913 = vsel %vm571, %v4905, 0
        %4915 = vmatprep.subr.bf16.mxu0 0
        %4916 = vmatpush1.bf16.msra.mxu0 %v4910
        %4917 = vmatprep.subr.bf16.mxu0 0
        %4918 = vmatpush1.bf16.msra.mxu0 0
        %4919 = vmatprep.subr.bf16.mxu0 0
        %4920 = vmatpush1.bf16.msra.mxu0 0
        %4921 = vmatprep.subr.bf16.mxu0 0
        %4922 = vmatpush1.bf16.msra.mxu0 0
        %4923 = vmatprep.subr.bf16.mxu0 0
        %4924 = vmatpush1.bf16.msra.mxu0 0
        %4925 = vmatprep.subr.bf16.mxu0 0
        %4926 = vmatpush1.bf16.msra.mxu0 0
        %4927 = vmatprep.subr.bf16.mxu0 0
        %4928 = vmatpush1.bf16.msra.mxu0 0
        %4929 = vmatprep.subr.bf16.mxu0 0
        %4930 = vmatpush1.bf16.msra.mxu0 0
        %4931 = vmatprep.subr.bf16.mxu0 0
        %4932 = vmatpush1.bf16.msra.mxu0 0
        %4933 = vmatprep.subr.bf16.mxu0 0
        %4934 = vmatpush1.bf16.msra.mxu0 0
        %4935 = vmatprep.subr.bf16.mxu0 0
        %4936 = vmatpush1.bf16.msra.mxu0 0
        %4937 = vmatprep.subr.bf16.mxu0 0
        %4938 = vmatpush1.bf16.msra.mxu0 0
        %4939 = vmatprep.subr.bf16.mxu0 0
        %4940 = vmatpush1.bf16.msra.mxu0 0
        %4941 = vmatprep.subr.bf16.mxu0 0
        %4942 = vmatpush1.bf16.msra.mxu0 0
        %4943 = vmatprep.subr.bf16.mxu0 0
        %4944 = vmatpush1.bf16.msra.mxu0 0
        %4945 = vmatprep.subr.bf16.mxu0 0
        %4946 = vmatpush1.bf16.msra.mxu0 0
        %4947 = vmatprep.mubr.bf16.mxu0 0
        %4948 = vmatmul.mubr.bf16.gmra.mrb[0].mxu0 %v4913
        %v4949 = vpop.f32.mrb[0].mxu0
        %v4950 = vadd.f32 0.0, %v4949
        %v4951 = vpop.f32.mrb[0].mxu0
        %v4952 = vpop.f32.mrb[0].mxu0
        %v4953 = vadd.f32 0.0, %v4952
        %v4954 = vpop.f32.mrb[0].mxu0
        %4955 = vdwg.mxu0
        %4956 = vrot.lane.b32.xlu0 %v568, 16
        %v4957 = vpop.permute.xlu0 %4956
        %v4960 = vsel %vm571, %v4906, 0
        %4962 = vmatprep.subr.bf16.mxu0 0
        %4963 = vmatpush1.bf16.msra.mxu0 %v4957
        %4964 = vmatprep.subr.bf16.mxu0 0
        %4965 = vmatpush1.bf16.msra.mxu0 0
        %4966 = vmatprep.subr.bf16.mxu0 0
        %4967 = vmatpush1.bf16.msra.mxu0 0
        %4968 = vmatprep.subr.bf16.mxu0 0
        %4969 = vmatpush1.bf16.msra.mxu0 0
        %4970 = vmatprep.subr.bf16.mxu0 0
        %4971 = vmatpush1.bf16.msra.mxu0 0
        %4972 = vmatprep.subr.bf16.mxu0 0
        %4973 = vmatpush1.bf16.msra.mxu0 0
        %4974 = vmatprep.subr.bf16.mxu0 0
        %4975 = vmatpush1.bf16.msra.mxu0 0
        %4976 = vmatprep.subr.bf16.mxu0 0
        %4977 = vmatpush1.bf16.msra.mxu0 0
        %4978 = vmatprep.subr.bf16.mxu0 0
        %4979 = vmatpush1.bf16.msra.mxu0 0
        %4980 = vmatprep.subr.bf16.mxu0 0
        %4981 = vmatpush1.bf16.msra.mxu0 0
        %4982 = vmatprep.subr.bf16.mxu0 0
        %4983 = vmatpush1.bf16.msra.mxu0 0
        %4984 = vmatprep.subr.bf16.mxu0 0
        %4985 = vmatpush1.bf16.msra.mxu0 0
        %4986 = vmatprep.subr.bf16.mxu0 0
        %4987 = vmatpush1.bf16.msra.mxu0 0
        %4988 = vmatprep.subr.bf16.mxu0 0
        %4989 = vmatpush1.bf16.msra.mxu0 0
        %4990 = vmatprep.subr.bf16.mxu0 0
        %4991 = vmatpush1.bf16.msra.mxu0 0
        %4992 = vmatprep.subr.bf16.mxu0 0
        %4993 = vmatpush1.bf16.msra.mxu0 0
        %4994 = vmatprep.mubr.bf16.mxu0 0
        %4995 = vmatmul.mubr.bf16.gmra.mrb[0].mxu0 %v4960
        %v4996 = vpop.f32.mrb[0].mxu0
        %v4997 = vadd.f32 0.0, %v4996
        %v4998 = vpop.f32.mrb[0].mxu0
        %v4999 = vpop.f32.mrb[0].mxu0
        %v5000 = vadd.f32 0.0, %v4999
        %v5001 = vpop.f32.mrb[0].mxu0
        %5002 = vdwg.mxu0
        %5003 = vrot.lane.b32.xlu0 %v569, 16
        %v5004 = vpop.permute.xlu0 %5003
        %v5007 = vsel %vm571, %v4907, 0
        %5009 = vmatprep.subr.bf16.mxu0 0
        %5010 = vmatpush1.bf16.msra.mxu0 %v5004
        %5011 = vmatprep.subr.bf16.mxu0 0
        %5012 = vmatpush1.bf16.msra.mxu0 0
        %5013 = vmatprep.subr.bf16.mxu0 0
        %5014 = vmatpush1.bf16.msra.mxu0 0
        %5015 = vmatprep.subr.bf16.mxu0 0
        %5016 = vmatpush1.bf16.msra.mxu0 0
        %5017 = vmatprep.subr.bf16.mxu0 0
        %5018 = vmatpush1.bf16.msra.mxu0 0
        %5019 = vmatprep.subr.bf16.mxu0 0
        %5020 = vmatpush1.bf16.msra.mxu0 0
        %5021 = vmatprep.subr.bf16.mxu0 0
        %5022 = vmatpush1.bf16.msra.mxu0 0
        %5023 = vmatprep.subr.bf16.mxu0 0
        %5024 = vmatpush1.bf16.msra.mxu0 0
        %5025 = vmatprep.subr.bf16.mxu0 0
        %5026 = vmatpush1.bf16.msra.mxu0 0
        %5027 = vmatprep.subr.bf16.mxu0 0
        %5028 = vmatpush1.bf16.msra.mxu0 0
        %5029 = vmatprep.subr.bf16.mxu0 0
        %5030 = vmatpush1.bf16.msra.mxu0 0
        %5031 = vmatprep.subr.bf16.mxu0 0
        %5032 = vmatpush1.bf16.msra.mxu0 0
        %5033 = vmatprep.subr.bf16.mxu0 0
        %5034 = vmatpush1.bf16.msra.mxu0 0
        %5035 = vmatprep.subr.bf16.mxu0 0
        %5036 = vmatpush1.bf16.msra.mxu0 0
        %5037 = vmatprep.subr.bf16.mxu0 0
        %5038 = vmatpush1.bf16.msra.mxu0 0
        %5039 = vmatprep.subr.bf16.mxu0 0
        %5040 = vmatpush1.bf16.msra.mxu0 0
        %5041 = vmatprep.mubr.bf16.mxu0 0
        %5042 = vmatmul.mubr.bf16.gmra.mrb[0].mxu0 %v5007
        %v5043 = vpop.f32.mrb[0].mxu0
        %v5044 = vadd.f32 0.0, %v5043
        %v5045 = vpop.f32.mrb[0].mxu0
        %v5046 = vpop.f32.mrb[0].mxu0
        %v5047 = vadd.f32 0.0, %v5046
        %v5048 = vpop.f32.mrb[0].mxu0
        %5049 = vdwg.mxu0
        %5050 = vrot.lane.b32.xlu0 %v570, 16
        %v5051 = vpop.permute.xlu0 %5050
        %v5054 = vsel %vm571, %v4908, 0
        %5056 = vmatprep.subr.bf16.mxu0 0
        %5057 = vmatpush1.bf16.msra.mxu0 %v5051
        %5058 = vmatprep.subr.bf16.mxu0 0
        %5059 = vmatpush1.bf16.msra.mxu0 0
        %5060 = vmatprep.subr.bf16.mxu0 0
        %5061 = vmatpush1.bf16.msra.mxu0 0
        %5062 = vmatprep.subr.bf16.mxu0 0
        %5063 = vmatpush1.bf16.msra.mxu0 0
        %5064 = vmatprep.subr.bf16.mxu0 0
        %5065 = vmatpush1.bf16.msra.mxu0 0
        %5066 = vmatprep.subr.bf16.mxu0 0
        %5067 = vmatpush1.bf16.msra.mxu0 0
        %5068 = vmatprep.subr.bf16.mxu0 0
        %5069 = vmatpush1.bf16.msra.mxu0 0
        %5070 = vmatprep.subr.bf16.mxu0 0
        %5071 = vmatpush1.bf16.msra.mxu0 0
        %5072 = vmatprep.subr.bf16.mxu0 0
        %5073 = vmatpush1.bf16.msra.mxu0 0
        %5074 = vmatprep.subr.bf16.mxu0 0
        %5075 = vmatpush1.bf16.msra.mxu0 0
        %5076 = vmatprep.subr.bf16.mxu0 0
        %5077 = vmatpush1.bf16.msra.mxu0 0
        %5078 = vmatprep.subr.bf16.mxu0 0
        %5079 = vmatpush1.bf16.msra.mxu0 0
        %5080 = vmatprep.subr.bf16.mxu0 0
        %5081 = vmatpush1.bf16.msra.mxu0 0
        %5082 = vmatprep.subr.bf16.mxu0 0
        %5083 = vmatpush1.bf16.msra.mxu0 0
        %5084 = vmatprep.subr.bf16.mxu0 0
        %5085 = vmatpush1.bf16.msra.mxu0 0
        %5086 = vmatprep.subr.bf16.mxu0 0
        %5087 = vmatpush1.bf16.msra.mxu0 0
        %5088 = vmatprep.mubr.bf16.mxu0 0
        %5089 = vmatmul.mubr.bf16.gmra.mrb[0].mxu0 %v5054
        %v5090 = vpop.f32.mrb[0].mxu0
        %v5091 = vadd.f32 0.0, %v5090
        %v5092 = vpop.f32.mrb[0].mxu0
        %v5093 = vpop.f32.mrb[0].mxu0
        %v5094 = vadd.f32 0.0, %v5093
        %v5095 = vpop.f32.mrb[0].mxu0
        %5096 = vdwg.mxu0
        %v5097 = vpack.c.bf16 %v4953, %v4950
        %v5098 = vpack.c.bf16 %v5000, %v4997
        %v5099 = vpack.c.bf16 %v5047, %v5044
        %v5100 = vpack.c.bf16 %v5094, %v5091
        %s5101 = scalar_lea.vmem [#allocation7], 56
        %v5102 = vld [vmem:[%s5101] sm:$0xf]
        %v5103 = vld [vmem:[%s5101 + $0x4] sm:$0xf]
        %v5106 = vunpack.c.l.b16 %v5102
        %v5107 = vunpack.c.l.b16 %v5103
        %v5108 = vpack.c.b16 %v5107, %v5106
        %v5111 = vsel %vm571, %v5097, 0
        %v5114 = vsel %vm571, %v5098, 0
        %v5117 = vsel %vm571, %v5099, 0
        %v5120 = vsel %vm571, %v5100, 0
        %5122 = vmatprep.subr.bf16.mxu0 0
        %5123 = vmatpush1.bf16.msra.mxu0 %v5108
        %5124 = vmatprep.subr.bf16.mxu0 0
        %5125 = vmatpush1.bf16.msra.mxu0 0
        %5126 = vmatprep.subr.bf16.mxu0 0
        %5127 = vmatpush1.bf16.msra.mxu0 0
        %5128 = vmatprep.subr.bf16.mxu0 0
        %5129 = vmatpush1.bf16.msra.mxu0 0
        %5130 = vmatprep.subr.bf16.mxu0 0
        %5131 = vmatpush1.bf16.msra.mxu0 0
        %5132 = vmatprep.subr.bf16.mxu0 0
        %5133 = vmatpush1.bf16.msra.mxu0 0
        %5134 = vmatprep.subr.bf16.mxu0 0
        %5135 = vmatpush1.bf16.msra.mxu0 0
        %5136 = vmatprep.subr.bf16.mxu0 0
        %5137 = vmatpush1.bf16.msra.mxu0 0
        %5138 = vmatprep.subr.bf16.mxu0 0
        %5139 = vmatpush1.bf16.msra.mxu0 0
        %5140 = vmatprep.subr.bf16.mxu0 0
        %5141 = vmatpush1.bf16.msra.mxu0 0
        %5142 = vmatprep.subr.bf16.mxu0 0
        %5143 = vmatpush1.bf16.msra.mxu0 0
        %5144 = vmatprep.subr.bf16.mxu0 0
        %5145 = vmatpush1.bf16.msra.mxu0 0
        %5146 = vmatprep.subr.bf16.mxu0 0
        %5147 = vmatpush1.bf16.msra.mxu0 0
        %5148 = vmatprep.subr.bf16.mxu0 0
        %5149 = vmatpush1.bf16.msra.mxu0 0
        %5150 = vmatprep.subr.bf16.mxu0 0
        %5151 = vmatpush1.bf16.msra.mxu0 0
        %5152 = vmatprep.subr.bf16.mxu0 0
        %5153 = vmatpush1.bf16.msra.mxu0 0
        %5154 = vmatprep.mubr.bf16.mxu0 0
        %5155 = vmatmul.mubr.bf16.gmra.mrb[0].mxu0 %v5111
        %v5156 = vpop.f32.mrb[0].mxu0
        %v5157 = vadd.f32 0.0, %v5156
        %v5158 = vpop.f32.mrb[0].mxu0
        %v5159 = vpop.f32.mrb[0].mxu0
        %v5160 = vadd.f32 0.0, %v5159
        %v5161 = vpop.f32.mrb[0].mxu0
        %5162 = vmatprep.mubr.bf16.mxu0 0
        %5163 = vmatmul.mubr.bf16.gmra.mrb[0].mxu0 %v5114
        %v5164 = vpop.f32.mrb[0].mxu0
        %v5165 = vadd.f32 0.0, %v5164
        %v5166 = vpop.f32.mrb[0].mxu0
        %v5167 = vpop.f32.mrb[0].mxu0
        %v5168 = vadd.f32 0.0, %v5167
        %v5169 = vpop.f32.mrb[0].mxu0
        %5170 = vmatprep.mubr.bf16.mxu0 0
        %5171 = vmatmul.mubr.bf16.gmra.mrb[0].mxu0 %v5117
        %v5172 = vpop.f32.mrb[0].mxu0
        %v5173 = vadd.f32 0.0, %v5172
        %v5174 = vpop.f32.mrb[0].mxu0
        %v5175 = vpop.f32.mrb[0].mxu0
        %v5176 = vadd.f32 0.0, %v5175
        %v5177 = vpop.f32.mrb[0].mxu0
        %5178 = vmatprep.mubr.bf16.mxu0 0
        %5179 = vmatmul.mubr.bf16.gmra.mrb[0].mxu0 %v5120
        %v5180 = vpop.f32.mrb[0].mxu0
        %v5181 = vadd.f32 0.0, %v5180
        %v5182 = vpop.f32.mrb[0].mxu0
        %v5183 = vpop.f32.mrb[0].mxu0
        %v5184 = vadd.f32 0.0, %v5183
        %v5185 = vpop.f32.mrb[0].mxu0
        %5186 = vdwg.mxu0
        %v5187 = vadd.f32 %v4605, %v5157
        %v5188 = vadd.f32 %v4606, %v5160
        %v5189 = vadd.f32 %v4607, %v5165
        %v5190 = vadd.f32 %v4608, %v5168
        %v5191 = vadd.f32 %v4609, %v5173
        %v5192 = vadd.f32 %v4610, %v5176
        %v5193 = vadd.f32 %v4611, %v5181
        %v5194 = vadd.f32 %v4612, %v5184
        %v5195 = vld [vmem:[%s3] sm:$0x1]
        %v5197 = vlaneseq
        %v5198 = vshrl.u32 %v5197, 7
        %v5199 = vsub.s32 0, %v5198
        %v5200 = vrot.slane %v5195, %v5199
        %v5202 = vadd.f32 %v5187, %v5200
        %v5203 = vadd.f32 %v5188, %v5200
        %v5204 = vadd.f32 %v5189, %v5200
        %v5205 = vadd.f32 %v5190, %v5200
        %v5206 = vadd.f32 %v5191, %v5200
        %v5207 = vadd.f32 %v5192, %v5200
        %v5208 = vadd.f32 %v5193, %v5200
        %v5209 = vadd.f32 %v5194, %v5200
        %5210 = vst [vmem:[%s245] sm:$0xff] %v5202
        %5211 = vst [vmem:[%s245 + $0x8] sm:$0xff] %v5203
        %5212 = vst [vmem:[%s245 + $0x10] sm:$0xff] %v5204
        %5213 = vst [vmem:[%s245 + $0x18] sm:$0xff] %v5205
        %5214 = vst [vmem:[%s245 + $0x20] sm:$0xff] %v5206
        %5215 = vst [vmem:[%s245 + $0x28] sm:$0xff] %v5207
        %5216 = vst [vmem:[%s245 + $0x30] sm:$0xff] %v5208
        %5217 = vst [vmem:[%s245 + $0x38] sm:$0xff] %v5209
        %s5218 = sand.u32 %s119, 1
        %s5219 = scalar_lea.sflag [#allocation4], %s5218
        %s5220 = sand.u32 %s119, 1
        %s5221 = smul.addr %s5220, 64
        %s5222 = scalar_lea.vmem [#allocation8], %s5221
        // Predicated region
        $region49: #{tpu_custom_call.1} parent=35 // pred_check
          %p5223 = pneg %p129
        $region50: #{tpu_custom_call.1} parent=35 // pred_check_branch
          %5225 = sbr.rel (%p5223) target = $region52
        $region51: #{tpu_custom_call.1} parent=35 // pred_region
          %s5226 = smul.u32 4, %s22
          %s5228 = ssub.s32 1024, 1024
          %5229 = vsyncadd %s5219, %s5228
          %s5230 = smul.addr %s5226, 2
          %s5231 = smul.addr %s5230, 128
          %s5232 = scalar_lea.hbm %s4, %s5231
          %s5233 = sshll.u32 %s5222, 4
          %s5234 = int_to_ptr.vmem [resolvable:$true] %s5233
          %5239 = dma.vmem_to_hbm [thread:$0]  %s5234, 1024, %s5232, %s5219, 128, 128, 8
        $region52: #{tpu_custom_call.1} parent=35 // pred_fallthru
          _
      $region36: #{tpu_custom_call.1} parent=5 // pred_fallthru
        _
      %p5240 = scmp.le.s32.totalorder 2, %s17
      // Predicated region
      $region53: #{tpu_custom_call.1} parent=5 // pred_check
        %p5241 = pneg %p5240
      $region54: #{tpu_custom_call.1} parent=5 // pred_check_branch
        %5243 = sbr.rel (%p5241) target = $region56
      $region55: #{tpu_custom_call.1} parent=5 // pred_region
        %s5244 = ssub.s32 %s17, 2
        // Predicated region
        $region57: #{tpu_custom_call.1} parent=55 // pred_check
          %p5245 = pneg %p135
        $region58: #{tpu_custom_call.1} parent=55 // pred_check_branch
          %5247 = sbr.rel (%p5245) target = $region60
        $region59: #{tpu_custom_call.1} parent=55 // pred_region
          %s5248 = sand.u32 %s120, 1
          %s5249 = scalar_lea.sflag [#allocation4], %s5248
          %s5250 = sand.u32 %s120, 1
          %s5251 = smul.addr %s5250, 64
          %s5252 = scalar_lea.vmem [#allocation8], %s5251
          %5253 = dma.done %s5249, 1024
        $region60: #{tpu_custom_call.1} parent=55 // pred_fallthru
          _
      $region56: #{tpu_custom_call.1} parent=5 // pred_fallthru
        _
    $region6: #{tpu_custom_call.1} parent=1 // loop_footer
      %s21 = sadd.s32 1, %s17
    $region7: #{tpu_custom_call.1} parent=1 // loop_footer_branch
      %16 = sbr.rel target = $region3
    $region8: #{tpu_custom_call.1} parent=1 // loop_exit
      _
    %5254 = vsyncpa [#allocation3], 1
    %s5255 = scalar_lea.sflag [#allocation3], 1
    %5256 = vsyncpa %s5255, 1
    %5257 = vsyncpa [#allocation6], 1
    %5258 = vsyncpa [#allocation4], 1
    %s5259 = scalar_lea.sflag [#allocation4], 1
    %5260 = vsyncpa %s5259, 1

</llo_original>
